<compile_context>
chip_gen: v6e
topology: v6e:2x2x1
jax: 0.10.0
libtpu: 0.0.40
codegen_flags: <defaults>
</compile_context>

<pallas_src>
import jax
import jax.numpy as jnp
import numpy as np
from jax.experimental import pallas as pl
from jax.experimental.pallas import tpu as pltpu

BN_EPS = 1e-5
N_OUTPUT = 35

CONV_CFG = [
    # (Cin, Cout, ksize, stride)
    (1, 32, 80, 16),
    (32, 32, 3, 1),
    (32, 64, 3, 1),
    (64, 64, 3, 1),
]


def _round8(n):
    return ((n + 7) // 8) * 8


# ----------------------------------------------------------------------------
# Fused forward pass (single pallas_call)
# ----------------------------------------------------------------------------
def m5_forward_pallas(x_ncl, params, block_b=None):
    """x_ncl: (B, 1, L) float32 -> (B, 1, N_OUTPUT) log-probabilities."""
    B, cin0, L = x_ncl.shape
    assert cin0 == 1
    k1, stride1 = CONV_CFG[0][2], CONV_CFG[0][3]          # 80, 16
    assert k1 == 80 and stride1 == 16                     # layout trick assumes this

    # -- static time extents ---------------------------------------------------
    T1 = (L - k1) // stride1 + 1
    Tp1 = T1 // 4
    T2 = Tp1 - 2; Tp2 = T2 // 4
    T3 = Tp2 - 2; Tp3 = T3 // 4
    T4 = Tp3 - 2; Tp4 = T4 // 4
    assert Tp4 >= 1, "input too short for 4x MaxPool(4)"
    # Phase-split conv+pool reads rows up to 4*Tp_out+1 of the previous pooled
    # activation; guard that this stays within the rows actually written.
    for t_in, tp_out in ((Tp1, Tp2), (Tp2, Tp3), (Tp3, Tp4)):
        assert 4 * tp_out + 2 <= t_in

    c1, c2, c3, c4 = params["conv"]
    C1 = c1["w"].shape[0]; C2 = c2["w"].shape[0]
    C3 = c3["w"].shape[0]; C4 = c4["w"].shape[0]
    cin2 = c2["w"].shape[1]; cin3 = c3["w"].shape[1]; cin4 = c4["w"].shape[1]
    F_out = params["fc"]["w"].shape[0]
    LANES = 64
    assert max(C1, C2, C3, C4, F_out) <= LANES

    # -- x: FREE reshape; row i holds samples x[64*i : 64*i + 64] --------------
    NR = Tp1 + 1
    assert 64 * NR <= L
    x_rows = x_ncl[:, 0, : 64 * NR].reshape(B, NR, 64)

    # -- fold eval-mode BatchNorm: scale into weights (f32, then bf16), t add --
    def fold(c):
        s = c["gamma"] / jnp.sqrt(c["var"] + BN_EPS)
        t = (c["b"] - c["mean"]) * s + c["beta"]
        return s, t

    s1, t1 = fold(c1); s2, t2 = fold(c2); s3, t3 = fold(c3); s4, t4 = fold(c4)

    def pad_lanes(a):
        return jnp.pad(a, ((0, 0), (0, LANES - a.shape[1])))

    # conv1 weights in "two 64-wide row slabs per residue" form: the patch of
    # conv row t = 4*jp + r lives in x-row jp (lanes 16r..63) and x-row jp+1
    # (lanes 0..16r+15); zero rows in Wz make the unused lanes contribute 0.
    w1_mat = c1["w"].reshape(C1, k1).T * s1[None, :]                    # (80, C1)
    w1z = jnp.concatenate([jnp.zeros((48, C1), jnp.float32), w1_mat,
                           jnp.zeros((48, C1), jnp.float32)], axis=0)   # (176, C1)

    def pack_k3(c, s):        # (Cout, Cin, 3) -> (3*Cin, Cout), tap-major rows
        w = c["w"]
        cout, cin, k = w.shape
        return jnp.transpose(w, (2, 1, 0)).reshape(k * cin, cout) * s[None, :]

    w2m = pack_k3(c2, s2); w3m = pack_k3(c3, s3); w4m = pack_k3(c4, s4)

    W1_OFF = 0
    W2_OFF = W1_OFF + w1z.shape[0]
    W3_OFF = W2_OFF + w2m.shape[0]
    W4_OFF = W3_OFF + w3m.shape[0]
    wcat = jnp.concatenate(
        [pad_lanes(w1z), pad_lanes(w2m), pad_lanes(w3m), pad_lanes(w4m)],
        axis=0).astype(jnp.bfloat16)                                    # (560, 64)

    # f32 constants: rows 0..3 = t1..t4, row 4 = fc bias, rows 8.. = fc weight.
    def pad_row(v):
        return jnp.pad(v.reshape(1, -1), ((0, 0), (0, LANES - v.shape[0])))

    WF_ROW = 8
    fcat = jnp.concatenate(
        [pad_row(t1), pad_row(t2), pad_row(t3), pad_row(t4),
         pad_row(params["fc"]["b"]),
         jnp.zeros((WF_ROW - 5, LANES), jnp.float32),
         pad_lanes(params["fc"]["w"].T.astype(jnp.float32))],           # (C4, F) pad
        axis=0).astype(jnp.float32)                                     # (8+C4, 64)

    # -- batch blocking: amortize per-step cost, keep >= 2 parallel steps ------
    if block_b is None:
        block_b = 1
        for bt in (16, 8, 4, 2):
            if B % bt == 0 and B // bt >= 2:
                block_b = bt
                break
    assert B % block_b == 0
    BT = block_b
    grid = (B // BT,)

    # -- the fused kernel ------------------------------------------------------
    def kernel(x_ref, wcat_ref, fcat_ref, o_ref, h1_ref, h2_ref, h3_ref):
        f32, bf16 = jnp.float32, jnp.bfloat16

        def wslab(row0, rows, cols):          # bf16 weight slice (prefix lanes)
            return wcat_ref[pl.ds(row0, rows), pl.ds(0, cols)]

        def frow(row, cols):                  # f32 (1, cols) constant row
            return fcat_ref[pl.ds(row, 1), pl.ds(0, cols)]

        def conv_bn_relu_pool_k3(src_ref, w_off, cin, cout, t_row, tp_out):
            # k=3 conv + BN(add) + ReLU + MaxPool(4), fully fused: for each of
            # the 4 pool phases r, conv rows 4j+r are computed via stride-4
            # reads of the previous pooled activation; phases combine with a
            # running max (max commutes with the monotone +t / ReLU).
            wq = [wslab(w_off + q * cin, cin, cout) for q in range(3)]
            mx = None
            for r in range(4):
                acc = None
                for q in range(3):
                    a = src_ref[pl.ds(r + q, tp_out, stride=4), :].astype(bf16)
                    d = jnp.dot(a, wq[q], preferred_element_type=f32)
                    acc = d if acc is None else acc + d
                mx = acc if mx is None else jnp.maximum(mx, acc)
            return jnp.maximum(mx + frow(t_row, cout), 0.0)

        for e in range(BT):                   # unrolled: BT examples per step
            # ---- conv1 + BN + ReLU + MaxPool(4), chunked running max --------
            CH = 64
            for c0 in range(0, Tp1, CH):
                cn = min(CH, Tp1 - c0)
                xa = x_ref[e, pl.ds(c0, cn), :].astype(bf16)       # rows jp
                xb = x_ref[e, pl.ds(c0 + 1, cn), :].astype(bf16)   # rows jp+1
                mx = None
                for r in range(4):
                    acc = jnp.dot(xa, wslab(W1_OFF + 48 - 16 * r, 64, C1),
                                  preferred_element_type=f32)
                    acc = acc + jnp.dot(xb, wslab(W1_OFF + 112 - 16 * r, 64, C1),
                                        preferred_element_type=f32)
                    mx = acc if mx is None else jnp.maximum(mx, acc)
                h1_ref[pl.ds(c0, cn), :] = jnp.maximum(mx + frow(0, C1), 0.0)

            # ---- conv2..conv4, each fused with BN / ReLU / MaxPool(4) --------
            h2_ref[pl.ds(0, Tp2), :] = conv_bn_relu_pool_k3(
                h1_ref, W2_OFF, cin2, C2, 1, Tp2)
            h3_ref[pl.ds(0, Tp3), :] = conv_bn_relu_pool_k3(
                h2_ref, W3_OFF, cin3, C3, 2, Tp3)
            h4 = conv_bn_relu_pool_k3(h3_ref, W4_OFF, cin4, C4, 3, Tp4)  # (Tp4,C4)

            # ---- avg_pool1d over remaining time + Linear + log_softmax -------
            havg = jnp.sum(h4, axis=0, keepdims=True) * (1.0 / Tp4)      # (1, C4)
            wf = fcat_ref[pl.ds(WF_ROW, C4), pl.ds(0, F_out)]            # (C4, F)
            logits = jnp.dot(havg, wf, preferred_element_type=f32) + frow(4, F_out)
            m = jnp.max(logits, axis=-1, keepdims=True)
            z = logits - m
            lse = jnp.log(jnp.sum(jnp.exp(z), axis=-1, keepdims=True))
            o_ref[e] = z - lse

    out = pl.pallas_call(
        kernel,
        out_shape=jax.ShapeDtypeStruct((B, 1, F_out), jnp.float32),
        grid=grid,
        in_specs=[
            pl.BlockSpec((BT, NR, 64), lambda i: (i, 0, 0)),
            pl.BlockSpec(wcat.shape, lambda i: (0, 0)),
            pl.BlockSpec(fcat.shape, lambda i: (0, 0)),
        ],
        out_specs=pl.BlockSpec((BT, 1, F_out), lambda i: (i, 0, 0)),
        scratch_shapes=[
            pltpu.VMEM((_round8(Tp1), C1), jnp.float32),   # h1 (pooled layer 1)
            pltpu.VMEM((_round8(Tp2), C2), jnp.float32),   # h2
            pltpu.VMEM((_round8(Tp3), C3), jnp.float32),   # h3
        ],
        compiler_params=pltpu.CompilerParams(dimension_semantics=("parallel",)),
    )(x_rows, wcat, fcat)
    return out


# ----------------------------------------------------------------------------
# Parameters
# ----------------------------------------------------------------------------
def init_params(key):
    params = {"conv": [], "fc": None}
    keys = jax.random.split(key, 6 * len(CONV_CFG) + 2)
    ki = 0
    for (cin, cout, k, _s) in CONV_CFG:
        w = 0.05 * jax.random.normal(keys[ki], (cout, cin, k), jnp.float32); ki += 1
        b = 0.05 * jax.random.normal(keys[ki], (cout,), jnp.float32); ki += 1
        gamma = jax.random.uniform(keys[ki], (cout,), jnp.float32, 0.5, 1.5); ki += 1
        beta = 0.1 * jax.random.normal(keys[ki], (cout,), jnp.float32); ki += 1
        rmean = 0.1 * jax.random.normal(keys[ki], (cout,), jnp.float32); ki += 1
        rvar = jax.random.uniform(keys[ki], (cout,), jnp.float32, 0.5, 1.5); ki += 1
        params["conv"].append(dict(w=w, b=b, gamma=gamma, beta=beta,
                                   mean=rmean, var=rvar))
    fw = 0.05 * jax.random.normal(keys[ki], (N_OUTPUT, 2 * 32), jnp.float32); ki += 1
    fb = 0.05 * jax.random.normal(keys[ki], (N_OUTPUT,), jnp.float32); ki += 1
    params["fc"] = dict(w=fw, b=fb)
    return params


# ----------------------------------------------------------------------------
# Pure-JAX reference (mirrors the PyTorch forward, eval-mode BN)
# ----------------------------------------------------------------------------
def m5_forward_reference(x_ncl, params):
    def conv1d(x, w, b, stride):
        y = jax.lax.conv_general_dilated(
            x, w, (stride,), "VALID", dimension_numbers=("NCH", "OIH", "NCH"))
        return y + b[None, :, None]

    def bn_relu(x, p):
        y = (x - p["mean"][None, :, None]) / jnp.sqrt(p["var"][None, :, None] + BN_EPS)
        y = y * p["gamma"][None, :, None] + p["beta"][None, :, None]
        return jnp.maximum(y, 0.0)

    def maxpool4(x):
        B, C, L = x.shape
        lp = L // 4
        return jnp.max(x[:, :, : lp * 4].reshape(B, C, lp, 4), axis=-1)

    h = x_ncl
    for layer, (_cin, _cout, _k, s) in zip(params["conv"], CONV_CFG):
        h = conv1d(h, layer["w"], layer["b"], s)
        h = bn_relu(h, layer)
        h = maxpool4(h)
    h = jnp.mean(h, axis=-1, keepdims=True)       # avg_pool1d(x, x.shape[-1])
    h = jnp.transpose(h, (0, 2, 1))               # (B, 1, C)
    logits = jnp.einsum("btc,oc->bto", h, params["fc"]["w"]) + params["fc"]["b"]
    return jax.nn.log_softmax(logits, axis=2)


# ----------------------------------------------------------------------------
if __name__ == "__main__":
    key = jax.random.PRNGKey(0)
    k_param, k_x = jax.random.split(key)
    params = init_params(k_param)

    # batch=2, n_input=1, L=8000 (canonical M5 input; survives 4x pool(4))
    x = jax.random.normal(k_x, (2, 1, 8000), jnp.float32)

    fwd = jax.jit(m5_forward_pallas)
    out = jax.block_until_ready(fwd(x, params))

    ref = jax.block_until_ready(m5_forward_reference(x, params))
    assert out.shape == (2, 1, N_OUTPUT), out.shape
    # bf16 MXU inputs (f32 accumulation) -> slightly looser tolerance than f32.
    np.testing.assert_allclose(np.asarray(out), np.asarray(ref), atol=2e-2, rtol=2e-2)

    print("KERNEL_OK")
</pallas_src>

<mosaic_0001>
module attributes {stable_mosaic.version = 11 : i64} {
  func.func @kernel(%arg0: i32, %arg1: memref<1x125x64xf32, #tpu.memory_space<vmem>>, %arg2: memref<560x64xbf16, #tpu.memory_space<vmem>>, %arg3: memref<72x64xf32, #tpu.memory_space<vmem>>, %arg4: memref<1x1x35xf32, #tpu.memory_space<vmem>>, %arg5: memref<128x32xf32, #tpu.memory_space<vmem>>, %arg6: memref<32x32xf32, #tpu.memory_space<vmem>>, %arg7: memref<8x64xf32, #tpu.memory_space<vmem>>) attributes {dimension_semantics = [#tpu.dimension_semantics<parallel>], iteration_bounds = array<i64: 2>, scalar_prefetch = 0 : i64, scratch_operands = 3 : i64, tpu.core_type = #tpu.core_type<tc>, window_params = [{transform_indices = @transform_0, window_bounds = array<i64: 1, 125, 64>}, {pipeline_mode = #tpu.pipeline_mode<synchronous>, transform_indices = @transform_1, window_bounds = array<i64: 560, 64>}, {pipeline_mode = #tpu.pipeline_mode<synchronous>, transform_indices = @transform_2, window_bounds = array<i64: 72, 64>}, {transform_indices = @transform_3, window_bounds = array<i64: 1, 1, 35>}]} {
    %c0 = arith.constant 0 : index
    %c0_0 = arith.constant 0 : index
    %c0_1 = arith.constant 0 : index
    %0 = vector.load %arg1[%c0, %c0_0, %c0_1] : memref<1x125x64xf32, #tpu.memory_space<vmem>>, vector<1x64x64xf32>
    %1 = vector.shape_cast %0 : vector<1x64x64xf32> to vector<64x64xf32>
    %2 = arith.truncf %1 : vector<64x64xf32> to vector<64x64xbf16>
    %c0_2 = arith.constant 0 : index
    %c1 = arith.constant 1 : index
    %c0_3 = arith.constant 0 : index
    %3 = vector.load %arg1[%c0_2, %c1, %c0_3] : memref<1x125x64xf32, #tpu.memory_space<vmem>>, vector<1x64x64xf32>
    %4 = vector.shape_cast %3 : vector<1x64x64xf32> to vector<64x64xf32>
    %5 = arith.truncf %4 : vector<64x64xf32> to vector<64x64xbf16>
    %c48 = arith.constant 48 : index
    %c0_4 = arith.constant 0 : index
    %6 = vector.load %arg2[%c48, %c0_4] : memref<560x64xbf16, #tpu.memory_space<vmem>>, vector<64x32xbf16>
    %cst = arith.constant dense<0.000000e+00> : vector<64x32xf32>
    %7 = tpu.matmul %2, %6, %cst {dimension_numbers = #tpu.dot_dimension_numbers<[1], [0], [0], [1], [0, 0, 1, 1], [], []>} : vector<64x64xbf16>, vector<64x32xbf16>, vector<64x32xf32> -> vector<64x32xf32>
    %c112 = arith.constant 112 : index
    %c0_5 = arith.constant 0 : index
    %8 = vector.load %arg2[%c112, %c0_5] : memref<560x64xbf16, #tpu.memory_space<vmem>>, vector<64x32xbf16>
    %cst_6 = arith.constant dense<0.000000e+00> : vector<64x32xf32>
    %9 = tpu.matmul %5, %8, %cst_6 {dimension_numbers = #tpu.dot_dimension_numbers<[1], [0], [0], [1], [0, 0, 1, 1], [], []>} : vector<64x64xbf16>, vector<64x32xbf16>, vector<64x32xf32> -> vector<64x32xf32>
    %10 = arith.addf %7, %9 : vector<64x32xf32>
    %c32 = arith.constant 32 : index
    %c0_7 = arith.constant 0 : index
    %11 = vector.load %arg2[%c32, %c0_7] : memref<560x64xbf16, #tpu.memory_space<vmem>>, vector<64x32xbf16>
    %cst_8 = arith.constant dense<0.000000e+00> : vector<64x32xf32>
    %12 = tpu.matmul %2, %11, %cst_8 {dimension_numbers = #tpu.dot_dimension_numbers<[1], [0], [0], [1], [0, 0, 1, 1], [], []>} : vector<64x64xbf16>, vector<64x32xbf16>, vector<64x32xf32> -> vector<64x32xf32>
    %c96 = arith.constant 96 : index
    %c0_9 = arith.constant 0 : index
    %13 = vector.load %arg2[%c96, %c0_9] : memref<560x64xbf16, #tpu.memory_space<vmem>>, vector<64x32xbf16>
    %cst_10 = arith.constant dense<0.000000e+00> : vector<64x32xf32>
    %14 = tpu.matmul %5, %13, %cst_10 {dimension_numbers = #tpu.dot_dimension_numbers<[1], [0], [0], [1], [0, 0, 1, 1], [], []>} : vector<64x64xbf16>, vector<64x32xbf16>, vector<64x32xf32> -> vector<64x32xf32>
    %15 = arith.addf %12, %14 : vector<64x32xf32>
    %16 = arith.maximumf %10, %15 : vector<64x32xf32>
    %c16 = arith.constant 16 : index
    %c0_11 = arith.constant 0 : index
    %17 = vector.load %arg2[%c16, %c0_11] : memref<560x64xbf16, #tpu.memory_space<vmem>>, vector<64x32xbf16>
    %cst_12 = arith.constant dense<0.000000e+00> : vector<64x32xf32>
    %18 = tpu.matmul %2, %17, %cst_12 {dimension_numbers = #tpu.dot_dimension_numbers<[1], [0], [0], [1], [0, 0, 1, 1], [], []>} : vector<64x64xbf16>, vector<64x32xbf16>, vector<64x32xf32> -> vector<64x32xf32>
    %c80 = arith.constant 80 : index
    %c0_13 = arith.constant 0 : index
    %19 = vector.load %arg2[%c80, %c0_13] : memref<560x64xbf16, #tpu.memory_space<vmem>>, vector<64x32xbf16>
    %cst_14 = arith.constant dense<0.000000e+00> : vector<64x32xf32>
    %20 = tpu.matmul %5, %19, %cst_14 {dimension_numbers = #tpu.dot_dimension_numbers<[1], [0], [0], [1], [0, 0, 1, 1], [], []>} : vector<64x64xbf16>, vector<64x32xbf16>, vector<64x32xf32> -> vector<64x32xf32>
    %21 = arith.addf %18, %20 : vector<64x32xf32>
    %22 = arith.maximumf %16, %21 : vector<64x32xf32>
    %c0_15 = arith.constant 0 : index
    %c0_16 = arith.constant 0 : index
    %23 = vector.load %arg2[%c0_15, %c0_16] : memref<560x64xbf16, #tpu.memory_space<vmem>>, vector<64x32xbf16>
    %cst_17 = arith.constant dense<0.000000e+00> : vector<64x32xf32>
    %24 = tpu.matmul %2, %23, %cst_17 {dimension_numbers = #tpu.dot_dimension_numbers<[1], [0], [0], [1], [0, 0, 1, 1], [], []>} : vector<64x64xbf16>, vector<64x32xbf16>, vector<64x32xf32> -> vector<64x32xf32>
    %c64 = arith.constant 64 : index
    %c0_18 = arith.constant 0 : index
    %25 = vector.load %arg2[%c64, %c0_18] : memref<560x64xbf16, #tpu.memory_space<vmem>>, vector<64x32xbf16>
    %cst_19 = arith.constant dense<0.000000e+00> : vector<64x32xf32>
    %26 = tpu.matmul %5, %25, %cst_19 {dimension_numbers = #tpu.dot_dimension_numbers<[1], [0], [0], [1], [0, 0, 1, 1], [], []>} : vector<64x64xbf16>, vector<64x32xbf16>, vector<64x32xf32> -> vector<64x32xf32>
    %27 = arith.addf %24, %26 : vector<64x32xf32>
    %28 = arith.maximumf %22, %27 : vector<64x32xf32>
    %c0_20 = arith.constant 0 : index
    %c0_21 = arith.constant 0 : index
    %29 = vector.load %arg3[%c0_20, %c0_21] : memref<72x64xf32, #tpu.memory_space<vmem>>, vector<1x32xf32>
    %30 = vector.broadcast %29 : vector<1x32xf32> to vector<64x32xf32>
    %31 = arith.addf %28, %30 : vector<64x32xf32>
    %cst_22 = arith.constant 0.000000e+00 : f32
    %32 = vector.broadcast %cst_22 : f32 to vector<64x32xf32>
    %33 = arith.maximumf %31, %32 : vector<64x32xf32>
    %c0_23 = arith.constant 0 : index
    %c0_24 = arith.constant 0 : index
    %34 = vector.load %arg5[%c0_23, %c0_24] : memref<128x32xf32, #tpu.memory_space<vmem>>, vector<64x32xf32>
    tpu.vector_store %arg5[%c0_23, %c0_24], %33 {strides = array<i32>} : memref<128x32xf32, #tpu.memory_space<vmem>>, vector<64x32xf32>,
    %c0_25 = arith.constant 0 : index
    %c64_26 = arith.constant 64 : index
    %c0_27 = arith.constant 0 : index
    %35 = vector.load %arg1[%c0_25, %c64_26, %c0_27] : memref<1x125x64xf32, #tpu.memory_space<vmem>>, vector<1x60x64xf32>
    %36 = vector.shape_cast %35 : vector<1x60x64xf32> to vector<60x64xf32>
    %37 = arith.truncf %36 : vector<60x64xf32> to vector<60x64xbf16>
    %c0_28 = arith.constant 0 : index
    %c65 = arith.constant 65 : index
    %c0_29 = arith.constant 0 : index
    %38 = vector.load %arg1[%c0_28, %c65, %c0_29] : memref<1x125x64xf32, #tpu.memory_space<vmem>>, vector<1x60x64xf32>
    %39 = vector.shape_cast %38 : vector<1x60x64xf32> to vector<60x64xf32>
    %40 = arith.truncf %39 : vector<60x64xf32> to vector<60x64xbf16>
    %c48_30 = arith.constant 48 : index
    %c0_31 = arith.constant 0 : index
    %41 = vector.load %arg2[%c48_30, %c0_31] : memref<560x64xbf16, #tpu.memory_space<vmem>>, vector<64x32xbf16>
    %cst_32 = arith.constant dense<0.000000e+00> : vector<60x32xf32>
    %42 = tpu.matmul %37, %41, %cst_32 {dimension_numbers = #tpu.dot_dimension_numbers<[1], [0], [0], [1], [0, 0, 1, 1], [], []>} : vector<60x64xbf16>, vector<64x32xbf16>, vector<60x32xf32> -> vector<60x32xf32>
    %c112_33 = arith.constant 112 : index
    %c0_34 = arith.constant 0 : index
    %43 = vector.load %arg2[%c112_33, %c0_34] : memref<560x64xbf16, #tpu.memory_space<vmem>>, vector<64x32xbf16>
    %cst_35 = arith.constant dense<0.000000e+00> : vector<60x32xf32>
    %44 = tpu.matmul %40, %43, %cst_35 {dimension_numbers = #tpu.dot_dimension_numbers<[1], [0], [0], [1], [0, 0, 1, 1], [], []>} : vector<60x64xbf16>, vector<64x32xbf16>, vector<60x32xf32> -> vector<60x32xf32>
    %45 = arith.addf %42, %44 : vector<60x32xf32>
    %c32_36 = arith.constant 32 : index
    %c0_37 = arith.constant 0 : index
    %46 = vector.load %arg2[%c32_36, %c0_37] : memref<560x64xbf16, #tpu.memory_space<vmem>>, vector<64x32xbf16>
    %cst_38 = arith.constant dense<0.000000e+00> : vector<60x32xf32>
    %47 = tpu.matmul %37, %46, %cst_38 {dimension_numbers = #tpu.dot_dimension_numbers<[1], [0], [0], [1], [0, 0, 1, 1], [], []>} : vector<60x64xbf16>, vector<64x32xbf16>, vector<60x32xf32> -> vector<60x32xf32>
    %c96_39 = arith.constant 96 : index
    %c0_40 = arith.constant 0 : index
    %48 = vector.load %arg2[%c96_39, %c0_40] : memref<560x64xbf16, #tpu.memory_space<vmem>>, vector<64x32xbf16>
    %cst_41 = arith.constant dense<0.000000e+00> : vector<60x32xf32>
    %49 = tpu.matmul %40, %48, %cst_41 {dimension_numbers = #tpu.dot_dimension_numbers<[1], [0], [0], [1], [0, 0, 1, 1], [], []>} : vector<60x64xbf16>, vector<64x32xbf16>, vector<60x32xf32> -> vector<60x32xf32>
    %50 = arith.addf %47, %49 : vector<60x32xf32>
    %51 = arith.maximumf %45, %50 : vector<60x32xf32>
    %c16_42 = arith.constant 16 : index
    %c0_43 = arith.constant 0 : index
    %52 = vector.load %arg2[%c16_42, %c0_43] : memref<560x64xbf16, #tpu.memory_space<vmem>>, vector<64x32xbf16>
    %cst_44 = arith.constant dense<0.000000e+00> : vector<60x32xf32>
    %53 = tpu.matmul %37, %52, %cst_44 {dimension_numbers = #tpu.dot_dimension_numbers<[1], [0], [0], [1], [0, 0, 1, 1], [], []>} : vector<60x64xbf16>, vector<64x32xbf16>, vector<60x32xf32> -> vector<60x32xf32>
    %c80_45 = arith.constant 80 : index
    %c0_46 = arith.constant 0 : index
    %54 = vector.load %arg2[%c80_45, %c0_46] : memref<560x64xbf16, #tpu.memory_space<vmem>>, vector<64x32xbf16>
    %cst_47 = arith.constant dense<0.000000e+00> : vector<60x32xf32>
    %55 = tpu.matmul %40, %54, %cst_47 {dimension_numbers = #tpu.dot_dimension_numbers<[1], [0], [0], [1], [0, 0, 1, 1], [], []>} : vector<60x64xbf16>, vector<64x32xbf16>, vector<60x32xf32> -> vector<60x32xf32>
    %56 = arith.addf %53, %55 : vector<60x32xf32>
    %57 = arith.maximumf %51, %56 : vector<60x32xf32>
    %c0_48 = arith.constant 0 : index
    %c0_49 = arith.constant 0 : index
    %58 = vector.load %arg2[%c0_48, %c0_49] : memref<560x64xbf16, #tpu.memory_space<vmem>>, vector<64x32xbf16>
    %cst_50 = arith.constant dense<0.000000e+00> : vector<60x32xf32>
    %59 = tpu.matmul %37, %58, %cst_50 {dimension_numbers = #tpu.dot_dimension_numbers<[1], [0], [0], [1], [0, 0, 1, 1], [], []>} : vector<60x64xbf16>, vector<64x32xbf16>, vector<60x32xf32> -> vector<60x32xf32>
    %c64_51 = arith.constant 64 : index
    %c0_52 = arith.constant 0 : index
    %60 = vector.load %arg2[%c64_51, %c0_52] : memref<560x64xbf16, #tpu.memory_space<vmem>>, vector<64x32xbf16>
    %cst_53 = arith.constant dense<0.000000e+00> : vector<60x32xf32>
    %61 = tpu.matmul %40, %60, %cst_53 {dimension_numbers = #tpu.dot_dimension_numbers<[1], [0], [0], [1], [0, 0, 1, 1], [], []>} : vector<60x64xbf16>, vector<64x32xbf16>, vector<60x32xf32> -> vector<60x32xf32>
    %62 = arith.addf %59, %61 : vector<60x32xf32>
    %63 = arith.maximumf %57, %62 : vector<60x32xf32>
    %c0_54 = arith.constant 0 : index
    %c0_55 = arith.constant 0 : index
    %64 = vector.load %arg3[%c0_54, %c0_55] : memref<72x64xf32, #tpu.memory_space<vmem>>, vector<1x32xf32>
    %65 = vector.broadcast %64 : vector<1x32xf32> to vector<60x32xf32>
    %66 = arith.addf %63, %65 : vector<60x32xf32>
    %cst_56 = arith.constant 0.000000e+00 : f32
    %67 = vector.broadcast %cst_56 : f32 to vector<60x32xf32>
    %68 = arith.maximumf %66, %67 : vector<60x32xf32>
    %c64_57 = arith.constant 64 : index
    %c0_58 = arith.constant 0 : index
    %69 = vector.load %arg5[%c64_57, %c0_58] : memref<128x32xf32, #tpu.memory_space<vmem>>, vector<60x32xf32>
    tpu.vector_store %arg5[%c64_57, %c0_58], %68 {strides = array<i32>} : memref<128x32xf32, #tpu.memory_space<vmem>>, vector<60x32xf32>,
    %c176 = arith.constant 176 : index
    %c0_59 = arith.constant 0 : index
    %70 = vector.load %arg2[%c176, %c0_59] : memref<560x64xbf16, #tpu.memory_space<vmem>>, vector<32x32xbf16>
    %c208 = arith.constant 208 : index
    %c0_60 = arith.constant 0 : index
    %71 = vector.load %arg2[%c208, %c0_60] : memref<560x64xbf16, #tpu.memory_space<vmem>>, vector<32x32xbf16>
    %c240 = arith.constant 240 : index
    %c0_61 = arith.constant 0 : index
    %72 = vector.load %arg2[%c240, %c0_61] : memref<560x64xbf16, #tpu.memory_space<vmem>>, vector<32x32xbf16>
    %c0_62 = arith.constant 0 : index
    %c0_63 = arith.constant 0 : index
    %73 = tpu.strided_load %arg5[%c0_62, %c0_63] {strides = array<i32: 4, 1>} : memref<128x32xf32, #tpu.memory_space<vmem>>, vector<30x32xf32>
    %74 = arith.truncf %73 : vector<30x32xf32> to vector<30x32xbf16>
    %cst_64 = arith.constant dense<0.000000e+00> : vector<30x32xf32>
    %75 = tpu.matmul %74, %70, %cst_64 {dimension_numbers = #tpu.dot_dimension_numbers<[1], [0], [0], [1], [0, 0, 1, 1], [], []>} : vector<30x32xbf16>, vector<32x32xbf16>, vector<30x32xf32> -> vector<30x32xf32>
    %c1_65 = arith.constant 1 : index
    %c0_66 = arith.constant 0 : index
    %76 = tpu.strided_load %arg5[%c1_65, %c0_66] {strides = array<i32: 4, 1>} : memref<128x32xf32, #tpu.memory_space<vmem>>, vector<30x32xf32>
    %77 = arith.truncf %76 : vector<30x32xf32> to vector<30x32xbf16>
    %cst_67 = arith.constant dense<0.000000e+00> : vector<30x32xf32>
    %78 = tpu.matmul %77, %71, %cst_67 {dimension_numbers = #tpu.dot_dimension_numbers<[1], [0], [0], [1], [0, 0, 1, 1], [], []>} : vector<30x32xbf16>, vector<32x32xbf16>, vector<30x32xf32> -> vector<30x32xf32>
    %79 = arith.addf %75, %78 : vector<30x32xf32>
    %c2 = arith.constant 2 : index
    %c0_68 = arith.constant 0 : index
    %80 = tpu.strided_load %arg5[%c2, %c0_68] {strides = array<i32: 4, 1>} : memref<128x32xf32, #tpu.memory_space<vmem>>, vector<30x32xf32>
    %81 = arith.truncf %80 : vector<30x32xf32> to vector<30x32xbf16>
    %cst_69 = arith.constant dense<0.000000e+00> : vector<30x32xf32>
    %82 = tpu.matmul %81, %72, %cst_69 {dimension_numbers = #tpu.dot_dimension_numbers<[1], [0], [0], [1], [0, 0, 1, 1], [], []>} : vector<30x32xbf16>, vector<32x32xbf16>, vector<30x32xf32> -> vector<30x32xf32>
    %83 = arith.addf %79, %82 : vector<30x32xf32>
    %c1_70 = arith.constant 1 : index
    %c0_71 = arith.constant 0 : index
    %84 = tpu.strided_load %arg5[%c1_70, %c0_71] {strides = array<i32: 4, 1>} : memref<128x32xf32, #tpu.memory_space<vmem>>, vector<30x32xf32>
    %85 = arith.truncf %84 : vector<30x32xf32> to vector<30x32xbf16>
    %cst_72 = arith.constant dense<0.000000e+00> : vector<30x32xf32>
    %86 = tpu.matmul %85, %70, %cst_72 {dimension_numbers = #tpu.dot_dimension_numbers<[1], [0], [0], [1], [0, 0, 1, 1], [], []>} : vector<30x32xbf16>, vector<32x32xbf16>, vector<30x32xf32> -> vector<30x32xf32>
    %c2_73 = arith.constant 2 : index
    %c0_74 = arith.constant 0 : index
    %87 = tpu.strided_load %arg5[%c2_73, %c0_74] {strides = array<i32: 4, 1>} : memref<128x32xf32, #tpu.memory_space<vmem>>, vector<30x32xf32>
    %88 = arith.truncf %87 : vector<30x32xf32> to vector<30x32xbf16>
    %cst_75 = arith.constant dense<0.000000e+00> : vector<30x32xf32>
    %89 = tpu.matmul %88, %71, %cst_75 {dimension_numbers = #tpu.dot_dimension_numbers<[1], [0], [0], [1], [0, 0, 1, 1], [], []>} : vector<30x32xbf16>, vector<32x32xbf16>, vector<30x32xf32> -> vector<30x32xf32>
    %90 = arith.addf %86, %89 : vector<30x32xf32>
    %c3 = arith.constant 3 : index
    %c0_76 = arith.constant 0 : index
    %91 = tpu.strided_load %arg5[%c3, %c0_76] {strides = array<i32: 4, 1>} : memref<128x32xf32, #tpu.memory_space<vmem>>, vector<30x32xf32>
    %92 = arith.truncf %91 : vector<30x32xf32> to vector<30x32xbf16>
    %cst_77 = arith.constant dense<0.000000e+00> : vector<30x32xf32>
    %93 = tpu.matmul %92, %72, %cst_77 {dimension_numbers = #tpu.dot_dimension_numbers<[1], [0], [0], [1], [0, 0, 1, 1], [], []>} : vector<30x32xbf16>, vector<32x32xbf16>, vector<30x32xf32> -> vector<30x32xf32>
    %94 = arith.addf %90, %93 : vector<30x32xf32>
    %95 = arith.maximumf %83, %94 : vector<30x32xf32>
    %c2_78 = arith.constant 2 : index
    %c0_79 = arith.constant 0 : index
    %96 = tpu.strided_load %arg5[%c2_78, %c0_79] {strides = array<i32: 4, 1>} : memref<128x32xf32, #tpu.memory_space<vmem>>, vector<30x32xf32>
    %97 = arith.truncf %96 : vector<30x32xf32> to vector<30x32xbf16>
    %cst_80 = arith.constant dense<0.000000e+00> : vector<30x32xf32>
    %98 = tpu.matmul %97, %70, %cst_80 {dimension_numbers = #tpu.dot_dimension_numbers<[1], [0], [0], [1], [0, 0, 1, 1], [], []>} : vector<30x32xbf16>, vector<32x32xbf16>, vector<30x32xf32> -> vector<30x32xf32>
    %c3_81 = arith.constant 3 : index
    %c0_82 = arith.constant 0 : index
    %99 = tpu.strided_load %arg5[%c3_81, %c0_82] {strides = array<i32: 4, 1>} : memref<128x32xf32, #tpu.memory_space<vmem>>, vector<30x32xf32>
    %100 = arith.truncf %99 : vector<30x32xf32> to vector<30x32xbf16>
    %cst_83 = arith.constant dense<0.000000e+00> : vector<30x32xf32>
    %101 = tpu.matmul %100, %71, %cst_83 {dimension_numbers = #tpu.dot_dimension_numbers<[1], [0], [0], [1], [0, 0, 1, 1], [], []>} : vector<30x32xbf16>, vector<32x32xbf16>, vector<30x32xf32> -> vector<30x32xf32>
    %102 = arith.addf %98, %101 : vector<30x32xf32>
    %c4 = arith.constant 4 : index
    %c0_84 = arith.constant 0 : index
    %103 = tpu.strided_load %arg5[%c4, %c0_84] {strides = array<i32: 4, 1>} : memref<128x32xf32, #tpu.memory_space<vmem>>, vector<30x32xf32>
    %104 = arith.truncf %103 : vector<30x32xf32> to vector<30x32xbf16>
    %cst_85 = arith.constant dense<0.000000e+00> : vector<30x32xf32>
    %105 = tpu.matmul %104, %72, %cst_85 {dimension_numbers = #tpu.dot_dimension_numbers<[1], [0], [0], [1], [0, 0, 1, 1], [], []>} : vector<30x32xbf16>, vector<32x32xbf16>, vector<30x32xf32> -> vector<30x32xf32>
    %106 = arith.addf %102, %105 : vector<30x32xf32>
    %107 = arith.maximumf %95, %106 : vector<30x32xf32>
    %c3_86 = arith.constant 3 : index
    %c0_87 = arith.constant 0 : index
    %108 = tpu.strided_load %arg5[%c3_86, %c0_87] {strides = array<i32: 4, 1>} : memref<128x32xf32, #tpu.memory_space<vmem>>, vector<30x32xf32>
    %109 = arith.truncf %108 : vector<30x32xf32> to vector<30x32xbf16>
    %cst_88 = arith.constant dense<0.000000e+00> : vector<30x32xf32>
    %110 = tpu.matmul %109, %70, %cst_88 {dimension_numbers = #tpu.dot_dimension_numbers<[1], [0], [0], [1], [0, 0, 1, 1], [], []>} : vector<30x32xbf16>, vector<32x32xbf16>, vector<30x32xf32> -> vector<30x32xf32>
    %c4_89 = arith.constant 4 : index
    %c0_90 = arith.constant 0 : index
    %111 = tpu.strided_load %arg5[%c4_89, %c0_90] {strides = array<i32: 4, 1>} : memref<128x32xf32, #tpu.memory_space<vmem>>, vector<30x32xf32>
    %112 = arith.truncf %111 : vector<30x32xf32> to vector<30x32xbf16>
    %cst_91 = arith.constant dense<0.000000e+00> : vector<30x32xf32>
    %113 = tpu.matmul %112, %71, %cst_91 {dimension_numbers = #tpu.dot_dimension_numbers<[1], [0], [0], [1], [0, 0, 1, 1], [], []>} : vector<30x32xbf16>, vector<32x32xbf16>, vector<30x32xf32> -> vector<30x32xf32>
    %114 = arith.addf %110, %113 : vector<30x32xf32>
    %c5 = arith.constant 5 : index
    %c0_92 = arith.constant 0 : index
    %115 = tpu.strided_load %arg5[%c5, %c0_92] {strides = array<i32: 4, 1>} : memref<128x32xf32, #tpu.memory_space<vmem>>, vector<30x32xf32>
    %116 = arith.truncf %115 : vector<30x32xf32> to vector<30x32xbf16>
    %cst_93 = arith.constant dense<0.000000e+00> : vector<30x32xf32>
    %117 = tpu.matmul %116, %72, %cst_93 {dimension_numbers = #tpu.dot_dimension_numbers<[1], [0], [0], [1], [0, 0, 1, 1], [], []>} : vector<30x32xbf16>, vector<32x32xbf16>, vector<30x32xf32> -> vector<30x32xf32>
    %118 = arith.addf %114, %117 : vector<30x32xf32>
    %119 = arith.maximumf %107, %118 : vector<30x32xf32>
    %c1_94 = arith.constant 1 : index
    %c0_95 = arith.constant 0 : index
    %120 = vector.load %arg3[%c1_94, %c0_95] : memref<72x64xf32, #tpu.memory_space<vmem>>, vector<1x32xf32>
    %121 = vector.broadcast %120 : vector<1x32xf32> to vector<30x32xf32>
    %122 = arith.addf %119, %121 : vector<30x32xf32>
    %cst_96 = arith.constant 0.000000e+00 : f32
    %123 = vector.broadcast %cst_96 : f32 to vector<30x32xf32>
    %124 = arith.maximumf %122, %123 : vector<30x32xf32>
    %c0_97 = arith.constant 0 : index
    %c0_98 = arith.constant 0 : index
    %125 = vector.load %arg6[%c0_97, %c0_98] : memref<32x32xf32, #tpu.memory_space<vmem>>, vector<30x32xf32>
    tpu.vector_store %arg6[%c0_97, %c0_98], %124 {strides = array<i32>} : memref<32x32xf32, #tpu.memory_space<vmem>>, vector<30x32xf32>,
    %c272 = arith.constant 272 : index
    %c0_99 = arith.constant 0 : index
    %126 = vector.load %arg2[%c272, %c0_99] : memref<560x64xbf16, #tpu.memory_space<vmem>>, vector<32x64xbf16>
    %c304 = arith.constant 304 : index
    %c0_100 = arith.constant 0 : index
    %127 = vector.load %arg2[%c304, %c0_100] : memref<560x64xbf16, #tpu.memory_space<vmem>>, vector<32x64xbf16>
    %c336 = arith.constant 336 : index
    %c0_101 = arith.constant 0 : index
    %128 = vector.load %arg2[%c336, %c0_101] : memref<560x64xbf16, #tpu.memory_space<vmem>>, vector<32x64xbf16>
    %c0_102 = arith.constant 0 : index
    %c0_103 = arith.constant 0 : index
    %129 = tpu.strided_load %arg6[%c0_102, %c0_103] {strides = array<i32: 4, 1>} : memref<32x32xf32, #tpu.memory_space<vmem>>, vector<7x32xf32>
    %130 = arith.truncf %129 : vector<7x32xf32> to vector<7x32xbf16>
    %cst_104 = arith.constant dense<0.000000e+00> : vector<7x64xf32>
    %131 = tpu.matmul %130, %126, %cst_104 {dimension_numbers = #tpu.dot_dimension_numbers<[1], [0], [0], [1], [0, 0, 1, 1], [], []>} : vector<7x32xbf16>, vector<32x64xbf16>, vector<7x64xf32> -> vector<7x64xf32>
    %c1_105 = arith.constant 1 : index
    %c0_106 = arith.constant 0 : index
    %132 = tpu.strided_load %arg6[%c1_105, %c0_106] {strides = array<i32: 4, 1>} : memref<32x32xf32, #tpu.memory_space<vmem>>, vector<7x32xf32>
    %133 = arith.truncf %132 : vector<7x32xf32> to vector<7x32xbf16>
    %cst_107 = arith.constant dense<0.000000e+00> : vector<7x64xf32>
    %134 = tpu.matmul %133, %127, %cst_107 {dimension_numbers = #tpu.dot_dimension_numbers<[1], [0], [0], [1], [0, 0, 1, 1], [], []>} : vector<7x32xbf16>, vector<32x64xbf16>, vector<7x64xf32> -> vector<7x64xf32>
    %135 = arith.addf %131, %134 : vector<7x64xf32>
    %c2_108 = arith.constant 2 : index
    %c0_109 = arith.constant 0 : index
    %136 = tpu.strided_load %arg6[%c2_108, %c0_109] {strides = array<i32: 4, 1>} : memref<32x32xf32, #tpu.memory_space<vmem>>, vector<7x32xf32>
    %137 = arith.truncf %136 : vector<7x32xf32> to vector<7x32xbf16>
    %cst_110 = arith.constant dense<0.000000e+00> : vector<7x64xf32>
    %138 = tpu.matmul %137, %128, %cst_110 {dimension_numbers = #tpu.dot_dimension_numbers<[1], [0], [0], [1], [0, 0, 1, 1], [], []>} : vector<7x32xbf16>, vector<32x64xbf16>, vector<7x64xf32> -> vector<7x64xf32>
    %139 = arith.addf %135, %138 : vector<7x64xf32>
    %c1_111 = arith.constant 1 : index
    %c0_112 = arith.constant 0 : index
    %140 = tpu.strided_load %arg6[%c1_111, %c0_112] {strides = array<i32: 4, 1>} : memref<32x32xf32, #tpu.memory_space<vmem>>, vector<7x32xf32>
    %141 = arith.truncf %140 : vector<7x32xf32> to vector<7x32xbf16>
    %cst_113 = arith.constant dense<0.000000e+00> : vector<7x64xf32>
    %142 = tpu.matmul %141, %126, %cst_113 {dimension_numbers = #tpu.dot_dimension_numbers<[1], [0], [0], [1], [0, 0, 1, 1], [], []>} : vector<7x32xbf16>, vector<32x64xbf16>, vector<7x64xf32> -> vector<7x64xf32>
    %c2_114 = arith.constant 2 : index
    %c0_115 = arith.constant 0 : index
    %143 = tpu.strided_load %arg6[%c2_114, %c0_115] {strides = array<i32: 4, 1>} : memref<32x32xf32, #tpu.memory_space<vmem>>, vector<7x32xf32>
    %144 = arith.truncf %143 : vector<7x32xf32> to vector<7x32xbf16>
    %cst_116 = arith.constant dense<0.000000e+00> : vector<7x64xf32>
    %145 = tpu.matmul %144, %127, %cst_116 {dimension_numbers = #tpu.dot_dimension_numbers<[1], [0], [0], [1], [0, 0, 1, 1], [], []>} : vector<7x32xbf16>, vector<32x64xbf16>, vector<7x64xf32> -> vector<7x64xf32>
    %146 = arith.addf %142, %145 : vector<7x64xf32>
    %c3_117 = arith.constant 3 : index
    %c0_118 = arith.constant 0 : index
    %147 = tpu.strided_load %arg6[%c3_117, %c0_118] {strides = array<i32: 4, 1>} : memref<32x32xf32, #tpu.memory_space<vmem>>, vector<7x32xf32>
    %148 = arith.truncf %147 : vector<7x32xf32> to vector<7x32xbf16>
    %cst_119 = arith.constant dense<0.000000e+00> : vector<7x64xf32>
    %149 = tpu.matmul %148, %128, %cst_119 {dimension_numbers = #tpu.dot_dimension_numbers<[1], [0], [0], [1], [0, 0, 1, 1], [], []>} : vector<7x32xbf16>, vector<32x64xbf16>, vector<7x64xf32> -> vector<7x64xf32>
    %150 = arith.addf %146, %149 : vector<7x64xf32>
    %151 = arith.maximumf %139, %150 : vector<7x64xf32>
    %c2_120 = arith.constant 2 : index
    %c0_121 = arith.constant 0 : index
    %152 = tpu.strided_load %arg6[%c2_120, %c0_121] {strides = array<i32: 4, 1>} : memref<32x32xf32, #tpu.memory_space<vmem>>, vector<7x32xf32>
    %153 = arith.truncf %152 : vector<7x32xf32> to vector<7x32xbf16>
    %cst_122 = arith.constant dense<0.000000e+00> : vector<7x64xf32>
    %154 = tpu.matmul %153, %126, %cst_122 {dimension_numbers = #tpu.dot_dimension_numbers<[1], [0], [0], [1], [0, 0, 1, 1], [], []>} : vector<7x32xbf16>, vector<32x64xbf16>, vector<7x64xf32> -> vector<7x64xf32>
    %c3_123 = arith.constant 3 : index
    %c0_124 = arith.constant 0 : index
    %155 = tpu.strided_load %arg6[%c3_123, %c0_124] {strides = array<i32: 4, 1>} : memref<32x32xf32, #tpu.memory_space<vmem>>, vector<7x32xf32>
    %156 = arith.truncf %155 : vector<7x32xf32> to vector<7x32xbf16>
    %cst_125 = arith.constant dense<0.000000e+00> : vector<7x64xf32>
    %157 = tpu.matmul %156, %127, %cst_125 {dimension_numbers = #tpu.dot_dimension_numbers<[1], [0], [0], [1], [0, 0, 1, 1], [], []>} : vector<7x32xbf16>, vector<32x64xbf16>, vector<7x64xf32> -> vector<7x64xf32>
    %158 = arith.addf %154, %157 : vector<7x64xf32>
    %c4_126 = arith.constant 4 : index
    %c0_127 = arith.constant 0 : index
    %159 = tpu.strided_load %arg6[%c4_126, %c0_127] {strides = array<i32: 4, 1>} : memref<32x32xf32, #tpu.memory_space<vmem>>, vector<7x32xf32>
    %160 = arith.truncf %159 : vector<7x32xf32> to vector<7x32xbf16>
    %cst_128 = arith.constant dense<0.000000e+00> : vector<7x64xf32>
    %161 = tpu.matmul %160, %128, %cst_128 {dimension_numbers = #tpu.dot_dimension_numbers<[1], [0], [0], [1], [0, 0, 1, 1], [], []>} : vector<7x32xbf16>, vector<32x64xbf16>, vector<7x64xf32> -> vector<7x64xf32>
    %162 = arith.addf %158, %161 : vector<7x64xf32>
    %163 = arith.maximumf %151, %162 : vector<7x64xf32>
    %c3_129 = arith.constant 3 : index
    %c0_130 = arith.constant 0 : index
    %164 = tpu.strided_load %arg6[%c3_129, %c0_130] {strides = array<i32: 4, 1>} : memref<32x32xf32, #tpu.memory_space<vmem>>, vector<7x32xf32>
    %165 = arith.truncf %164 : vector<7x32xf32> to vector<7x32xbf16>
    %cst_131 = arith.constant dense<0.000000e+00> : vector<7x64xf32>
    %166 = tpu.matmul %165, %126, %cst_131 {dimension_numbers = #tpu.dot_dimension_numbers<[1], [0], [0], [1], [0, 0, 1, 1], [], []>} : vector<7x32xbf16>, vector<32x64xbf16>, vector<7x64xf32> -> vector<7x64xf32>
    %c4_132 = arith.constant 4 : index
    %c0_133 = arith.constant 0 : index
    %167 = tpu.strided_load %arg6[%c4_132, %c0_133] {strides = array<i32: 4, 1>} : memref<32x32xf32, #tpu.memory_space<vmem>>, vector<7x32xf32>
    %168 = arith.truncf %167 : vector<7x32xf32> to vector<7x32xbf16>
    %cst_134 = arith.constant dense<0.000000e+00> : vector<7x64xf32>
    %169 = tpu.matmul %168, %127, %cst_134 {dimension_numbers = #tpu.dot_dimension_numbers<[1], [0], [0], [1], [0, 0, 1, 1], [], []>} : vector<7x32xbf16>, vector<32x64xbf16>, vector<7x64xf32> -> vector<7x64xf32>
    %170 = arith.addf %166, %169 : vector<7x64xf32>
    %c5_135 = arith.constant 5 : index
    %c0_136 = arith.constant 0 : index
    %171 = tpu.strided_load %arg6[%c5_135, %c0_136] {strides = array<i32: 4, 1>} : memref<32x32xf32, #tpu.memory_space<vmem>>, vector<7x32xf32>
    %172 = arith.truncf %171 : vector<7x32xf32> to vector<7x32xbf16>
    %cst_137 = arith.constant dense<0.000000e+00> : vector<7x64xf32>
    %173 = tpu.matmul %172, %128, %cst_137 {dimension_numbers = #tpu.dot_dimension_numbers<[1], [0], [0], [1], [0, 0, 1, 1], [], []>} : vector<7x32xbf16>, vector<32x64xbf16>, vector<7x64xf32> -> vector<7x64xf32>
    %174 = arith.addf %170, %173 : vector<7x64xf32>
    %175 = arith.maximumf %163, %174 : vector<7x64xf32>
    %c2_138 = arith.constant 2 : index
    %c0_139 = arith.constant 0 : index
    %176 = vector.load %arg3[%c2_138, %c0_139] : memref<72x64xf32, #tpu.memory_space<vmem>>, vector<1x64xf32>
    %177 = vector.broadcast %176 : vector<1x64xf32> to vector<7x64xf32>
    %178 = arith.addf %175, %177 : vector<7x64xf32>
    %cst_140 = arith.constant 0.000000e+00 : f32
    %179 = vector.broadcast %cst_140 : f32 to vector<7x64xf32>
    %180 = arith.maximumf %178, %179 : vector<7x64xf32>
    %c0_141 = arith.constant 0 : index
    %c0_142 = arith.constant 0 : index
    %181 = vector.load %arg7[%c0_141, %c0_142] : memref<8x64xf32, #tpu.memory_space<vmem>>, vector<7x64xf32>
    tpu.vector_store %arg7[%c0_141, %c0_142], %180 {strides = array<i32>} : memref<8x64xf32, #tpu.memory_space<vmem>>, vector<7x64xf32>,
    %c368 = arith.constant 368 : index
    %c0_143 = arith.constant 0 : index
    %182 = vector.load %arg2[%c368, %c0_143] : memref<560x64xbf16, #tpu.memory_space<vmem>>, vector<64x64xbf16>
    %c432 = arith.constant 432 : index
    %c0_144 = arith.constant 0 : index
    %183 = vector.load %arg2[%c432, %c0_144] : memref<560x64xbf16, #tpu.memory_space<vmem>>, vector<64x64xbf16>
    %c496 = arith.constant 496 : index
    %c0_145 = arith.constant 0 : index
    %184 = vector.load %arg2[%c496, %c0_145] : memref<560x64xbf16, #tpu.memory_space<vmem>>, vector<64x64xbf16>
    %c0_146 = arith.constant 0 : index
    %c0_147 = arith.constant 0 : index
    %185 = tpu.strided_load %arg7[%c0_146, %c0_147] {strides = array<i32: 4, 1>} : memref<8x64xf32, #tpu.memory_space<vmem>>, vector<1x64xf32>
    %186 = arith.truncf %185 : vector<1x64xf32> to vector<1x64xbf16>
    %cst_148 = arith.constant dense<0.000000e+00> : vector<1x64xf32>
    %187 = tpu.matmul %186, %182, %cst_148 {dimension_numbers = #tpu.dot_dimension_numbers<[1], [0], [0], [1], [0, 0, 1, 1], [], []>} : vector<1x64xbf16>, vector<64x64xbf16>, vector<1x64xf32> -> vector<1x64xf32>
    %c1_149 = arith.constant 1 : index
    %c0_150 = arith.constant 0 : index
    %188 = tpu.strided_load %arg7[%c1_149, %c0_150] {strides = array<i32: 4, 1>} : memref<8x64xf32, #tpu.memory_space<vmem>>, vector<1x64xf32>
    %189 = arith.truncf %188 : vector<1x64xf32> to vector<1x64xbf16>
    %cst_151 = arith.constant dense<0.000000e+00> : vector<1x64xf32>
    %190 = tpu.matmul %189, %183, %cst_151 {dimension_numbers = #tpu.dot_dimension_numbers<[1], [0], [0], [1], [0, 0, 1, 1], [], []>} : vector<1x64xbf16>, vector<64x64xbf16>, vector<1x64xf32> -> vector<1x64xf32>
    %191 = arith.addf %187, %190 : vector<1x64xf32>
    %c2_152 = arith.constant 2 : index
    %c0_153 = arith.constant 0 : index
    %192 = tpu.strided_load %arg7[%c2_152, %c0_153] {strides = array<i32: 4, 1>} : memref<8x64xf32, #tpu.memory_space<vmem>>, vector<1x64xf32>
    %193 = arith.truncf %192 : vector<1x64xf32> to vector<1x64xbf16>
    %cst_154 = arith.constant dense<0.000000e+00> : vector<1x64xf32>
    %194 = tpu.matmul %193, %184, %cst_154 {dimension_numbers = #tpu.dot_dimension_numbers<[1], [0], [0], [1], [0, 0, 1, 1], [], []>} : vector<1x64xbf16>, vector<64x64xbf16>, vector<1x64xf32> -> vector<1x64xf32>
    %195 = arith.addf %191, %194 : vector<1x64xf32>
    %c1_155 = arith.constant 1 : index
    %c0_156 = arith.constant 0 : index
    %196 = tpu.strided_load %arg7[%c1_155, %c0_156] {strides = array<i32: 4, 1>} : memref<8x64xf32, #tpu.memory_space<vmem>>, vector<1x64xf32>
    %197 = arith.truncf %196 : vector<1x64xf32> to vector<1x64xbf16>
    %cst_157 = arith.constant dense<0.000000e+00> : vector<1x64xf32>
    %198 = tpu.matmul %197, %182, %cst_157 {dimension_numbers = #tpu.dot_dimension_numbers<[1], [0], [0], [1], [0, 0, 1, 1], [], []>} : vector<1x64xbf16>, vector<64x64xbf16>, vector<1x64xf32> -> vector<1x64xf32>
    %c2_158 = arith.constant 2 : index
    %c0_159 = arith.constant 0 : index
    %199 = tpu.strided_load %arg7[%c2_158, %c0_159] {strides = array<i32: 4, 1>} : memref<8x64xf32, #tpu.memory_space<vmem>>, vector<1x64xf32>
    %200 = arith.truncf %199 : vector<1x64xf32> to vector<1x64xbf16>
    %cst_160 = arith.constant dense<0.000000e+00> : vector<1x64xf32>
    %201 = tpu.matmul %200, %183, %cst_160 {dimension_numbers = #tpu.dot_dimension_numbers<[1], [0], [0], [1], [0, 0, 1, 1], [], []>} : vector<1x64xbf16>, vector<64x64xbf16>, vector<1x64xf32> -> vector<1x64xf32>
    %202 = arith.addf %198, %201 : vector<1x64xf32>
    %c3_161 = arith.constant 3 : index
    %c0_162 = arith.constant 0 : index
    %203 = tpu.strided_load %arg7[%c3_161, %c0_162] {strides = array<i32: 4, 1>} : memref<8x64xf32, #tpu.memory_space<vmem>>, vector<1x64xf32>
    %204 = arith.truncf %203 : vector<1x64xf32> to vector<1x64xbf16>
    %cst_163 = arith.constant dense<0.000000e+00> : vector<1x64xf32>
    %205 = tpu.matmul %204, %184, %cst_163 {dimension_numbers = #tpu.dot_dimension_numbers<[1], [0], [0], [1], [0, 0, 1, 1], [], []>} : vector<1x64xbf16>, vector<64x64xbf16>, vector<1x64xf32> -> vector<1x64xf32>
    %206 = arith.addf %202, %205 : vector<1x64xf32>
    %207 = arith.maximumf %195, %206 : vector<1x64xf32>
    %c2_164 = arith.constant 2 : index
    %c0_165 = arith.constant 0 : index
    %208 = tpu.strided_load %arg7[%c2_164, %c0_165] {strides = array<i32: 4, 1>} : memref<8x64xf32, #tpu.memory_space<vmem>>, vector<1x64xf32>
    %209 = arith.truncf %208 : vector<1x64xf32> to vector<1x64xbf16>
    %cst_166 = arith.constant dense<0.000000e+00> : vector<1x64xf32>
    %210 = tpu.matmul %209, %182, %cst_166 {dimension_numbers = #tpu.dot_dimension_numbers<[1], [0], [0], [1], [0, 0, 1, 1], [], []>} : vector<1x64xbf16>, vector<64x64xbf16>, vector<1x64xf32> -> vector<1x64xf32>
    %c3_167 = arith.constant 3 : index
    %c0_168 = arith.constant 0 : index
    %211 = tpu.strided_load %arg7[%c3_167, %c0_168] {strides = array<i32: 4, 1>} : memref<8x64xf32, #tpu.memory_space<vmem>>, vector<1x64xf32>
    %212 = arith.truncf %211 : vector<1x64xf32> to vector<1x64xbf16>
    %cst_169 = arith.constant dense<0.000000e+00> : vector<1x64xf32>
    %213 = tpu.matmul %212, %183, %cst_169 {dimension_numbers = #tpu.dot_dimension_numbers<[1], [0], [0], [1], [0, 0, 1, 1], [], []>} : vector<1x64xbf16>, vector<64x64xbf16>, vector<1x64xf32> -> vector<1x64xf32>
    %214 = arith.addf %210, %213 : vector<1x64xf32>
    %c4_170 = arith.constant 4 : index
    %c0_171 = arith.constant 0 : index
    %215 = tpu.strided_load %arg7[%c4_170, %c0_171] {strides = array<i32: 4, 1>} : memref<8x64xf32, #tpu.memory_space<vmem>>, vector<1x64xf32>
    %216 = arith.truncf %215 : vector<1x64xf32> to vector<1x64xbf16>
    %cst_172 = arith.constant dense<0.000000e+00> : vector<1x64xf32>
    %217 = tpu.matmul %216, %184, %cst_172 {dimension_numbers = #tpu.dot_dimension_numbers<[1], [0], [0], [1], [0, 0, 1, 1], [], []>} : vector<1x64xbf16>, vector<64x64xbf16>, vector<1x64xf32> -> vector<1x64xf32>
    %218 = arith.addf %214, %217 : vector<1x64xf32>
    %219 = arith.maximumf %207, %218 : vector<1x64xf32>
    %c3_173 = arith.constant 3 : index
    %c0_174 = arith.constant 0 : index
    %220 = tpu.strided_load %arg7[%c3_173, %c0_174] {strides = array<i32: 4, 1>} : memref<8x64xf32, #tpu.memory_space<vmem>>, vector<1x64xf32>
    %221 = arith.truncf %220 : vector<1x64xf32> to vector<1x64xbf16>
    %cst_175 = arith.constant dense<0.000000e+00> : vector<1x64xf32>
    %222 = tpu.matmul %221, %182, %cst_175 {dimension_numbers = #tpu.dot_dimension_numbers<[1], [0], [0], [1], [0, 0, 1, 1], [], []>} : vector<1x64xbf16>, vector<64x64xbf16>, vector<1x64xf32> -> vector<1x64xf32>
    %c4_176 = arith.constant 4 : index
    %c0_177 = arith.constant 0 : index
    %223 = tpu.strided_load %arg7[%c4_176, %c0_177] {strides = array<i32: 4, 1>} : memref<8x64xf32, #tpu.memory_space<vmem>>, vector<1x64xf32>
    %224 = arith.truncf %223 : vector<1x64xf32> to vector<1x64xbf16>
    %cst_178 = arith.constant dense<0.000000e+00> : vector<1x64xf32>
    %225 = tpu.matmul %224, %183, %cst_178 {dimension_numbers = #tpu.dot_dimension_numbers<[1], [0], [0], [1], [0, 0, 1, 1], [], []>} : vector<1x64xbf16>, vector<64x64xbf16>, vector<1x64xf32> -> vector<1x64xf32>
    %226 = arith.addf %222, %225 : vector<1x64xf32>
    %c5_179 = arith.constant 5 : index
    %c0_180 = arith.constant 0 : index
    %227 = tpu.strided_load %arg7[%c5_179, %c0_180] {strides = array<i32: 4, 1>} : memref<8x64xf32, #tpu.memory_space<vmem>>, vector<1x64xf32>
    %228 = arith.truncf %227 : vector<1x64xf32> to vector<1x64xbf16>
    %cst_181 = arith.constant dense<0.000000e+00> : vector<1x64xf32>
    %229 = tpu.matmul %228, %184, %cst_181 {dimension_numbers = #tpu.dot_dimension_numbers<[1], [0], [0], [1], [0, 0, 1, 1], [], []>} : vector<1x64xbf16>, vector<64x64xbf16>, vector<1x64xf32> -> vector<1x64xf32>
    %230 = arith.addf %226, %229 : vector<1x64xf32>
    %231 = arith.maximumf %219, %230 : vector<1x64xf32>
    %c3_182 = arith.constant 3 : index
    %c0_183 = arith.constant 0 : index
    %232 = vector.load %arg3[%c3_182, %c0_183] : memref<72x64xf32, #tpu.memory_space<vmem>>, vector<1x64xf32>
    %233 = arith.addf %231, %232 : vector<1x64xf32>
    %cst_184 = arith.constant 0.000000e+00 : f32
    %234 = vector.broadcast %cst_184 : f32 to vector<1x64xf32>
    %235 = arith.maximumf %233, %234 : vector<1x64xf32>
    %cst_185 = arith.constant dense<0.000000e+00> : vector<64xf32>
    %236 = vector.multi_reduction <add>, %235, %cst_185 [0] : vector<1x64xf32> to vector<64xf32>
    %237 = vector.shape_cast %236 : vector<64xf32> to vector<1x64xf32>
    %cst_186 = arith.constant 1.000000e+00 : f32
    %238 = vector.broadcast %cst_186 : f32 to vector<1x64xf32>
    %239 = arith.mulf %237, %238 : vector<1x64xf32>
    %c8 = arith.constant 8 : index
    %c0_187 = arith.constant 0 : index
    %240 = vector.load %arg3[%c8, %c0_187] : memref<72x64xf32, #tpu.memory_space<vmem>>, vector<64x35xf32>
    %cst_188 = arith.constant dense<0.000000e+00> : vector<1x35xf32>
    %241 = tpu.matmul %239, %240, %cst_188 {dimension_numbers = #tpu.dot_dimension_numbers<[1], [0], [0], [1], [0, 0, 1, 1], [], []>} : vector<1x64xf32>, vector<64x35xf32>, vector<1x35xf32> -> vector<1x35xf32>
    %c4_189 = arith.constant 4 : index
    %c0_190 = arith.constant 0 : index
    %242 = vector.load %arg3[%c4_189, %c0_190] : memref<72x64xf32, #tpu.memory_space<vmem>>, vector<1x35xf32>
    %243 = arith.addf %241, %242 : vector<1x35xf32>
    %cst_191 = arith.constant dense<0xFF800000> : vector<1xf32>
    %244 = vector.multi_reduction <maximumf>, %243, %cst_191 [1] : vector<1x35xf32> to vector<1xf32>
    %245 = vector.shape_cast %244 : vector<1xf32> to vector<1x1xf32>
    %246 = vector.broadcast %245 : vector<1x1xf32> to vector<1x35xf32>
    %247 = arith.subf %243, %246 : vector<1x35xf32>
    %248 = math.exp %247 : vector<1x35xf32>
    %cst_192 = arith.constant dense<0.000000e+00> : vector<1xf32>
    %249 = vector.multi_reduction <add>, %248, %cst_192 [1] : vector<1x35xf32> to vector<1xf32>
    %250 = vector.shape_cast %249 : vector<1xf32> to vector<1x1xf32>
    %251 = math.log %250 : vector<1x1xf32>
    %252 = vector.broadcast %251 : vector<1x1xf32> to vector<1x35xf32>
    %253 = arith.subf %247, %252 : vector<1x35xf32>
    %c0_193 = arith.constant 0 : index
    %c0_194 = arith.constant 0 : index
    %c0_195 = arith.constant 0 : index
    %254 = vector.load %arg4[%c0_193, %c0_194, %c0_195] : memref<1x1x35xf32, #tpu.memory_space<vmem>>, vector<1x1x35xf32>
    %255 = vector.shape_cast %254 : vector<1x1x35xf32> to vector<1x35xf32>
    %256 = vector.shape_cast %253 : vector<1x35xf32> to vector<1x1x35xf32>
    tpu.vector_store %arg4[%c0_193, %c0_194, %c0_195], %256 {strides = array<i32>} : memref<1x1x35xf32, #tpu.memory_space<vmem>>, vector<1x1x35xf32>,
    return
  }
  func.func @transform_0(%arg0: i32) -> (i32, i32, i32) {
    %c0_i32 = arith.constant 0 : i32
    %c0_i32_0 = arith.constant 0 : i32
    %c0_i32_1 = arith.constant 0 : i32
    return %arg0, %c0_i32, %c0_i32_0 : i32, i32, i32
  }
  func.func @transform_1(%arg0: i32) -> (i32, i32) {
    %c0_i32 = arith.constant 0 : i32
    %c0_i32_0 = arith.constant 0 : i32
    %c0_i32_1 = arith.constant 0 : i32
    return %c0_i32, %c0_i32_0 : i32, i32
  }
  func.func @transform_2(%arg0: i32) -> (i32, i32) {
    %c0_i32 = arith.constant 0 : i32
    %c0_i32_0 = arith.constant 0 : i32
    %c0_i32_1 = arith.constant 0 : i32
    return %c0_i32, %c0_i32_0 : i32, i32
  }
  func.func @transform_3(%arg0: i32) -> (i32, i32, i32) {
    %c0_i32 = arith.constant 0 : i32
    %c0_i32_0 = arith.constant 0 : i32
    %c0_i32_1 = arith.constant 0 : i32
    return %arg0, %c0_i32, %c0_i32_0 : i32, i32, i32
  }
}

</mosaic_0001>

<llo_original>
// kernel: squeeze.1
$region0: #{squeeze.1}
  %s0 = inlined_call_operand.vmem [shape: f32[2,8000], index: 0, kind: input, shape index: {}]
  %s1 = inlined_call_operand.vmem [shape: f32[2,125,64], index: 1, kind: output, shape index: {}]
  $region1: #{squeeze.1} parent=0
    #allocation0 [shape = 'u8[258048]{0}', space=vmem, size = 0x3f000, scoped, tag = 'scoped mem for input reshape']
    %s3 = sshll.u32 1, 2
    %s4 = ssub.s32 %s3, 1
    %s5 = smul.addr 2, 62
    %s6 = scalar_lea.vmem %s0, %s5
    %v7 = vld [vmem:[%s6] sm:%s4]
    %s8 = scalar_lea.vmem [#allocation0], 496
    %9 = vst [vmem:[%s8] sm:%s4] %v7
    %s10 = smul.addr 2, 61
    %s11 = scalar_lea.vmem %s0, %s10
    %v12 = vld [vmem:[%s11] sm:%s4]
    %s13 = scalar_lea.vmem [#allocation0], 488
    %14 = vst [vmem:[%s13] sm:%s4] %v12
    %s15 = smul.addr 2, 60
    %s16 = scalar_lea.vmem %s0, %s15
    %v17 = vld [vmem:[%s16] sm:%s4]
    %s18 = scalar_lea.vmem [#allocation0], 480
    %19 = vst [vmem:[%s18] sm:%s4] %v17
    %s20 = smul.addr 2, 59
    %s21 = scalar_lea.vmem %s0, %s20
    %v22 = vld [vmem:[%s21] sm:%s4]
    %s23 = scalar_lea.vmem [#allocation0], 472
    %24 = vst [vmem:[%s23] sm:%s4] %v22
    %s25 = smul.addr 2, 58
    %s26 = scalar_lea.vmem %s0, %s25
    %v27 = vld [vmem:[%s26] sm:%s4]
    %s28 = scalar_lea.vmem [#allocation0], 464
    %29 = vst [vmem:[%s28] sm:%s4] %v27
    %s30 = smul.addr 2, 57
    %s31 = scalar_lea.vmem %s0, %s30
    %v32 = vld [vmem:[%s31] sm:%s4]
    %s33 = scalar_lea.vmem [#allocation0], 456
    %34 = vst [vmem:[%s33] sm:%s4] %v32
    %s35 = smul.addr 2, 56
    %s36 = scalar_lea.vmem %s0, %s35
    %v37 = vld [vmem:[%s36] sm:%s4]
    %s38 = scalar_lea.vmem [#allocation0], 448
    %39 = vst [vmem:[%s38] sm:%s4] %v37
    %s40 = smul.addr 2, 55
    %s41 = scalar_lea.vmem %s0, %s40
    %v42 = vld [vmem:[%s41] sm:%s4]
    %s43 = scalar_lea.vmem [#allocation0], 440
    %44 = vst [vmem:[%s43] sm:%s4] %v42
    %s45 = smul.addr 2, 54
    %s46 = scalar_lea.vmem %s0, %s45
    %v47 = vld [vmem:[%s46] sm:%s4]
    %s48 = scalar_lea.vmem [#allocation0], 432
    %49 = vst [vmem:[%s48] sm:%s4] %v47
    %s50 = smul.addr 2, 53
    %s51 = scalar_lea.vmem %s0, %s50
    %v52 = vld [vmem:[%s51] sm:%s4]
    %s53 = scalar_lea.vmem [#allocation0], 424
    %54 = vst [vmem:[%s53] sm:%s4] %v52
    %s55 = smul.addr 2, 52
    %s56 = scalar_lea.vmem %s0, %s55
    %v57 = vld [vmem:[%s56] sm:%s4]
    %s58 = scalar_lea.vmem [#allocation0], 416
    %59 = vst [vmem:[%s58] sm:%s4] %v57
    %s60 = smul.addr 2, 51
    %s61 = scalar_lea.vmem %s0, %s60
    %v62 = vld [vmem:[%s61] sm:%s4]
    %s63 = scalar_lea.vmem [#allocation0], 408
    %64 = vst [vmem:[%s63] sm:%s4] %v62
    %s65 = smul.addr 2, 50
    %s66 = scalar_lea.vmem %s0, %s65
    %v67 = vld [vmem:[%s66] sm:%s4]
    %s68 = scalar_lea.vmem [#allocation0], 400
    %69 = vst [vmem:[%s68] sm:%s4] %v67
    %s70 = smul.addr 2, 49
    %s71 = scalar_lea.vmem %s0, %s70
    %v72 = vld [vmem:[%s71] sm:%s4]
    %s73 = scalar_lea.vmem [#allocation0], 392
    %74 = vst [vmem:[%s73] sm:%s4] %v72
    %s75 = smul.addr 2, 48
    %s76 = scalar_lea.vmem %s0, %s75
    %v77 = vld [vmem:[%s76] sm:%s4]
    %s78 = scalar_lea.vmem [#allocation0], 384
    %79 = vst [vmem:[%s78] sm:%s4] %v77
    %s80 = smul.addr 2, 47
    %s81 = scalar_lea.vmem %s0, %s80
    %v82 = vld [vmem:[%s81] sm:%s4]
    %s83 = scalar_lea.vmem [#allocation0], 376
    %84 = vst [vmem:[%s83] sm:%s4] %v82
    %s85 = smul.addr 2, 46
    %s86 = scalar_lea.vmem %s0, %s85
    %v87 = vld [vmem:[%s86] sm:%s4]
    %s88 = scalar_lea.vmem [#allocation0], 368
    %89 = vst [vmem:[%s88] sm:%s4] %v87
    %s90 = smul.addr 2, 45
    %s91 = scalar_lea.vmem %s0, %s90
    %v92 = vld [vmem:[%s91] sm:%s4]
    %s93 = scalar_lea.vmem [#allocation0], 360
    %94 = vst [vmem:[%s93] sm:%s4] %v92
    %s95 = smul.addr 2, 44
    %s96 = scalar_lea.vmem %s0, %s95
    %v97 = vld [vmem:[%s96] sm:%s4]
    %s98 = scalar_lea.vmem [#allocation0], 352
    %99 = vst [vmem:[%s98] sm:%s4] %v97
    %s100 = smul.addr 2, 43
    %s101 = scalar_lea.vmem %s0, %s100
    %v102 = vld [vmem:[%s101] sm:%s4]
    %s103 = scalar_lea.vmem [#allocation0], 344
    %104 = vst [vmem:[%s103] sm:%s4] %v102
    %s105 = smul.addr 2, 42
    %s106 = scalar_lea.vmem %s0, %s105
    %v107 = vld [vmem:[%s106] sm:%s4]
    %s108 = scalar_lea.vmem [#allocation0], 336
    %109 = vst [vmem:[%s108] sm:%s4] %v107
    %s110 = smul.addr 2, 41
    %s111 = scalar_lea.vmem %s0, %s110
    %v112 = vld [vmem:[%s111] sm:%s4]
    %s113 = scalar_lea.vmem [#allocation0], 328
    %114 = vst [vmem:[%s113] sm:%s4] %v112
    %s115 = smul.addr 2, 40
    %s116 = scalar_lea.vmem %s0, %s115
    %v117 = vld [vmem:[%s116] sm:%s4]
    %s118 = scalar_lea.vmem [#allocation0], 320
    %119 = vst [vmem:[%s118] sm:%s4] %v117
    %s120 = smul.addr 2, 39
    %s121 = scalar_lea.vmem %s0, %s120
    %v122 = vld [vmem:[%s121] sm:%s4]
    %s123 = scalar_lea.vmem [#allocation0], 312
    %124 = vst [vmem:[%s123] sm:%s4] %v122
    %s125 = smul.addr 2, 38
    %s126 = scalar_lea.vmem %s0, %s125
    %v127 = vld [vmem:[%s126] sm:%s4]
    %s128 = scalar_lea.vmem [#allocation0], 304
    %129 = vst [vmem:[%s128] sm:%s4] %v127
    %s130 = smul.addr 2, 37
    %s131 = scalar_lea.vmem %s0, %s130
    %v132 = vld [vmem:[%s131] sm:%s4]
    %s133 = scalar_lea.vmem [#allocation0], 296
    %134 = vst [vmem:[%s133] sm:%s4] %v132
    %s135 = smul.addr 2, 36
    %s136 = scalar_lea.vmem %s0, %s135
    %v137 = vld [vmem:[%s136] sm:%s4]
    %s138 = scalar_lea.vmem [#allocation0], 288
    %139 = vst [vmem:[%s138] sm:%s4] %v137
    %s140 = smul.addr 2, 35
    %s141 = scalar_lea.vmem %s0, %s140
    %v142 = vld [vmem:[%s141] sm:%s4]
    %s143 = scalar_lea.vmem [#allocation0], 280
    %144 = vst [vmem:[%s143] sm:%s4] %v142
    %s145 = smul.addr 2, 34
    %s146 = scalar_lea.vmem %s0, %s145
    %v147 = vld [vmem:[%s146] sm:%s4]
    %s148 = scalar_lea.vmem [#allocation0], 272
    %149 = vst [vmem:[%s148] sm:%s4] %v147
    %s150 = smul.addr 2, 33
    %s151 = scalar_lea.vmem %s0, %s150
    %v152 = vld [vmem:[%s151] sm:%s4]
    %s153 = scalar_lea.vmem [#allocation0], 264
    %154 = vst [vmem:[%s153] sm:%s4] %v152
    %s155 = smul.addr 2, 32
    %s156 = scalar_lea.vmem %s0, %s155
    %v157 = vld [vmem:[%s156] sm:%s4]
    %s158 = scalar_lea.vmem [#allocation0], 256
    %159 = vst [vmem:[%s158] sm:%s4] %v157
    %s160 = smul.addr 2, 31
    %s161 = scalar_lea.vmem %s0, %s160
    %v162 = vld [vmem:[%s161] sm:%s4]
    %s163 = scalar_lea.vmem [#allocation0], 248
    %164 = vst [vmem:[%s163] sm:%s4] %v162
    %s165 = smul.addr 2, 30
    %s166 = scalar_lea.vmem %s0, %s165
    %v167 = vld [vmem:[%s166] sm:%s4]
    %s168 = scalar_lea.vmem [#allocation0], 240
    %169 = vst [vmem:[%s168] sm:%s4] %v167
    %s170 = smul.addr 2, 29
    %s171 = scalar_lea.vmem %s0, %s170
    %v172 = vld [vmem:[%s171] sm:%s4]
    %s173 = scalar_lea.vmem [#allocation0], 232
    %174 = vst [vmem:[%s173] sm:%s4] %v172
    %s175 = smul.addr 2, 28
    %s176 = scalar_lea.vmem %s0, %s175
    %v177 = vld [vmem:[%s176] sm:%s4]
    %s178 = scalar_lea.vmem [#allocation0], 224
    %179 = vst [vmem:[%s178] sm:%s4] %v177
    %s180 = smul.addr 2, 27
    %s181 = scalar_lea.vmem %s0, %s180
    %v182 = vld [vmem:[%s181] sm:%s4]
    %s183 = scalar_lea.vmem [#allocation0], 216
    %184 = vst [vmem:[%s183] sm:%s4] %v182
    %s185 = smul.addr 2, 26
    %s186 = scalar_lea.vmem %s0, %s185
    %v187 = vld [vmem:[%s186] sm:%s4]
    %s188 = scalar_lea.vmem [#allocation0], 208
    %189 = vst [vmem:[%s188] sm:%s4] %v187
    %s190 = smul.addr 2, 25
    %s191 = scalar_lea.vmem %s0, %s190
    %v192 = vld [vmem:[%s191] sm:%s4]
    %s193 = scalar_lea.vmem [#allocation0], 200
    %194 = vst [vmem:[%s193] sm:%s4] %v192
    %s195 = smul.addr 2, 24
    %s196 = scalar_lea.vmem %s0, %s195
    %v197 = vld [vmem:[%s196] sm:%s4]
    %s198 = scalar_lea.vmem [#allocation0], 192
    %199 = vst [vmem:[%s198] sm:%s4] %v197
    %s200 = smul.addr 2, 23
    %s201 = scalar_lea.vmem %s0, %s200
    %v202 = vld [vmem:[%s201] sm:%s4]
    %s203 = scalar_lea.vmem [#allocation0], 184
    %204 = vst [vmem:[%s203] sm:%s4] %v202
    %s205 = smul.addr 2, 22
    %s206 = scalar_lea.vmem %s0, %s205
    %v207 = vld [vmem:[%s206] sm:%s4]
    %s208 = scalar_lea.vmem [#allocation0], 176
    %209 = vst [vmem:[%s208] sm:%s4] %v207
    %s210 = smul.addr 2, 21
    %s211 = scalar_lea.vmem %s0, %s210
    %v212 = vld [vmem:[%s211] sm:%s4]
    %s213 = scalar_lea.vmem [#allocation0], 168
    %214 = vst [vmem:[%s213] sm:%s4] %v212
    %s215 = smul.addr 2, 20
    %s216 = scalar_lea.vmem %s0, %s215
    %v217 = vld [vmem:[%s216] sm:%s4]
    %s218 = scalar_lea.vmem [#allocation0], 160
    %219 = vst [vmem:[%s218] sm:%s4] %v217
    %s220 = smul.addr 2, 19
    %s221 = scalar_lea.vmem %s0, %s220
    %v222 = vld [vmem:[%s221] sm:%s4]
    %s223 = scalar_lea.vmem [#allocation0], 152
    %224 = vst [vmem:[%s223] sm:%s4] %v222
    %s225 = smul.addr 2, 18
    %s226 = scalar_lea.vmem %s0, %s225
    %v227 = vld [vmem:[%s226] sm:%s4]
    %s228 = scalar_lea.vmem [#allocation0], 144
    %229 = vst [vmem:[%s228] sm:%s4] %v227
    %s230 = smul.addr 2, 17
    %s231 = scalar_lea.vmem %s0, %s230
    %v232 = vld [vmem:[%s231] sm:%s4]
    %s233 = scalar_lea.vmem [#allocation0], 136
    %234 = vst [vmem:[%s233] sm:%s4] %v232
    %s235 = smul.addr 2, 16
    %s236 = scalar_lea.vmem %s0, %s235
    %v237 = vld [vmem:[%s236] sm:%s4]
    %s238 = scalar_lea.vmem [#allocation0], 128
    %239 = vst [vmem:[%s238] sm:%s4] %v237
    %s240 = smul.addr 2, 15
    %s241 = scalar_lea.vmem %s0, %s240
    %v242 = vld [vmem:[%s241] sm:%s4]
    %s243 = scalar_lea.vmem [#allocation0], 120
    %244 = vst [vmem:[%s243] sm:%s4] %v242
    %s245 = smul.addr 2, 14
    %s246 = scalar_lea.vmem %s0, %s245
    %v247 = vld [vmem:[%s246] sm:%s4]
    %s248 = scalar_lea.vmem [#allocation0], 112
    %249 = vst [vmem:[%s248] sm:%s4] %v247
    %s250 = smul.addr 2, 13
    %s251 = scalar_lea.vmem %s0, %s250
    %v252 = vld [vmem:[%s251] sm:%s4]
    %s253 = scalar_lea.vmem [#allocation0], 104
    %254 = vst [vmem:[%s253] sm:%s4] %v252
    %s255 = smul.addr 2, 12
    %s256 = scalar_lea.vmem %s0, %s255
    %v257 = vld [vmem:[%s256] sm:%s4]
    %s258 = scalar_lea.vmem [#allocation0], 96
    %259 = vst [vmem:[%s258] sm:%s4] %v257
    %s260 = smul.addr 2, 11
    %s261 = scalar_lea.vmem %s0, %s260
    %v262 = vld [vmem:[%s261] sm:%s4]
    %s263 = scalar_lea.vmem [#allocation0], 88
    %264 = vst [vmem:[%s263] sm:%s4] %v262
    %s265 = smul.addr 2, 10
    %s266 = scalar_lea.vmem %s0, %s265
    %v267 = vld [vmem:[%s266] sm:%s4]
    %s268 = scalar_lea.vmem [#allocation0], 80
    %269 = vst [vmem:[%s268] sm:%s4] %v267
    %s270 = smul.addr 2, 9
    %s271 = scalar_lea.vmem %s0, %s270
    %v272 = vld [vmem:[%s271] sm:%s4]
    %s273 = scalar_lea.vmem [#allocation0], 72
    %274 = vst [vmem:[%s273] sm:%s4] %v272
    %s275 = smul.addr 2, 8
    %s276 = scalar_lea.vmem %s0, %s275
    %v277 = vld [vmem:[%s276] sm:%s4]
    %s278 = scalar_lea.vmem [#allocation0], 64
    %279 = vst [vmem:[%s278] sm:%s4] %v277
    %s280 = smul.addr 2, 7
    %s281 = scalar_lea.vmem %s0, %s280
    %v282 = vld [vmem:[%s281] sm:%s4]
    %s283 = scalar_lea.vmem [#allocation0], 56
    %284 = vst [vmem:[%s283] sm:%s4] %v282
    %s285 = smul.addr 2, 6
    %s286 = scalar_lea.vmem %s0, %s285
    %v287 = vld [vmem:[%s286] sm:%s4]
    %s288 = scalar_lea.vmem [#allocation0], 48
    %289 = vst [vmem:[%s288] sm:%s4] %v287
    %s290 = smul.addr 2, 5
    %s291 = scalar_lea.vmem %s0, %s290
    %v292 = vld [vmem:[%s291] sm:%s4]
    %s293 = scalar_lea.vmem [#allocation0], 40
    %294 = vst [vmem:[%s293] sm:%s4] %v292
    %s295 = smul.addr 2, 4
    %s296 = scalar_lea.vmem %s0, %s295
    %v297 = vld [vmem:[%s296] sm:%s4]
    %s298 = scalar_lea.vmem [#allocation0], 32
    %299 = vst [vmem:[%s298] sm:%s4] %v297
    %s300 = smul.addr 2, 3
    %s301 = scalar_lea.vmem %s0, %s300
    %v302 = vld [vmem:[%s301] sm:%s4]
    %s303 = scalar_lea.vmem [#allocation0], 24
    %304 = vst [vmem:[%s303] sm:%s4] %v302
    %s305 = smul.addr 2, 2
    %s306 = scalar_lea.vmem %s0, %s305
    %v307 = vld [vmem:[%s306] sm:%s4]
    %s308 = scalar_lea.vmem [#allocation0], 16
    %309 = vst [vmem:[%s308] sm:%s4] %v307
    %s310 = scalar_lea.vmem %s0, 2
    %v311 = vld [vmem:[%s310] sm:%s4]
    %s312 = scalar_lea.vmem [#allocation0], 8
    %313 = vst [vmem:[%s312] sm:%s4] %v311
    %v314 = vld [vmem:[%s0] sm:%s4]
    %315 = vst [vmem:[#allocation0] sm:%s4] %v314
    %v316 = vld [vmem:[#allocation0] sm:$0x3]
    %vm317 = vcmask 523264
    %318 = vst.msk [vmem:[%s1] sm:$0x1] %vm317, %v316
    %s319 = scalar_lea.vmem %s1, 127
    %320 = vst.msk [vmem:[%s319] sm:$0x2] %vm317, %v316
    %s321 = scalar_lea.vmem [#allocation0], 8
    %v322 = vld [vmem:[%s321] sm:$0x3]
    %vm323 = vcmask 523264
    %s324 = scalar_lea.vmem %s1, 2
    %325 = vst.msk [vmem:[%s324] sm:$0x1] %vm323, %v322
    %s326 = scalar_lea.vmem %s1, 129
    %327 = vst.msk [vmem:[%s326] sm:$0x2] %vm323, %v322
    %s328 = scalar_lea.vmem [#allocation0], 16
    %v329 = vld [vmem:[%s328] sm:$0x3]
    %vm330 = vcmask 523264
    %s331 = scalar_lea.vmem %s1, 4
    %332 = vst.msk [vmem:[%s331] sm:$0x1] %vm330, %v329
    %s333 = scalar_lea.vmem %s1, 131
    %334 = vst.msk [vmem:[%s333] sm:$0x2] %vm330, %v329
    %s335 = scalar_lea.vmem [#allocation0], 24
    %v336 = vld [vmem:[%s335] sm:$0x3]
    %vm337 = vcmask 523264
    %s338 = scalar_lea.vmem %s1, 6
    %339 = vst.msk [vmem:[%s338] sm:$0x1] %vm337, %v336
    %s340 = scalar_lea.vmem %s1, 133
    %341 = vst.msk [vmem:[%s340] sm:$0x2] %vm337, %v336
    %s342 = scalar_lea.vmem [#allocation0], 32
    %v343 = vld [vmem:[%s342] sm:$0x3]
    %vm344 = vcmask 523264
    %s345 = scalar_lea.vmem %s1, 8
    %346 = vst.msk [vmem:[%s345] sm:$0x1] %vm344, %v343
    %s347 = scalar_lea.vmem %s1, 135
    %348 = vst.msk [vmem:[%s347] sm:$0x2] %vm344, %v343
    %s349 = scalar_lea.vmem [#allocation0], 40
    %v350 = vld [vmem:[%s349] sm:$0x3]
    %vm351 = vcmask 523264
    %s352 = scalar_lea.vmem %s1, 10
    %353 = vst.msk [vmem:[%s352] sm:$0x1] %vm351, %v350
    %s354 = scalar_lea.vmem %s1, 137
    %355 = vst.msk [vmem:[%s354] sm:$0x2] %vm351, %v350
    %s356 = scalar_lea.vmem [#allocation0], 48
    %v357 = vld [vmem:[%s356] sm:$0x3]
    %vm358 = vcmask 523264
    %s359 = scalar_lea.vmem %s1, 12
    %360 = vst.msk [vmem:[%s359] sm:$0x1] %vm358, %v357
    %s361 = scalar_lea.vmem %s1, 139
    %362 = vst.msk [vmem:[%s361] sm:$0x2] %vm358, %v357
    %s363 = scalar_lea.vmem [#allocation0], 56
    %v364 = vld [vmem:[%s363] sm:$0x3]
    %vm365 = vcmask 523264
    %s366 = scalar_lea.vmem %s1, 14
    %367 = vst.msk [vmem:[%s366] sm:$0x1] %vm365, %v364
    %s368 = scalar_lea.vmem %s1, 141
    %369 = vst.msk [vmem:[%s368] sm:$0x2] %vm365, %v364
    %s370 = scalar_lea.vmem [#allocation0], 64
    %v371 = vld [vmem:[%s370] sm:$0x3]
    %vm372 = vcmask 523264
    %s373 = scalar_lea.vmem %s1, 16
    %374 = vst.msk [vmem:[%s373] sm:$0x1] %vm372, %v371
    %s375 = scalar_lea.vmem %s1, 143
    %376 = vst.msk [vmem:[%s375] sm:$0x2] %vm372, %v371
    %s377 = scalar_lea.vmem [#allocation0], 72
    %v378 = vld [vmem:[%s377] sm:$0x3]
    %vm379 = vcmask 523264
    %s380 = scalar_lea.vmem %s1, 18
    %381 = vst.msk [vmem:[%s380] sm:$0x1] %vm379, %v378
    %s382 = scalar_lea.vmem %s1, 145
    %383 = vst.msk [vmem:[%s382] sm:$0x2] %vm379, %v378
    %s384 = scalar_lea.vmem [#allocation0], 80
    %v385 = vld [vmem:[%s384] sm:$0x3]
    %vm386 = vcmask 523264
    %s387 = scalar_lea.vmem %s1, 20
    %388 = vst.msk [vmem:[%s387] sm:$0x1] %vm386, %v385
    %s389 = scalar_lea.vmem %s1, 147
    %390 = vst.msk [vmem:[%s389] sm:$0x2] %vm386, %v385
    %s391 = scalar_lea.vmem [#allocation0], 88
    %v392 = vld [vmem:[%s391] sm:$0x3]
    %vm393 = vcmask 523264
    %s394 = scalar_lea.vmem %s1, 22
    %395 = vst.msk [vmem:[%s394] sm:$0x1] %vm393, %v392
    %s396 = scalar_lea.vmem %s1, 149
    %397 = vst.msk [vmem:[%s396] sm:$0x2] %vm393, %v392
    %s398 = scalar_lea.vmem [#allocation0], 96
    %v399 = vld [vmem:[%s398] sm:$0x3]
    %vm400 = vcmask 523264
    %s401 = scalar_lea.vmem %s1, 24
    %402 = vst.msk [vmem:[%s401] sm:$0x1] %vm400, %v399
    %s403 = scalar_lea.vmem %s1, 151
    %404 = vst.msk [vmem:[%s403] sm:$0x2] %vm400, %v399
    %s405 = scalar_lea.vmem [#allocation0], 104
    %v406 = vld [vmem:[%s405] sm:$0x3]
    %vm407 = vcmask 523264
    %s408 = scalar_lea.vmem %s1, 26
    %409 = vst.msk [vmem:[%s408] sm:$0x1] %vm407, %v406
    %s410 = scalar_lea.vmem %s1, 153
    %411 = vst.msk [vmem:[%s410] sm:$0x2] %vm407, %v406
    %s412 = scalar_lea.vmem [#allocation0], 112
    %v413 = vld [vmem:[%s412] sm:$0x3]
    %vm414 = vcmask 523264
    %s415 = scalar_lea.vmem %s1, 28
    %416 = vst.msk [vmem:[%s415] sm:$0x1] %vm414, %v413
    %s417 = scalar_lea.vmem %s1, 155
    %418 = vst.msk [vmem:[%s417] sm:$0x2] %vm414, %v413
    %s419 = scalar_lea.vmem [#allocation0], 120
    %v420 = vld [vmem:[%s419] sm:$0x3]
    %vm421 = vcmask 523264
    %s422 = scalar_lea.vmem %s1, 30
    %423 = vst.msk [vmem:[%s422] sm:$0x1] %vm421, %v420
    %s424 = scalar_lea.vmem %s1, 157
    %425 = vst.msk [vmem:[%s424] sm:$0x2] %vm421, %v420
    %s426 = scalar_lea.vmem [#allocation0], 128
    %v427 = vld [vmem:[%s426] sm:$0x3]
    %vm428 = vcmask 523264
    %s429 = scalar_lea.vmem %s1, 32
    %430 = vst.msk [vmem:[%s429] sm:$0x1] %vm428, %v427
    %s431 = scalar_lea.vmem %s1, 159
    %432 = vst.msk [vmem:[%s431] sm:$0x2] %vm428, %v427
    %s433 = scalar_lea.vmem [#allocation0], 136
    %v434 = vld [vmem:[%s433] sm:$0x3]
    %vm435 = vcmask 523264
    %s436 = scalar_lea.vmem %s1, 34
    %437 = vst.msk [vmem:[%s436] sm:$0x1] %vm435, %v434
    %s438 = scalar_lea.vmem %s1, 161
    %439 = vst.msk [vmem:[%s438] sm:$0x2] %vm435, %v434
    %s440 = scalar_lea.vmem [#allocation0], 144
    %v441 = vld [vmem:[%s440] sm:$0x3]
    %vm442 = vcmask 523264
    %s443 = scalar_lea.vmem %s1, 36
    %444 = vst.msk [vmem:[%s443] sm:$0x1] %vm442, %v441
    %s445 = scalar_lea.vmem %s1, 163
    %446 = vst.msk [vmem:[%s445] sm:$0x2] %vm442, %v441
    %s447 = scalar_lea.vmem [#allocation0], 152
    %v448 = vld [vmem:[%s447] sm:$0x3]
    %vm449 = vcmask 523264
    %s450 = scalar_lea.vmem %s1, 38
    %451 = vst.msk [vmem:[%s450] sm:$0x1] %vm449, %v448
    %s452 = scalar_lea.vmem %s1, 165
    %453 = vst.msk [vmem:[%s452] sm:$0x2] %vm449, %v448
    %s454 = scalar_lea.vmem [#allocation0], 160
    %v455 = vld [vmem:[%s454] sm:$0x3]
    %vm456 = vcmask 523264
    %s457 = scalar_lea.vmem %s1, 40
    %458 = vst.msk [vmem:[%s457] sm:$0x1] %vm456, %v455
    %s459 = scalar_lea.vmem %s1, 167
    %460 = vst.msk [vmem:[%s459] sm:$0x2] %vm456, %v455
    %s461 = scalar_lea.vmem [#allocation0], 168
    %v462 = vld [vmem:[%s461] sm:$0x3]
    %vm463 = vcmask 523264
    %s464 = scalar_lea.vmem %s1, 42
    %465 = vst.msk [vmem:[%s464] sm:$0x1] %vm463, %v462
    %s466 = scalar_lea.vmem %s1, 169
    %467 = vst.msk [vmem:[%s466] sm:$0x2] %vm463, %v462
    %s468 = scalar_lea.vmem [#allocation0], 176
    %v469 = vld [vmem:[%s468] sm:$0x3]
    %vm470 = vcmask 523264
    %s471 = scalar_lea.vmem %s1, 44
    %472 = vst.msk [vmem:[%s471] sm:$0x1] %vm470, %v469
    %s473 = scalar_lea.vmem %s1, 171
    %474 = vst.msk [vmem:[%s473] sm:$0x2] %vm470, %v469
    %s475 = scalar_lea.vmem [#allocation0], 184
    %v476 = vld [vmem:[%s475] sm:$0x3]
    %vm477 = vcmask 523264
    %s478 = scalar_lea.vmem %s1, 46
    %479 = vst.msk [vmem:[%s478] sm:$0x1] %vm477, %v476
    %s480 = scalar_lea.vmem %s1, 173
    %481 = vst.msk [vmem:[%s480] sm:$0x2] %vm477, %v476
    %s482 = scalar_lea.vmem [#allocation0], 192
    %v483 = vld [vmem:[%s482] sm:$0x3]
    %vm484 = vcmask 523264
    %s485 = scalar_lea.vmem %s1, 48
    %486 = vst.msk [vmem:[%s485] sm:$0x1] %vm484, %v483
    %s487 = scalar_lea.vmem %s1, 175
    %488 = vst.msk [vmem:[%s487] sm:$0x2] %vm484, %v483
    %s489 = scalar_lea.vmem [#allocation0], 200
    %v490 = vld [vmem:[%s489] sm:$0x3]
    %vm491 = vcmask 523264
    %s492 = scalar_lea.vmem %s1, 50
    %493 = vst.msk [vmem:[%s492] sm:$0x1] %vm491, %v490
    %s494 = scalar_lea.vmem %s1, 177
    %495 = vst.msk [vmem:[%s494] sm:$0x2] %vm491, %v490
    %s496 = scalar_lea.vmem [#allocation0], 208
    %v497 = vld [vmem:[%s496] sm:$0x3]
    %vm498 = vcmask 523264
    %s499 = scalar_lea.vmem %s1, 52
    %500 = vst.msk [vmem:[%s499] sm:$0x1] %vm498, %v497
    %s501 = scalar_lea.vmem %s1, 179
    %502 = vst.msk [vmem:[%s501] sm:$0x2] %vm498, %v497
    %s503 = scalar_lea.vmem [#allocation0], 216
    %v504 = vld [vmem:[%s503] sm:$0x3]
    %vm505 = vcmask 523264
    %s506 = scalar_lea.vmem %s1, 54
    %507 = vst.msk [vmem:[%s506] sm:$0x1] %vm505, %v504
    %s508 = scalar_lea.vmem %s1, 181
    %509 = vst.msk [vmem:[%s508] sm:$0x2] %vm505, %v504
    %s510 = scalar_lea.vmem [#allocation0], 224
    %v511 = vld [vmem:[%s510] sm:$0x3]
    %vm512 = vcmask 523264
    %s513 = scalar_lea.vmem %s1, 56
    %514 = vst.msk [vmem:[%s513] sm:$0x1] %vm512, %v511
    %s515 = scalar_lea.vmem %s1, 183
    %516 = vst.msk [vmem:[%s515] sm:$0x2] %vm512, %v511
    %s517 = scalar_lea.vmem [#allocation0], 232
    %v518 = vld [vmem:[%s517] sm:$0x3]
    %vm519 = vcmask 523264
    %s520 = scalar_lea.vmem %s1, 58
    %521 = vst.msk [vmem:[%s520] sm:$0x1] %vm519, %v518
    %s522 = scalar_lea.vmem %s1, 185
    %523 = vst.msk [vmem:[%s522] sm:$0x2] %vm519, %v518
    %s524 = scalar_lea.vmem [#allocation0], 240
    %v525 = vld [vmem:[%s524] sm:$0x3]
    %vm526 = vcmask 523264
    %s527 = scalar_lea.vmem %s1, 60
    %528 = vst.msk [vmem:[%s527] sm:$0x1] %vm526, %v525
    %s529 = scalar_lea.vmem %s1, 187
    %530 = vst.msk [vmem:[%s529] sm:$0x2] %vm526, %v525
    %s531 = scalar_lea.vmem [#allocation0], 248
    %v532 = vld [vmem:[%s531] sm:$0x3]
    %vm533 = vcmask 523264
    %s534 = scalar_lea.vmem %s1, 62
    %535 = vst.msk [vmem:[%s534] sm:$0x1] %vm533, %v532
    %s536 = scalar_lea.vmem %s1, 189
    %537 = vst.msk [vmem:[%s536] sm:$0x2] %vm533, %v532
    %s538 = scalar_lea.vmem [#allocation0], 256
    %v539 = vld [vmem:[%s538] sm:$0x3]
    %vm540 = vcmask 523264
    %s541 = scalar_lea.vmem %s1, 64
    %542 = vst.msk [vmem:[%s541] sm:$0x1] %vm540, %v539
    %s543 = scalar_lea.vmem %s1, 191
    %544 = vst.msk [vmem:[%s543] sm:$0x2] %vm540, %v539
    %s545 = scalar_lea.vmem [#allocation0], 264
    %v546 = vld [vmem:[%s545] sm:$0x3]
    %vm547 = vcmask 523264
    %s548 = scalar_lea.vmem %s1, 66
    %549 = vst.msk [vmem:[%s548] sm:$0x1] %vm547, %v546
    %s550 = scalar_lea.vmem %s1, 193
    %551 = vst.msk [vmem:[%s550] sm:$0x2] %vm547, %v546
    %s552 = scalar_lea.vmem [#allocation0], 272
    %v553 = vld [vmem:[%s552] sm:$0x3]
    %vm554 = vcmask 523264
    %s555 = scalar_lea.vmem %s1, 68
    %556 = vst.msk [vmem:[%s555] sm:$0x1] %vm554, %v553
    %s557 = scalar_lea.vmem %s1, 195
    %558 = vst.msk [vmem:[%s557] sm:$0x2] %vm554, %v553
    %s559 = scalar_lea.vmem [#allocation0], 280
    %v560 = vld [vmem:[%s559] sm:$0x3]
    %vm561 = vcmask 523264
    %s562 = scalar_lea.vmem %s1, 70
    %563 = vst.msk [vmem:[%s562] sm:$0x1] %vm561, %v560
    %s564 = scalar_lea.vmem %s1, 197
    %565 = vst.msk [vmem:[%s564] sm:$0x2] %vm561, %v560
    %s566 = scalar_lea.vmem [#allocation0], 288
    %v567 = vld [vmem:[%s566] sm:$0x3]
    %vm568 = vcmask 523264
    %s569 = scalar_lea.vmem %s1, 72
    %570 = vst.msk [vmem:[%s569] sm:$0x1] %vm568, %v567
    %s571 = scalar_lea.vmem %s1, 199
    %572 = vst.msk [vmem:[%s571] sm:$0x2] %vm568, %v567
    %s573 = scalar_lea.vmem [#allocation0], 296
    %v574 = vld [vmem:[%s573] sm:$0x3]
    %vm575 = vcmask 523264
    %s576 = scalar_lea.vmem %s1, 74
    %577 = vst.msk [vmem:[%s576] sm:$0x1] %vm575, %v574
    %s578 = scalar_lea.vmem %s1, 201
    %579 = vst.msk [vmem:[%s578] sm:$0x2] %vm575, %v574
    %s580 = scalar_lea.vmem [#allocation0], 304
    %v581 = vld [vmem:[%s580] sm:$0x3]
    %vm582 = vcmask 523264
    %s583 = scalar_lea.vmem %s1, 76
    %584 = vst.msk [vmem:[%s583] sm:$0x1] %vm582, %v581
    %s585 = scalar_lea.vmem %s1, 203
    %586 = vst.msk [vmem:[%s585] sm:$0x2] %vm582, %v581
    %s587 = scalar_lea.vmem [#allocation0], 312
    %v588 = vld [vmem:[%s587] sm:$0x3]
    %vm589 = vcmask 523264
    %s590 = scalar_lea.vmem %s1, 78
    %591 = vst.msk [vmem:[%s590] sm:$0x1] %vm589, %v588
    %s592 = scalar_lea.vmem %s1, 205
    %593 = vst.msk [vmem:[%s592] sm:$0x2] %vm589, %v588
    %s594 = scalar_lea.vmem [#allocation0], 320
    %v595 = vld [vmem:[%s594] sm:$0x3]
    %vm596 = vcmask 523264
    %s597 = scalar_lea.vmem %s1, 80
    %598 = vst.msk [vmem:[%s597] sm:$0x1] %vm596, %v595
    %s599 = scalar_lea.vmem %s1, 207
    %600 = vst.msk [vmem:[%s599] sm:$0x2] %vm596, %v595
    %s601 = scalar_lea.vmem [#allocation0], 328
    %v602 = vld [vmem:[%s601] sm:$0x3]
    %vm603 = vcmask 523264
    %s604 = scalar_lea.vmem %s1, 82
    %605 = vst.msk [vmem:[%s604] sm:$0x1] %vm603, %v602
    %s606 = scalar_lea.vmem %s1, 209
    %607 = vst.msk [vmem:[%s606] sm:$0x2] %vm603, %v602
    %s608 = scalar_lea.vmem [#allocation0], 336
    %v609 = vld [vmem:[%s608] sm:$0x3]
    %vm610 = vcmask 523264
    %s611 = scalar_lea.vmem %s1, 84
    %612 = vst.msk [vmem:[%s611] sm:$0x1] %vm610, %v609
    %s613 = scalar_lea.vmem %s1, 211
    %614 = vst.msk [vmem:[%s613] sm:$0x2] %vm610, %v609
    %s615 = scalar_lea.vmem [#allocation0], 344
    %v616 = vld [vmem:[%s615] sm:$0x3]
    %vm617 = vcmask 523264
    %s618 = scalar_lea.vmem %s1, 86
    %619 = vst.msk [vmem:[%s618] sm:$0x1] %vm617, %v616
    %s620 = scalar_lea.vmem %s1, 213
    %621 = vst.msk [vmem:[%s620] sm:$0x2] %vm617, %v616
    %s622 = scalar_lea.vmem [#allocation0], 352
    %v623 = vld [vmem:[%s622] sm:$0x3]
    %vm624 = vcmask 523264
    %s625 = scalar_lea.vmem %s1, 88
    %626 = vst.msk [vmem:[%s625] sm:$0x1] %vm624, %v623
    %s627 = scalar_lea.vmem %s1, 215
    %628 = vst.msk [vmem:[%s627] sm:$0x2] %vm624, %v623
    %s629 = scalar_lea.vmem [#allocation0], 360
    %v630 = vld [vmem:[%s629] sm:$0x3]
    %vm631 = vcmask 523264
    %s632 = scalar_lea.vmem %s1, 90
    %633 = vst.msk [vmem:[%s632] sm:$0x1] %vm631, %v630
    %s634 = scalar_lea.vmem %s1, 217
    %635 = vst.msk [vmem:[%s634] sm:$0x2] %vm631, %v630
    %s636 = scalar_lea.vmem [#allocation0], 368
    %v637 = vld [vmem:[%s636] sm:$0x3]
    %vm638 = vcmask 523264
    %s639 = scalar_lea.vmem %s1, 92
    %640 = vst.msk [vmem:[%s639] sm:$0x1] %vm638, %v637
    %s641 = scalar_lea.vmem %s1, 219
    %642 = vst.msk [vmem:[%s641] sm:$0x2] %vm638, %v637
    %s643 = scalar_lea.vmem [#allocation0], 376
    %v644 = vld [vmem:[%s643] sm:$0x3]
    %vm645 = vcmask 523264
    %s646 = scalar_lea.vmem %s1, 94
    %647 = vst.msk [vmem:[%s646] sm:$0x1] %vm645, %v644
    %s648 = scalar_lea.vmem %s1, 221
    %649 = vst.msk [vmem:[%s648] sm:$0x2] %vm645, %v644
    %s650 = scalar_lea.vmem [#allocation0], 384
    %v651 = vld [vmem:[%s650] sm:$0x3]
    %vm652 = vcmask 523264
    %s653 = scalar_lea.vmem %s1, 96
    %654 = vst.msk [vmem:[%s653] sm:$0x1] %vm652, %v651
    %s655 = scalar_lea.vmem %s1, 223
    %656 = vst.msk [vmem:[%s655] sm:$0x2] %vm652, %v651
    %s657 = scalar_lea.vmem [#allocation0], 392
    %v658 = vld [vmem:[%s657] sm:$0x3]
    %vm659 = vcmask 523264
    %s660 = scalar_lea.vmem %s1, 98
    %661 = vst.msk [vmem:[%s660] sm:$0x1] %vm659, %v658
    %s662 = scalar_lea.vmem %s1, 225
    %663 = vst.msk [vmem:[%s662] sm:$0x2] %vm659, %v658
    %s664 = scalar_lea.vmem [#allocation0], 400
    %v665 = vld [vmem:[%s664] sm:$0x3]
    %vm666 = vcmask 523264
    %s667 = scalar_lea.vmem %s1, 100
    %668 = vst.msk [vmem:[%s667] sm:$0x1] %vm666, %v665
    %s669 = scalar_lea.vmem %s1, 227
    %670 = vst.msk [vmem:[%s669] sm:$0x2] %vm666, %v665
    %s671 = scalar_lea.vmem [#allocation0], 408
    %v672 = vld [vmem:[%s671] sm:$0x3]
    %vm673 = vcmask 523264
    %s674 = scalar_lea.vmem %s1, 102
    %675 = vst.msk [vmem:[%s674] sm:$0x1] %vm673, %v672
    %s676 = scalar_lea.vmem %s1, 229
    %677 = vst.msk [vmem:[%s676] sm:$0x2] %vm673, %v672
    %s678 = scalar_lea.vmem [#allocation0], 416
    %v679 = vld [vmem:[%s678] sm:$0x3]
    %vm680 = vcmask 523264
    %s681 = scalar_lea.vmem %s1, 104
    %682 = vst.msk [vmem:[%s681] sm:$0x1] %vm680, %v679
    %s683 = scalar_lea.vmem %s1, 231
    %684 = vst.msk [vmem:[%s683] sm:$0x2] %vm680, %v679
    %s685 = scalar_lea.vmem [#allocation0], 424
    %v686 = vld [vmem:[%s685] sm:$0x3]
    %vm687 = vcmask 523264
    %s688 = scalar_lea.vmem %s1, 106
    %689 = vst.msk [vmem:[%s688] sm:$0x1] %vm687, %v686
    %s690 = scalar_lea.vmem %s1, 233
    %691 = vst.msk [vmem:[%s690] sm:$0x2] %vm687, %v686
    %s692 = scalar_lea.vmem [#allocation0], 432
    %v693 = vld [vmem:[%s692] sm:$0x3]
    %vm694 = vcmask 523264
    %s695 = scalar_lea.vmem %s1, 108
    %696 = vst.msk [vmem:[%s695] sm:$0x1] %vm694, %v693
    %s697 = scalar_lea.vmem %s1, 235
    %698 = vst.msk [vmem:[%s697] sm:$0x2] %vm694, %v693
    %s699 = scalar_lea.vmem [#allocation0], 440
    %v700 = vld [vmem:[%s699] sm:$0x3]
    %vm701 = vcmask 523264
    %s702 = scalar_lea.vmem %s1, 110
    %703 = vst.msk [vmem:[%s702] sm:$0x1] %vm701, %v700
    %s704 = scalar_lea.vmem %s1, 237
    %705 = vst.msk [vmem:[%s704] sm:$0x2] %vm701, %v700
    %s706 = scalar_lea.vmem [#allocation0], 448
    %v707 = vld [vmem:[%s706] sm:$0x3]
    %vm708 = vcmask 523264
    %s709 = scalar_lea.vmem %s1, 112
    %710 = vst.msk [vmem:[%s709] sm:$0x1] %vm708, %v707
    %s711 = scalar_lea.vmem %s1, 239
    %712 = vst.msk [vmem:[%s711] sm:$0x2] %vm708, %v707
    %s713 = scalar_lea.vmem [#allocation0], 456
    %v714 = vld [vmem:[%s713] sm:$0x3]
    %vm715 = vcmask 523264
    %s716 = scalar_lea.vmem %s1, 114
    %717 = vst.msk [vmem:[%s716] sm:$0x1] %vm715, %v714
    %s718 = scalar_lea.vmem %s1, 241
    %719 = vst.msk [vmem:[%s718] sm:$0x2] %vm715, %v714
    %s720 = scalar_lea.vmem [#allocation0], 464
    %v721 = vld [vmem:[%s720] sm:$0x3]
    %vm722 = vcmask 523264
    %s723 = scalar_lea.vmem %s1, 116
    %724 = vst.msk [vmem:[%s723] sm:$0x1] %vm722, %v721
    %s725 = scalar_lea.vmem %s1, 243
    %726 = vst.msk [vmem:[%s725] sm:$0x2] %vm722, %v721
    %s727 = scalar_lea.vmem [#allocation0], 472
    %v728 = vld [vmem:[%s727] sm:$0x3]
    %vm729 = vcmask 523264
    %s730 = scalar_lea.vmem %s1, 118
    %731 = vst.msk [vmem:[%s730] sm:$0x1] %vm729, %v728
    %s732 = scalar_lea.vmem %s1, 245
    %733 = vst.msk [vmem:[%s732] sm:$0x2] %vm729, %v728
    %s734 = scalar_lea.vmem [#allocation0], 480
    %v735 = vld [vmem:[%s734] sm:$0x3]
    %vm736 = vcmask 523264
    %s737 = scalar_lea.vmem %s1, 120
    %738 = vst.msk [vmem:[%s737] sm:$0x1] %vm736, %v735
    %s739 = scalar_lea.vmem %s1, 247
    %740 = vst.msk [vmem:[%s739] sm:$0x2] %vm736, %v735
    %s741 = scalar_lea.vmem [#allocation0], 488
    %v742 = vld [vmem:[%s741] sm:$0x3]
    %vm743 = vcmask 523264
    %s744 = scalar_lea.vmem %s1, 122
    %745 = vst.msk [vmem:[%s744] sm:$0x1] %vm743, %v742
    %s746 = scalar_lea.vmem %s1, 249
    %747 = vst.msk [vmem:[%s746] sm:$0x2] %vm743, %v742
    %s748 = scalar_lea.vmem [#allocation0], 496
    %v749 = vld [vmem:[%s748] sm:$0x3]
    %vm750 = vcmask 523264
    %s751 = scalar_lea.vmem %s1, 124
    %752 = vst.msk [vmem:[%s751] sm:$0x1] %vm750, %v749
    %s753 = scalar_lea.vmem %s1, 251
    %754 = vst.msk [vmem:[%s753] sm:$0x2] %vm750, %v749
    %v755 = vld [vmem:[#allocation0] ss:$8 sm:$0xf]
    %v756 = vld [vmem:[#allocation0] ss:$8 sm:$0xf0]
    %vm757 = vcmask 1047556
    %v758 = vsel %vm757, %v756, %v755
    %759 = vrot.lane.b32.xlu0 %v758, 64
    %v760 = vpop.permute.xlu0 %759
    %vm761 = vcmask 523264
    %s762 = scalar_lea.vmem %s1, 1
    %763 = vst.msk [vmem:[%s762] ss:$2 sm:$0xff] %vm761, %v760
    %s764 = scalar_lea.vmem [#allocation0], 1
    %v765 = vld [vmem:[%s764] ss:$8 sm:$0xf]
    %s766 = scalar_lea.vmem [#allocation0], 1
    %v767 = vld [vmem:[%s766] ss:$8 sm:$0xf0]
    %vm768 = vcmask 1047556
    %v769 = vsel %vm768, %v767, %v765
    %770 = vrot.lane.b32.xlu0 %v769, 64
    %v771 = vpop.permute.xlu0 %770
    %vm772 = vcmask 523264
    %s773 = scalar_lea.vmem %s1, 129
    %774 = vst.msk [vmem:[%s773] ss:$2 sm:$0xff] %vm772, %v771
    %s775 = scalar_lea.vmem [#allocation0], 128
    %v776 = vld [vmem:[%s775] ss:$8 sm:$0xf]
    %s777 = scalar_lea.vmem [#allocation0], 128
    %v778 = vld [vmem:[%s777] ss:$8 sm:$0xf0]
    %vm779 = vcmask 1047556
    %v780 = vsel %vm779, %v778, %v776
    %781 = vrot.lane.b32.xlu0 %v780, 64
    %v782 = vpop.permute.xlu0 %781
    %vm783 = vcmask 523264
    %s784 = scalar_lea.vmem %s1, 33
    %785 = vst.msk [vmem:[%s784] ss:$2 sm:$0xff] %vm783, %v782
    %s786 = scalar_lea.vmem [#allocation0], 129
    %v787 = vld [vmem:[%s786] ss:$8 sm:$0xf]
    %s788 = scalar_lea.vmem [#allocation0], 129
    %v789 = vld [vmem:[%s788] ss:$8 sm:$0xf0]
    %vm790 = vcmask 1047556
    %v791 = vsel %vm790, %v789, %v787
    %792 = vrot.lane.b32.xlu0 %v791, 64
    %v793 = vpop.permute.xlu0 %792
    %vm794 = vcmask 523264
    %s795 = scalar_lea.vmem %s1, 161
    %796 = vst.msk [vmem:[%s795] ss:$2 sm:$0xff] %vm794, %v793
    %s797 = scalar_lea.vmem [#allocation0], 256
    %v798 = vld [vmem:[%s797] ss:$8 sm:$0xf]
    %s799 = scalar_lea.vmem [#allocation0], 256
    %v800 = vld [vmem:[%s799] ss:$8 sm:$0xf0]
    %vm801 = vcmask 1047556
    %v802 = vsel %vm801, %v800, %v798
    %803 = vrot.lane.b32.xlu0 %v802, 64
    %v804 = vpop.permute.xlu0 %803
    %vm805 = vcmask 523264
    %s806 = scalar_lea.vmem %s1, 65
    %807 = vst.msk [vmem:[%s806] ss:$2 sm:$0xff] %vm805, %v804
    %s808 = scalar_lea.vmem [#allocation0], 257
    %v809 = vld [vmem:[%s808] ss:$8 sm:$0xf]
    %s810 = scalar_lea.vmem [#allocation0], 257
    %v811 = vld [vmem:[%s810] ss:$8 sm:$0xf0]
    %vm812 = vcmask 1047556
    %v813 = vsel %vm812, %v811, %v809
    %814 = vrot.lane.b32.xlu0 %v813, 64
    %v815 = vpop.permute.xlu0 %814
    %vm816 = vcmask 523264
    %s817 = scalar_lea.vmem %s1, 193
    %818 = vst.msk [vmem:[%s817] ss:$2 sm:$0xff] %vm816, %v815
    %s819 = scalar_lea.vmem [#allocation0], 384
    %v820 = vld [vmem:[%s819] ss:$8 sm:$0xf]
    %s821 = scalar_lea.vmem [#allocation0], 384
    %v822 = vld [vmem:[%s821] ss:$8 sm:$0xf0]
    %vm823 = vcmask 1047556
    %v824 = vsel %vm823, %v822, %v820
    %825 = vrot.lane.b32.xlu0 %v824, 64
    %v826 = vpop.permute.xlu0 %825
    %vm827 = vcmask 523264
    %s828 = scalar_lea.vmem %s1, 97
    %829 = vst.msk [vmem:[%s828] ss:$2 sm:$0xff] %vm827, %v826
    %s830 = scalar_lea.vmem [#allocation0], 385
    %v831 = vld [vmem:[%s830] ss:$8 sm:$0xf]
    %s832 = scalar_lea.vmem [#allocation0], 385
    %v833 = vld [vmem:[%s832] ss:$8 sm:$0xf0]
    %vm834 = vcmask 1047556
    %v835 = vsel %vm834, %v833, %v831
    %836 = vrot.lane.b32.xlu0 %v835, 64
    %v837 = vpop.permute.xlu0 %836
    %vm838 = vcmask 523264
    %s839 = scalar_lea.vmem %s1, 225
    %840 = vst.msk [vmem:[%s839] ss:$2 sm:$0xff] %vm838, %v837
    %s841 = scalar_lea.vmem [#allocation0], 64
    %v842 = vld [vmem:[%s841] ss:$8 sm:$0xf]
    %s843 = scalar_lea.vmem [#allocation0], 64
    %v844 = vld [vmem:[%s843] ss:$8 sm:$0xf0]
    %vm845 = vcmask 1047556
    %v846 = vsel %vm845, %v844, %v842
    %847 = vrot.lane.b32.xlu0 %v846, 64
    %v848 = vpop.permute.xlu0 %847
    %vm849 = vcmask 523264
    %s850 = scalar_lea.vmem %s1, 17
    %851 = vst.msk [vmem:[%s850] ss:$2 sm:$0xff] %vm849, %v848
    %s852 = scalar_lea.vmem [#allocation0], 65
    %v853 = vld [vmem:[%s852] ss:$8 sm:$0xf]
    %s854 = scalar_lea.vmem [#allocation0], 65
    %v855 = vld [vmem:[%s854] ss:$8 sm:$0xf0]
    %vm856 = vcmask 1047556
    %v857 = vsel %vm856, %v855, %v853
    %858 = vrot.lane.b32.xlu0 %v857, 64
    %v859 = vpop.permute.xlu0 %858
    %vm860 = vcmask 523264
    %s861 = scalar_lea.vmem %s1, 145
    %862 = vst.msk [vmem:[%s861] ss:$2 sm:$0xff] %vm860, %v859
    %s863 = scalar_lea.vmem [#allocation0], 192
    %v864 = vld [vmem:[%s863] ss:$8 sm:$0xf]
    %s865 = scalar_lea.vmem [#allocation0], 192
    %v866 = vld [vmem:[%s865] ss:$8 sm:$0xf0]
    %vm867 = vcmask 1047556
    %v868 = vsel %vm867, %v866, %v864
    %869 = vrot.lane.b32.xlu0 %v868, 64
    %v870 = vpop.permute.xlu0 %869
    %vm871 = vcmask 523264
    %s872 = scalar_lea.vmem %s1, 49
    %873 = vst.msk [vmem:[%s872] ss:$2 sm:$0xff] %vm871, %v870
    %s874 = scalar_lea.vmem [#allocation0], 193
    %v875 = vld [vmem:[%s874] ss:$8 sm:$0xf]
    %s876 = scalar_lea.vmem [#allocation0], 193
    %v877 = vld [vmem:[%s876] ss:$8 sm:$0xf0]
    %vm878 = vcmask 1047556
    %v879 = vsel %vm878, %v877, %v875
    %880 = vrot.lane.b32.xlu0 %v879, 64
    %v881 = vpop.permute.xlu0 %880
    %vm882 = vcmask 523264
    %s883 = scalar_lea.vmem %s1, 177
    %884 = vst.msk [vmem:[%s883] ss:$2 sm:$0xff] %vm882, %v881
    %s885 = scalar_lea.vmem [#allocation0], 320
    %v886 = vld [vmem:[%s885] ss:$8 sm:$0xf]
    %s887 = scalar_lea.vmem [#allocation0], 320
    %v888 = vld [vmem:[%s887] ss:$8 sm:$0xf0]
    %vm889 = vcmask 1047556
    %v890 = vsel %vm889, %v888, %v886
    %891 = vrot.lane.b32.xlu0 %v890, 64
    %v892 = vpop.permute.xlu0 %891
    %vm893 = vcmask 523264
    %s894 = scalar_lea.vmem %s1, 81
    %895 = vst.msk [vmem:[%s894] ss:$2 sm:$0xff] %vm893, %v892
    %s896 = scalar_lea.vmem [#allocation0], 321
    %v897 = vld [vmem:[%s896] ss:$8 sm:$0xf]
    %s898 = scalar_lea.vmem [#allocation0], 321
    %v899 = vld [vmem:[%s898] ss:$8 sm:$0xf0]
    %vm900 = vcmask 1047556
    %v901 = vsel %vm900, %v899, %v897
    %902 = vrot.lane.b32.xlu0 %v901, 64
    %v903 = vpop.permute.xlu0 %902
    %vm904 = vcmask 523264
    %s905 = scalar_lea.vmem %s1, 209
    %906 = vst.msk [vmem:[%s905] ss:$2 sm:$0xff] %vm904, %v903
    %s907 = scalar_lea.vmem [#allocation0], 448
    %v908 = vld [vmem:[%s907] ss:$8 sm:$0xf]
    %s909 = scalar_lea.vmem [#allocation0], 448
    %s910 = smov 48
    %v911 = vld [vmem:[%s909] ss:$8 sm:%s910]
    %vm912 = vcmask 1045508
    %v913 = vsel %vm912, %v911, %v908
    %s914 = scalar_lea.vmem [#allocation0], 401
    %s915 = smov 192
    %v916 = vld [vmem:[%s914] ss:$8 sm:%s915]
    %vm917 = vcmask 1047558
    %v918 = vsel %vm917, %v916, %v913
    %919 = vrot.lane.b32.xlu0 %v918, 64
    %v920 = vpop.permute.xlu0 %919
    %vm921 = vcmask 523264
    %s922 = scalar_lea.vmem %s1, 113
    %923 = vst.msk [vmem:[%s922] ss:$2 sm:$0x3f] %vm921, %v920
    %s924 = scalar_lea.vmem %s1, 229
    %925 = vst.msk [vmem:[%s924] ss:$2 sm:$0xc0] %vm921, %v920
    %s926 = scalar_lea.vmem [#allocation0], 465
    %v927 = vld [vmem:[%s926] ss:$8 sm:$0xf]
    %928 = vrot.lane.b32.xlu0 %v927, 64
    %v929 = vpop.permute.xlu0 %928
    %vm930 = vcmask 523264
    %s931 = scalar_lea.vmem %s1, 245
    %932 = vst.msk [vmem:[%s931] ss:$2 sm:$0xf] %vm930, %v929

// kernel: m5_forward_pallas.1
$region0: #{m5_forward_pallas.1}
  #allocation0 [shape = 'u32[]', space=smem, size = 0x4, offset = 0x4, fixed_abs, tag = 'smem constant byte address 0x4 - core index']
  #allocation1 [shape = 'u32[144,128]{1,0:T(1,128)}', space=vmem, size = 0x12000, scoped, tag = 'internal scratch']
  #allocation2 [shape = 'f32[128,32]{1,0:T(8,128)}', space=vmem, size = 0x10000, scoped, tag = 'scratch operand']
  #allocation3 [shape = 'f32[32,32]{1,0:T(8,128)}', space=vmem, size = 0x4000, scoped, tag = 'scratch operand']
  #allocation4 [shape = 'f32[8,64]{1,0:T(8,128)}', space=vmem, size = 0x1000, scoped, tag = 'scratch operand']
  %s0 = inlined_call_operand.vmem [shape: f32[2,125,64], index: 0, kind: input, shape index: {}]
  %s1 = inlined_call_operand.vmem [shape: bf16[560,64], index: 1, kind: input, shape index: {}]
  %s2 = inlined_call_operand.vmem [shape: f32[72,64], index: 2, kind: input, shape index: {}]
  %s3 = inlined_call_operand.hbm [shape: f32[2,1,35], index: 3, kind: output, shape index: {}]
  %s4 = sld [smem:[#allocation0]]
  $region45: #{m5_forward_pallas.1} parent=0
    _
  %s6 = ssub.s32 1, %s4
  %s7 = scalar_select 0, %s6, %s4
  $region1: #{m5_forward_pallas.1} parent=0
    #allocation5 [shape = 'u8[1024]{0}', space=vmem, size = 0x400, scoped, tag = 'output window, operand 0']
    #allocation6 [shape = 's32[2]{0}', space=sflag, size = 0x8, scoped, tag = 'scoped memory for m5_forward_pallas.1']
    %8 = vsyncpa [#allocation6], 0
    %s9 = scalar_lea.sflag [#allocation6], 1
    %10 = vsyncpa %s9, 0
    loop: start=0, step=1, limit=4
    $region2: #{m5_forward_pallas.1} parent=1 // loop_pre_header
      _
    $region3: #{m5_forward_pallas.1} parent=1 // loop_header
      %s12 = sphi 0, %s16
      %p13 = scmp.ge.s32.totalorder %s12, 4
      %s22 = sphi 0, %s24
      %s25 = sphi 0, %s22
      %s26 = sphi 0, %s25
      %s42 = sphi 0, %s26
      %s46 = sphi 0, %s46
      %s48 = sphi 0, %s46
      %s49 = sphi 0, %s48
      %s63 = sphi 0, %s49
      %s67 = sphi 0, %s67
      %s69 = sphi 0, %s67
      %s70 = sphi 0, %s69
      %s84 = sphi 0, %s70
      %s90 = sphi 0, %s92
      %s93 = sphi 0, %s90
      %s94 = sphi 0, %s93
      %s110 = sphi 0, %s94
    $region4: #{m5_forward_pallas.1} parent=1 // loop_header_branch
      %15 = sbr.rel (%p13) target = $region8
    $region5: #{m5_forward_pallas.1} parent=1 // loop_body
      %s17 = ssub.s32 %s12, 1
      %s18 = ssub.s32 %s12, 2
      %s19 = sadd.s32 %s12, 1
      %s20 = ssub.s32 %s12, %s19
      %p21 = scmp.eq.s32.totalorder %s20, 0
      %s23 = sadd.s32 %s22, 1
      %s24 = scalar_select %p21, %s22, %s23
      %p27 = pneg %p21
      %p28 = scmp.eq.s32.totalorder %s12, 1
      %p29 = por %p27, %p28
      %p30 = scmp.ne.s32.totalorder %s22, %s25
      %p31 = scmp.eq.s32.totalorder %s12, 0
      %p32 = por %p30, %p31
      %p33 = scmp.ne.s32.totalorder %s22, %s25
      %p34 = scmp.eq.s32.totalorder %s17, 1
      %p35 = por %p33, %p34
      %p36 = scmp.ne.s32.totalorder %s25, %s26
      %p37 = scmp.eq.s32.totalorder %s17, 0
      %p38 = por %p36, %p37
      %p39 = scmp.ne.s32.totalorder %s25, %s26
      %p40 = scmp.eq.s32.totalorder %s18, 1
      %p41 = por %p39, %p40
      %p43 = scmp.ne.s32.totalorder %s26, %s42
      %p44 = scmp.eq.s32.totalorder %s18, 0
      %p45 = por %p43, %p44
      %s47 = sadd.s32 %s46, 1
      %p50 = scmp.eq.s32.totalorder %s12, 1
      %p51 = scmp.ne.s32.totalorder %s46, %s48
      %p52 = scmp.eq.s32.totalorder %s12, 0
      %p53 = por %p51, %p52
      %p54 = scmp.ne.s32.totalorder %s46, %s48
      %p55 = scmp.eq.s32.totalorder %s17, 1
      %p56 = por %p54, %p55
      %p57 = scmp.ne.s32.totalorder %s48, %s49
      %p58 = scmp.eq.s32.totalorder %s17, 0
      %p59 = por %p57, %p58
      %p60 = scmp.ne.s32.totalorder %s48, %s49
      %p61 = scmp.eq.s32.totalorder %s18, 1
      %p62 = por %p60, %p61
      %p64 = scmp.ne.s32.totalorder %s49, %s63
      %p65 = scmp.eq.s32.totalorder %s18, 0
      %p66 = por %p64, %p65
      %s68 = sadd.s32 %s67, 1
      %p71 = scmp.eq.s32.totalorder %s12, 1
      %p72 = scmp.ne.s32.totalorder %s67, %s69
      %p73 = scmp.eq.s32.totalorder %s12, 0
      %p74 = por %p72, %p73
      %p75 = scmp.ne.s32.totalorder %s67, %s69
      %p76 = scmp.eq.s32.totalorder %s17, 1
      %p77 = por %p75, %p76
      %p78 = scmp.ne.s32.totalorder %s69, %s70
      %p79 = scmp.eq.s32.totalorder %s17, 0
      %p80 = por %p78, %p79
      %p81 = scmp.ne.s32.totalorder %s69, %s70
      %p82 = scmp.eq.s32.totalorder %s18, 1
      %p83 = por %p81, %p82
      %p85 = scmp.ne.s32.totalorder %s70, %s84
      %p86 = scmp.eq.s32.totalorder %s18, 0
      %p87 = por %p85, %p86
      %s88 = ssub.s32 %s12, %s19
      %p89 = scmp.eq.s32.totalorder %s88, 0
      %s91 = sadd.s32 %s90, 1
      %s92 = scalar_select %p89, %s90, %s91
      %p95 = pneg %p89
      %p96 = scmp.eq.s32.totalorder %s12, 1
      %p97 = por %p95, %p96
      %p98 = scmp.ne.s32.totalorder %s90, %s93
      %p99 = scmp.eq.s32.totalorder %s12, 0
      %p100 = por %p98, %p99
      %p101 = scmp.ne.s32.totalorder %s90, %s93
      %p102 = scmp.eq.s32.totalorder %s17, 1
      %p103 = por %p101, %p102
      %p104 = scmp.ne.s32.totalorder %s93, %s94
      %p105 = scmp.eq.s32.totalorder %s17, 0
      %p106 = por %p104, %p105
      %p107 = scmp.ne.s32.totalorder %s93, %s94
      %p108 = scmp.eq.s32.totalorder %s18, 1
      %p109 = por %p107, %p108
      %p111 = scmp.ne.s32.totalorder %s94, %s110
      %p112 = scmp.eq.s32.totalorder %s18, 0
      %p113 = por %p111, %p112
      %p114 = scmp.le.s32.totalorder 1, %s12
      %p115 = scmp.lt.s32.totalorder %s12, 3
      %p116 = pnand %p114, %p115
      %p117 = pneg %p116
      // Predicated region
      $region9: #{m5_forward_pallas.1} parent=5 // pred_check
        _
      $region10: #{m5_forward_pallas.1} parent=5 // pred_check_branch
        %119 = sbr.rel (%p116) target = $region12
      $region11: #{m5_forward_pallas.1} parent=5 // pred_region
        %s120 = ssub.s32 %s12, 1
        // Predicated region
        $region13: #{m5_forward_pallas.1} parent=11 // pred_check
          %p121 = pneg %p59
        $region14: #{m5_forward_pallas.1} parent=11 // pred_check_branch
          %123 = sbr.rel (%p121) target = $region16
        $region15: #{m5_forward_pallas.1} parent=11 // pred_region
          _
        $region16: #{m5_forward_pallas.1} parent=11 // pred_fallthru
          _
        // Predicated region
        $region17: #{m5_forward_pallas.1} parent=11 // pred_check
          %p124 = pneg %p80
        $region18: #{m5_forward_pallas.1} parent=11 // pred_check_branch
          %126 = sbr.rel (%p124) target = $region20
        $region19: #{m5_forward_pallas.1} parent=11 // pred_region
          _
        $region20: #{m5_forward_pallas.1} parent=11 // pred_fallthru
          _
      $region12: #{m5_forward_pallas.1} parent=5 // pred_fallthru
        _
      %p127 = scmp.lt.s32.totalorder %s12, 2
      // Predicated region
      $region21: #{m5_forward_pallas.1} parent=5 // pred_check
        %p128 = pneg %p127
      $region22: #{m5_forward_pallas.1} parent=5 // pred_check_branch
        %130 = sbr.rel (%p128) target = $region24
      $region23: #{m5_forward_pallas.1} parent=5 // pred_region
        // Predicated region
        $region25: #{m5_forward_pallas.1} parent=23 // pred_check
          %p131 = pneg %p32
        $region26: #{m5_forward_pallas.1} parent=23 // pred_check_branch
          %133 = sbr.rel (%p131) target = $region28
        $region27: #{m5_forward_pallas.1} parent=23 // pred_region
          %p134 = scmp.lt.s32.totalorder %s12, 1
          %s135 = scalar_select %p134, %s12, 1
          %s136 = smul.addr %s135, 16
          %s137 = smul.addr %s136, 8
          %s138 = scalar_lea.vmem %s0, %s137
        $region28: #{m5_forward_pallas.1} parent=23 // pred_fallthru
          _
      $region24: #{m5_forward_pallas.1} parent=5 // pred_fallthru
        _
      %p139 = scmp.le.s32.totalorder 1, %s12
      %p140 = scmp.lt.s32.totalorder %s12, 3
      %p141 = pnand %p139, %p140
      %p142 = pneg %p141
      // Predicated region
      $region29: #{m5_forward_pallas.1} parent=5 // pred_check
        _
      $region30: #{m5_forward_pallas.1} parent=5 // pred_check_branch
        %144 = sbr.rel (%p141) target = $region32
      $region31: #{m5_forward_pallas.1} parent=5 // pred_region
        %s145 = ssub.s32 %s12, 1
        %p146 = scmp.lt.s32.totalorder %s17, 1
        %s147 = scalar_select %p146, %s17, 1
        %s148 = smul.addr %s147, 16
        %s149 = smul.addr %s148, 8
        %s150 = scalar_lea.vmem %s0, %s149
        %p151 = pneg %p38
        %p152 = pneg %p35
        %p153 = pneg %p59
        %p154 = pneg %p56
        %p155 = pneg %p80
        %p156 = pneg %p77
        %p157 = pneg %p106
        %p158 = pneg %p103
        %s159 = sand.u32 %s93, 1
        %s160 = scalar_lea.sflag [#allocation6], %s159
        %s161 = sand.u32 %s93, 1
        %s162 = scalar_lea.vmem [#allocation5], %s161
        %p163 = scmp.lt.s32.totalorder %s17, 1
        %s164 = scalar_select %p163, %s17, 1
        %s165 = smul.addr %s164, 16
        %s166 = smul.addr %s165, 8
        %s167 = scalar_lea.vmem %s0, %s166
        %v169 = vld [vmem:[%s167] sm:$0xff]
        %v170 = vld [vmem:[%s167 + $0x8] sm:$0xff]
        %v171 = vld [vmem:[%s167 + $0x10] sm:$0xff]
        %v172 = vld [vmem:[%s167 + $0x18] sm:$0xff]
        %v173 = vld [vmem:[%s167 + $0x20] sm:$0xff]
        %v174 = vld [vmem:[%s167 + $0x28] sm:$0xff]
        %v175 = vld [vmem:[%s167 + $0x30] sm:$0xff]
        %v176 = vld [vmem:[%s167 + $0x38] sm:$0xff]
        %v177 = vpack.c.bf16 %v170, %v169
        %v178 = vpack.c.bf16 %v172, %v171
        %v179 = vpack.c.bf16 %v174, %v173
        %v180 = vpack.c.bf16 %v176, %v175
        %v181 = vld [vmem:[%s167 + $0x1] sm:$0xff]
        %v182 = vld [vmem:[%s167 + $0x9] sm:$0xff]
        %v183 = vld [vmem:[%s167 + $0x11] sm:$0xff]
        %v184 = vld [vmem:[%s167 + $0x19] sm:$0xff]
        %v185 = vld [vmem:[%s167 + $0x21] sm:$0xff]
        %v186 = vld [vmem:[%s167 + $0x29] sm:$0xff]
        %v187 = vld [vmem:[%s167 + $0x31] sm:$0xff]
        %v188 = vld [vmem:[%s167 + $0x39] sm:$0xff]
        %v189 = vpack.c.bf16 %v182, %v181
        %v190 = vpack.c.bf16 %v184, %v183
        %v191 = vpack.c.bf16 %v186, %v185
        %v192 = vpack.c.bf16 %v188, %v187
        %v193 = vld [vmem:[%s1 + $0x18] sm:$0xf]
        %v194 = vld [vmem:[%s1 + $0x1c] sm:$0xf]
        %v195 = vld [vmem:[%s1 + $0x20] sm:$0xf]
        %v196 = vld [vmem:[%s1 + $0x24] sm:$0xf]
        %v197 = vld [vmem:[%s1 + $0x28] sm:$0xf]
        %v198 = vld [vmem:[%s1 + $0x2c] sm:$0xf]
        %v199 = vld [vmem:[%s1 + $0x30] sm:$0xf]
        %v200 = vld [vmem:[%s1 + $0x34] sm:$0xf]
        %v201 = vld [vmem:[%s1 + $0x38] sm:$0xf]
        %v202 = vld [vmem:[%s1 + $0x3c] sm:$0xf]
        %v203 = vld [vmem:[%s1 + $0x40] sm:$0xf]
        %v204 = vld [vmem:[%s1 + $0x44] sm:$0xf]
        %v205 = vld [vmem:[%s1 + $0x48] sm:$0xf]
        %v206 = vld [vmem:[%s1 + $0x4c] sm:$0xf]
        %v207 = vld [vmem:[%s1 + $0x50] sm:$0xf]
        %v208 = vld [vmem:[%s1 + $0x54] sm:$0xf]
        %v217 = vunpack.c.l.b16 %v201
        %v218 = vunpack.c.l.b16 %v202
        %v219 = vunpack.c.l.b16 %v203
        %v220 = vunpack.c.l.b16 %v204
        %v221 = vunpack.c.l.b16 %v205
        %v222 = vunpack.c.l.b16 %v206
        %v223 = vunpack.c.l.b16 %v207
        %v224 = vunpack.c.l.b16 %v208
        %v225 = vpack.c.b16 %v218, %v217
        %v226 = vpack.c.b16 %v220, %v219
        %v227 = vpack.c.b16 %v222, %v221
        %v228 = vpack.c.b16 %v224, %v223
        %vm233 = vcmask 523264
        %v235 = vsel %vm233, %v189, 0
        %v238 = vsel %vm233, %v190, 0
        %v241 = vsel %vm233, %v191, 0
        %v244 = vsel %vm233, %v192, 0
        %246 = vmatprep.subr.bf16.mxu0 0
        %247 = vmatpush1.bf16.msra.mxu0 0
        %248 = vmatprep.subr.bf16.mxu0 0
        %249 = vmatpush1.bf16.msra.mxu0 0
        %250 = vmatprep.subr.bf16.mxu0 0
        %251 = vmatpush1.bf16.msra.mxu0 0
        %252 = vmatprep.subr.bf16.mxu0 0
        %253 = vmatpush1.bf16.msra.mxu0 0
        %254 = vmatprep.subr.bf16.mxu0 0
        %255 = vmatpush1.bf16.msra.mxu0 %v228
        %256 = vmatprep.subr.bf16.mxu0 0
        %257 = vmatpush1.bf16.msra.mxu0 %v227
        %258 = vmatprep.subr.bf16.mxu0 0
        %259 = vmatpush1.bf16.msra.mxu0 %v226
        %260 = vmatprep.subr.bf16.mxu0 0
        %261 = vmatpush1.bf16.msra.mxu0 %v225
        %262 = vmatprep.subr.bf16.mxu0 0
        %263 = vmatpush2.bf16.msra.mxu0 0
        %264 = vmatprep.subr.bf16.mxu0 0
        %265 = vmatpush2.bf16.msra.mxu0 0
        %266 = vmatprep.subr.bf16.mxu0 0
        %267 = vmatpush2.bf16.msra.mxu0 0
        %268 = vmatprep.subr.bf16.mxu0 0
        %269 = vmatpush2.bf16.msra.mxu0 0
        %270 = vmatprep.subr.bf16.mxu0 0
        %271 = vmatpush2.bf16.msra.mxu0 0
        %272 = vmatprep.subr.bf16.mxu0 0
        %273 = vmatpush2.bf16.msra.mxu0 0
        %274 = vmatprep.subr.bf16.mxu0 0
        %275 = vmatpush2.bf16.msra.mxu0 0
        %276 = vmatprep.subr.bf16.mxu0 0
        %277 = vmatpush2.bf16.msra.mxu0 0
        %278 = vmatprep.mubr.bf16.mxu0 0
        %279 = vmatmul.mubr.bf16.gmra.mxu0 %v235
        %v280 = vpop.f32.mrf.mxu0
        %v281 = vadd.f32 0.0, %v280
        %v282 = vpop.f32.mrf.mxu0
        %v283 = vpop.f32.mrf.mxu0
        %v284 = vadd.f32 0.0, %v283
        %v285 = vpop.f32.mrf.mxu0
        %286 = vmatprep.mubr.bf16.mxu0 0
        %287 = vmatmul.mubr.bf16.gmra.mxu0 %v238
        %v288 = vpop.f32.mrf.mxu0
        %v289 = vadd.f32 0.0, %v288
        %v290 = vpop.f32.mrf.mxu0
        %v291 = vpop.f32.mrf.mxu0
        %v292 = vadd.f32 0.0, %v291
        %v293 = vpop.f32.mrf.mxu0
        %294 = vmatprep.mubr.bf16.mxu0 0
        %295 = vmatmul.mubr.bf16.gmra.mxu0 %v241
        %v296 = vpop.f32.mrf.mxu0
        %v297 = vadd.f32 0.0, %v296
        %v298 = vpop.f32.mrf.mxu0
        %v299 = vpop.f32.mrf.mxu0
        %v300 = vadd.f32 0.0, %v299
        %v301 = vpop.f32.mrf.mxu0
        %302 = vmatprep.mubr.bf16.mxu0 0
        %303 = vmatmul.mubr.bf16.gmra.mxu0 %v244
        %v304 = vpop.f32.mrf.mxu0
        %v305 = vadd.f32 0.0, %v304
        %v306 = vpop.f32.mrf.mxu0
        %v307 = vpop.f32.mrf.mxu0
        %v308 = vadd.f32 0.0, %v307
        %v309 = vpop.f32.mrf.mxu0
        %310 = vdwg.mxu0
        %v319 = vunpack.c.l.b16 %v193
        %v320 = vunpack.c.l.b16 %v194
        %v321 = vunpack.c.l.b16 %v195
        %v322 = vunpack.c.l.b16 %v196
        %v323 = vunpack.c.l.b16 %v197
        %v324 = vunpack.c.l.b16 %v198
        %v325 = vunpack.c.l.b16 %v199
        %v326 = vunpack.c.l.b16 %v200
        %v327 = vpack.c.b16 %v320, %v319
        %v328 = vpack.c.b16 %v322, %v321
        %v329 = vpack.c.b16 %v324, %v323
        %v330 = vpack.c.b16 %v326, %v325
        %v336 = vsel %vm233, %v177, 0
        %v339 = vsel %vm233, %v178, 0
        %v342 = vsel %vm233, %v179, 0
        %v345 = vsel %vm233, %v180, 0
        %347 = vmatprep.subr.bf16.mxu0 0
        %348 = vmatpush1.bf16.msra.mxu0 0
        %349 = vmatprep.subr.bf16.mxu0 0
        %350 = vmatpush1.bf16.msra.mxu0 0
        %351 = vmatprep.subr.bf16.mxu0 0
        %352 = vmatpush1.bf16.msra.mxu0 0
        %353 = vmatprep.subr.bf16.mxu0 0
        %354 = vmatpush1.bf16.msra.mxu0 0
        %355 = vmatprep.subr.bf16.mxu0 0
        %356 = vmatpush1.bf16.msra.mxu0 %v330
        %357 = vmatprep.subr.bf16.mxu0 0
        %358 = vmatpush1.bf16.msra.mxu0 %v329
        %359 = vmatprep.subr.bf16.mxu0 0
        %360 = vmatpush1.bf16.msra.mxu0 %v328
        %361 = vmatprep.subr.bf16.mxu0 0
        %362 = vmatpush1.bf16.msra.mxu0 %v327
        %363 = vmatprep.subr.bf16.mxu0 0
        %364 = vmatpush2.bf16.msra.mxu0 0
        %365 = vmatprep.subr.bf16.mxu0 0
        %366 = vmatpush2.bf16.msra.mxu0 0
        %367 = vmatprep.subr.bf16.mxu0 0
        %368 = vmatpush2.bf16.msra.mxu0 0
        %369 = vmatprep.subr.bf16.mxu0 0
        %370 = vmatpush2.bf16.msra.mxu0 0
        %371 = vmatprep.subr.bf16.mxu0 0
        %372 = vmatpush2.bf16.msra.mxu0 0
        %373 = vmatprep.subr.bf16.mxu0 0
        %374 = vmatpush2.bf16.msra.mxu0 0
        %375 = vmatprep.subr.bf16.mxu0 0
        %376 = vmatpush2.bf16.msra.mxu0 0
        %377 = vmatprep.subr.bf16.mxu0 0
        %378 = vmatpush2.bf16.msra.mxu0 0
        %379 = vmatprep.mubr.bf16.mxu0 0
        %380 = vmatmul.mubr.bf16.gmra.mxu0 %v336
        %v381 = vpop.f32.mrf.mxu0
        %v382 = vadd.f32 %v281, %v381
        %v383 = vpop.f32.mrf.mxu0
        %v384 = vpop.f32.mrf.mxu0
        %v385 = vadd.f32 %v284, %v384
        %v386 = vpop.f32.mrf.mxu0
        %387 = vmatprep.mubr.bf16.mxu0 0
        %388 = vmatmul.mubr.bf16.gmra.mxu0 %v339
        %v389 = vpop.f32.mrf.mxu0
        %v390 = vadd.f32 %v289, %v389
        %v391 = vpop.f32.mrf.mxu0
        %v392 = vpop.f32.mrf.mxu0
        %v393 = vadd.f32 %v292, %v392
        %v394 = vpop.f32.mrf.mxu0
        %395 = vmatprep.mubr.bf16.mxu0 0
        %396 = vmatmul.mubr.bf16.gmra.mxu0 %v342
        %v397 = vpop.f32.mrf.mxu0
        %v398 = vadd.f32 %v297, %v397
        %v399 = vpop.f32.mrf.mxu0
        %v400 = vpop.f32.mrf.mxu0
        %v401 = vadd.f32 %v300, %v400
        %v402 = vpop.f32.mrf.mxu0
        %403 = vmatprep.mubr.bf16.mxu0 0
        %404 = vmatmul.mubr.bf16.gmra.mxu0 %v345
        %v405 = vpop.f32.mrf.mxu0
        %v406 = vadd.f32 %v305, %v405
        %v407 = vpop.f32.mrf.mxu0
        %v408 = vpop.f32.mrf.mxu0
        %v409 = vadd.f32 %v308, %v408
        %v410 = vpop.f32.mrf.mxu0
        %411 = vdwg.mxu0
        %v412 = vld [vmem:[%s1 + $0x10] sm:$0xf]
        %v413 = vld [vmem:[%s1 + $0x14] sm:$0xf]
        %v414 = vld [vmem:[%s1 + $0x18] sm:$0xf]
        %v415 = vld [vmem:[%s1 + $0x1c] sm:$0xf]
        %v416 = vld [vmem:[%s1 + $0x20] sm:$0xf]
        %v417 = vld [vmem:[%s1 + $0x24] sm:$0xf]
        %v418 = vld [vmem:[%s1 + $0x28] sm:$0xf]
        %v419 = vld [vmem:[%s1 + $0x2c] sm:$0xf]
        %v420 = vld [vmem:[%s1 + $0x30] sm:$0xf]
        %v421 = vld [vmem:[%s1 + $0x34] sm:$0xf]
        %v422 = vld [vmem:[%s1 + $0x38] sm:$0xf]
        %v423 = vld [vmem:[%s1 + $0x3c] sm:$0xf]
        %v424 = vld [vmem:[%s1 + $0x40] sm:$0xf]
        %v425 = vld [vmem:[%s1 + $0x44] sm:$0xf]
        %v426 = vld [vmem:[%s1 + $0x48] sm:$0xf]
        %v427 = vld [vmem:[%s1 + $0x4c] sm:$0xf]
        %v436 = vunpack.c.l.b16 %v420
        %v437 = vunpack.c.l.b16 %v421
        %v438 = vunpack.c.l.b16 %v422
        %v439 = vunpack.c.l.b16 %v423
        %v440 = vunpack.c.l.b16 %v424
        %v441 = vunpack.c.l.b16 %v425
        %v442 = vunpack.c.l.b16 %v426
        %v443 = vunpack.c.l.b16 %v427
        %v444 = vpack.c.b16 %v437, %v436
        %v445 = vpack.c.b16 %v439, %v438
        %v446 = vpack.c.b16 %v441, %v440
        %v447 = vpack.c.b16 %v443, %v442
        %452 = vmatprep.subr.bf16.mxu0 0
        %453 = vmatpush1.bf16.msra.mxu0 0
        %454 = vmatprep.subr.bf16.mxu0 0
        %455 = vmatpush1.bf16.msra.mxu0 0
        %456 = vmatprep.subr.bf16.mxu0 0
        %457 = vmatpush1.bf16.msra.mxu0 0
        %458 = vmatprep.subr.bf16.mxu0 0
        %459 = vmatpush1.bf16.msra.mxu0 0
        %460 = vmatprep.subr.bf16.mxu0 0
        %461 = vmatpush1.bf16.msra.mxu0 %v447
        %462 = vmatprep.subr.bf16.mxu0 0
        %463 = vmatpush1.bf16.msra.mxu0 %v446
        %464 = vmatprep.subr.bf16.mxu0 0
        %465 = vmatpush1.bf16.msra.mxu0 %v445
        %466 = vmatprep.subr.bf16.mxu0 0
        %467 = vmatpush1.bf16.msra.mxu0 %v444
        %468 = vmatprep.subr.bf16.mxu0 0
        %469 = vmatpush2.bf16.msra.mxu0 0
        %470 = vmatprep.subr.bf16.mxu0 0
        %471 = vmatpush2.bf16.msra.mxu0 0
        %472 = vmatprep.subr.bf16.mxu0 0
        %473 = vmatpush2.bf16.msra.mxu0 0
        %474 = vmatprep.subr.bf16.mxu0 0
        %475 = vmatpush2.bf16.msra.mxu0 0
        %476 = vmatprep.subr.bf16.mxu0 0
        %477 = vmatpush2.bf16.msra.mxu0 0
        %478 = vmatprep.subr.bf16.mxu0 0
        %479 = vmatpush2.bf16.msra.mxu0 0
        %480 = vmatprep.subr.bf16.mxu0 0
        %481 = vmatpush2.bf16.msra.mxu0 0
        %482 = vmatprep.subr.bf16.mxu0 0
        %483 = vmatpush2.bf16.msra.mxu0 0
        %484 = vmatprep.mubr.bf16.mxu0 0
        %485 = vmatmul.mubr.bf16.gmra.mxu0 %v235
        %v486 = vpop.f32.mrf.mxu0
        %v487 = vadd.f32 0.0, %v486
        %v488 = vpop.f32.mrf.mxu0
        %v489 = vpop.f32.mrf.mxu0
        %v490 = vadd.f32 0.0, %v489
        %v491 = vpop.f32.mrf.mxu0
        %492 = vmatprep.mubr.bf16.mxu0 0
        %493 = vmatmul.mubr.bf16.gmra.mxu0 %v238
        %v494 = vpop.f32.mrf.mxu0
        %v495 = vadd.f32 0.0, %v494
        %v496 = vpop.f32.mrf.mxu0
        %v497 = vpop.f32.mrf.mxu0
        %v498 = vadd.f32 0.0, %v497
        %v499 = vpop.f32.mrf.mxu0
        %500 = vmatprep.mubr.bf16.mxu0 0
        %501 = vmatmul.mubr.bf16.gmra.mxu0 %v241
        %v502 = vpop.f32.mrf.mxu0
        %v503 = vadd.f32 0.0, %v502
        %v504 = vpop.f32.mrf.mxu0
        %v505 = vpop.f32.mrf.mxu0
        %v506 = vadd.f32 0.0, %v505
        %v507 = vpop.f32.mrf.mxu0
        %508 = vmatprep.mubr.bf16.mxu0 0
        %509 = vmatmul.mubr.bf16.gmra.mxu0 %v244
        %v510 = vpop.f32.mrf.mxu0
        %v511 = vadd.f32 0.0, %v510
        %v512 = vpop.f32.mrf.mxu0
        %v513 = vpop.f32.mrf.mxu0
        %v514 = vadd.f32 0.0, %v513
        %v515 = vpop.f32.mrf.mxu0
        %516 = vdwg.mxu0
        %v525 = vunpack.c.l.b16 %v412
        %v526 = vunpack.c.l.b16 %v413
        %v527 = vunpack.c.l.b16 %v414
        %v528 = vunpack.c.l.b16 %v415
        %v529 = vunpack.c.l.b16 %v416
        %v530 = vunpack.c.l.b16 %v417
        %v531 = vunpack.c.l.b16 %v418
        %v532 = vunpack.c.l.b16 %v419
        %v533 = vpack.c.b16 %v526, %v525
        %v534 = vpack.c.b16 %v528, %v527
        %v535 = vpack.c.b16 %v530, %v529
        %v536 = vpack.c.b16 %v532, %v531
        %541 = vmatprep.subr.bf16.mxu0 0
        %542 = vmatpush1.bf16.msra.mxu0 0
        %543 = vmatprep.subr.bf16.mxu0 0
        %544 = vmatpush1.bf16.msra.mxu0 0
        %545 = vmatprep.subr.bf16.mxu0 0
        %546 = vmatpush1.bf16.msra.mxu0 0
        %547 = vmatprep.subr.bf16.mxu0 0
        %548 = vmatpush1.bf16.msra.mxu0 0
        %549 = vmatprep.subr.bf16.mxu0 0
        %550 = vmatpush1.bf16.msra.mxu0 %v536
        %551 = vmatprep.subr.bf16.mxu0 0
        %552 = vmatpush1.bf16.msra.mxu0 %v535
        %553 = vmatprep.subr.bf16.mxu0 0
        %554 = vmatpush1.bf16.msra.mxu0 %v534
        %555 = vmatprep.subr.bf16.mxu0 0
        %556 = vmatpush1.bf16.msra.mxu0 %v533
        %557 = vmatprep.subr.bf16.mxu0 0
        %558 = vmatpush2.bf16.msra.mxu0 0
        %559 = vmatprep.subr.bf16.mxu0 0
        %560 = vmatpush2.bf16.msra.mxu0 0
        %561 = vmatprep.subr.bf16.mxu0 0
        %562 = vmatpush2.bf16.msra.mxu0 0
        %563 = vmatprep.subr.bf16.mxu0 0
        %564 = vmatpush2.bf16.msra.mxu0 0
        %565 = vmatprep.subr.bf16.mxu0 0
        %566 = vmatpush2.bf16.msra.mxu0 0
        %567 = vmatprep.subr.bf16.mxu0 0
        %568 = vmatpush2.bf16.msra.mxu0 0
        %569 = vmatprep.subr.bf16.mxu0 0
        %570 = vmatpush2.bf16.msra.mxu0 0
        %571 = vmatprep.subr.bf16.mxu0 0
        %572 = vmatpush2.bf16.msra.mxu0 0
        %573 = vmatprep.mubr.bf16.mxu0 0
        %574 = vmatmul.mubr.bf16.gmra.mxu0 %v336
        %v575 = vpop.f32.mrf.mxu0
        %v576 = vadd.f32 %v487, %v575
        %v577 = vpop.f32.mrf.mxu0
        %v578 = vpop.f32.mrf.mxu0
        %v579 = vadd.f32 %v490, %v578
        %v580 = vpop.f32.mrf.mxu0
        %581 = vmatprep.mubr.bf16.mxu0 0
        %582 = vmatmul.mubr.bf16.gmra.mxu0 %v339
        %v583 = vpop.f32.mrf.mxu0
        %v584 = vadd.f32 %v495, %v583
        %v585 = vpop.f32.mrf.mxu0
        %v586 = vpop.f32.mrf.mxu0
        %v587 = vadd.f32 %v498, %v586
        %v588 = vpop.f32.mrf.mxu0
        %589 = vmatprep.mubr.bf16.mxu0 0
        %590 = vmatmul.mubr.bf16.gmra.mxu0 %v342
        %v591 = vpop.f32.mrf.mxu0
        %v592 = vadd.f32 %v503, %v591
        %v593 = vpop.f32.mrf.mxu0
        %v594 = vpop.f32.mrf.mxu0
        %v595 = vadd.f32 %v506, %v594
        %v596 = vpop.f32.mrf.mxu0
        %597 = vmatprep.mubr.bf16.mxu0 0
        %598 = vmatmul.mubr.bf16.gmra.mxu0 %v345
        %v599 = vpop.f32.mrf.mxu0
        %v600 = vadd.f32 %v511, %v599
        %v601 = vpop.f32.mrf.mxu0
        %v602 = vpop.f32.mrf.mxu0
        %v603 = vadd.f32 %v514, %v602
        %v604 = vpop.f32.mrf.mxu0
        %605 = vdwg.mxu0
        %v606 = vmax.f32 %v382, %v576
        %v607 = vmax.f32 %v385, %v579
        %v608 = vmax.f32 %v390, %v584
        %v609 = vmax.f32 %v393, %v587
        %v610 = vmax.f32 %v398, %v592
        %v611 = vmax.f32 %v401, %v595
        %v612 = vmax.f32 %v406, %v600
        %v613 = vmax.f32 %v409, %v603
        %v614 = vld [vmem:[%s1 + $0x8] sm:$0xf]
        %v615 = vld [vmem:[%s1 + $0xc] sm:$0xf]
        %v616 = vld [vmem:[%s1 + $0x10] sm:$0xf]
        %v617 = vld [vmem:[%s1 + $0x14] sm:$0xf]
        %v618 = vld [vmem:[%s1 + $0x18] sm:$0xf]
        %v619 = vld [vmem:[%s1 + $0x1c] sm:$0xf]
        %v620 = vld [vmem:[%s1 + $0x20] sm:$0xf]
        %v621 = vld [vmem:[%s1 + $0x24] sm:$0xf]
        %v622 = vld [vmem:[%s1 + $0x28] sm:$0xf]
        %v623 = vld [vmem:[%s1 + $0x2c] sm:$0xf]
        %v624 = vld [vmem:[%s1 + $0x30] sm:$0xf]
        %v625 = vld [vmem:[%s1 + $0x34] sm:$0xf]
        %v626 = vld [vmem:[%s1 + $0x38] sm:$0xf]
        %v627 = vld [vmem:[%s1 + $0x3c] sm:$0xf]
        %v628 = vld [vmem:[%s1 + $0x40] sm:$0xf]
        %v629 = vld [vmem:[%s1 + $0x44] sm:$0xf]
        %v638 = vunpack.c.l.b16 %v622
        %v639 = vunpack.c.l.b16 %v623
        %v640 = vunpack.c.l.b16 %v624
        %v641 = vunpack.c.l.b16 %v625
        %v642 = vunpack.c.l.b16 %v626
        %v643 = vunpack.c.l.b16 %v627
        %v644 = vunpack.c.l.b16 %v628
        %v645 = vunpack.c.l.b16 %v629
        %v646 = vpack.c.b16 %v639, %v638
        %v647 = vpack.c.b16 %v641, %v640
        %v648 = vpack.c.b16 %v643, %v642
        %v649 = vpack.c.b16 %v645, %v644
        %654 = vmatprep.subr.bf16.mxu0 0
        %655 = vmatpush1.bf16.msra.mxu0 0
        %656 = vmatprep.subr.bf16.mxu0 0
        %657 = vmatpush1.bf16.msra.mxu0 0
        %658 = vmatprep.subr.bf16.mxu0 0
        %659 = vmatpush1.bf16.msra.mxu0 0
        %660 = vmatprep.subr.bf16.mxu0 0
        %661 = vmatpush1.bf16.msra.mxu0 0
        %662 = vmatprep.subr.bf16.mxu0 0
        %663 = vmatpush1.bf16.msra.mxu0 %v649
        %664 = vmatprep.subr.bf16.mxu0 0
        %665 = vmatpush1.bf16.msra.mxu0 %v648
        %666 = vmatprep.subr.bf16.mxu0 0
        %667 = vmatpush1.bf16.msra.mxu0 %v647
        %668 = vmatprep.subr.bf16.mxu0 0
        %669 = vmatpush1.bf16.msra.mxu0 %v646
        %670 = vmatprep.subr.bf16.mxu0 0
        %671 = vmatpush2.bf16.msra.mxu0 0
        %672 = vmatprep.subr.bf16.mxu0 0
        %673 = vmatpush2.bf16.msra.mxu0 0
        %674 = vmatprep.subr.bf16.mxu0 0
        %675 = vmatpush2.bf16.msra.mxu0 0
        %676 = vmatprep.subr.bf16.mxu0 0
        %677 = vmatpush2.bf16.msra.mxu0 0
        %678 = vmatprep.subr.bf16.mxu0 0
        %679 = vmatpush2.bf16.msra.mxu0 0
        %680 = vmatprep.subr.bf16.mxu0 0
        %681 = vmatpush2.bf16.msra.mxu0 0
        %682 = vmatprep.subr.bf16.mxu0 0
        %683 = vmatpush2.bf16.msra.mxu0 0
        %684 = vmatprep.subr.bf16.mxu0 0
        %685 = vmatpush2.bf16.msra.mxu0 0
        %686 = vmatprep.mubr.bf16.mxu0 0
        %687 = vmatmul.mubr.bf16.gmra.mxu0 %v235
        %v688 = vpop.f32.mrf.mxu0
        %v689 = vadd.f32 0.0, %v688
        %v690 = vpop.f32.mrf.mxu0
        %v691 = vpop.f32.mrf.mxu0
        %v692 = vadd.f32 0.0, %v691
        %v693 = vpop.f32.mrf.mxu0
        %694 = vmatprep.mubr.bf16.mxu0 0
        %695 = vmatmul.mubr.bf16.gmra.mxu0 %v238
        %v696 = vpop.f32.mrf.mxu0
        %v697 = vadd.f32 0.0, %v696
        %v698 = vpop.f32.mrf.mxu0
        %v699 = vpop.f32.mrf.mxu0
        %v700 = vadd.f32 0.0, %v699
        %v701 = vpop.f32.mrf.mxu0
        %702 = vmatprep.mubr.bf16.mxu0 0
        %703 = vmatmul.mubr.bf16.gmra.mxu0 %v241
        %v704 = vpop.f32.mrf.mxu0
        %v705 = vadd.f32 0.0, %v704
        %v706 = vpop.f32.mrf.mxu0
        %v707 = vpop.f32.mrf.mxu0
        %v708 = vadd.f32 0.0, %v707
        %v709 = vpop.f32.mrf.mxu0
        %710 = vmatprep.mubr.bf16.mxu0 0
        %711 = vmatmul.mubr.bf16.gmra.mxu0 %v244
        %v712 = vpop.f32.mrf.mxu0
        %v713 = vadd.f32 0.0, %v712
        %v714 = vpop.f32.mrf.mxu0
        %v715 = vpop.f32.mrf.mxu0
        %v716 = vadd.f32 0.0, %v715
        %v717 = vpop.f32.mrf.mxu0
        %718 = vdwg.mxu0
        %v727 = vunpack.c.l.b16 %v614
        %v728 = vunpack.c.l.b16 %v615
        %v729 = vunpack.c.l.b16 %v616
        %v730 = vunpack.c.l.b16 %v617
        %v731 = vunpack.c.l.b16 %v618
        %v732 = vunpack.c.l.b16 %v619
        %v733 = vunpack.c.l.b16 %v620
        %v734 = vunpack.c.l.b16 %v621
        %v735 = vpack.c.b16 %v728, %v727
        %v736 = vpack.c.b16 %v730, %v729
        %v737 = vpack.c.b16 %v732, %v731
        %v738 = vpack.c.b16 %v734, %v733
        %743 = vmatprep.subr.bf16.mxu0 0
        %744 = vmatpush1.bf16.msra.mxu0 0
        %745 = vmatprep.subr.bf16.mxu0 0
        %746 = vmatpush1.bf16.msra.mxu0 0
        %747 = vmatprep.subr.bf16.mxu0 0
        %748 = vmatpush1.bf16.msra.mxu0 0
        %749 = vmatprep.subr.bf16.mxu0 0
        %750 = vmatpush1.bf16.msra.mxu0 0
        %751 = vmatprep.subr.bf16.mxu0 0
        %752 = vmatpush1.bf16.msra.mxu0 %v738
        %753 = vmatprep.subr.bf16.mxu0 0
        %754 = vmatpush1.bf16.msra.mxu0 %v737
        %755 = vmatprep.subr.bf16.mxu0 0
        %756 = vmatpush1.bf16.msra.mxu0 %v736
        %757 = vmatprep.subr.bf16.mxu0 0
        %758 = vmatpush1.bf16.msra.mxu0 %v735
        %759 = vmatprep.subr.bf16.mxu0 0
        %760 = vmatpush2.bf16.msra.mxu0 0
        %761 = vmatprep.subr.bf16.mxu0 0
        %762 = vmatpush2.bf16.msra.mxu0 0
        %763 = vmatprep.subr.bf16.mxu0 0
        %764 = vmatpush2.bf16.msra.mxu0 0
        %765 = vmatprep.subr.bf16.mxu0 0
        %766 = vmatpush2.bf16.msra.mxu0 0
        %767 = vmatprep.subr.bf16.mxu0 0
        %768 = vmatpush2.bf16.msra.mxu0 0
        %769 = vmatprep.subr.bf16.mxu0 0
        %770 = vmatpush2.bf16.msra.mxu0 0
        %771 = vmatprep.subr.bf16.mxu0 0
        %772 = vmatpush2.bf16.msra.mxu0 0
        %773 = vmatprep.subr.bf16.mxu0 0
        %774 = vmatpush2.bf16.msra.mxu0 0
        %775 = vmatprep.mubr.bf16.mxu0 0
        %776 = vmatmul.mubr.bf16.gmra.mxu0 %v336
        %v777 = vpop.f32.mrf.mxu0
        %v778 = vadd.f32 %v689, %v777
        %v779 = vpop.f32.mrf.mxu0
        %v780 = vpop.f32.mrf.mxu0
        %v781 = vadd.f32 %v692, %v780
        %v782 = vpop.f32.mrf.mxu0
        %783 = vmatprep.mubr.bf16.mxu0 0
        %784 = vmatmul.mubr.bf16.gmra.mxu0 %v339
        %v785 = vpop.f32.mrf.mxu0
        %v786 = vadd.f32 %v697, %v785
        %v787 = vpop.f32.mrf.mxu0
        %v788 = vpop.f32.mrf.mxu0
        %v789 = vadd.f32 %v700, %v788
        %v790 = vpop.f32.mrf.mxu0
        %791 = vmatprep.mubr.bf16.mxu0 0
        %792 = vmatmul.mubr.bf16.gmra.mxu0 %v342
        %v793 = vpop.f32.mrf.mxu0
        %v794 = vadd.f32 %v705, %v793
        %v795 = vpop.f32.mrf.mxu0
        %v796 = vpop.f32.mrf.mxu0
        %v797 = vadd.f32 %v708, %v796
        %v798 = vpop.f32.mrf.mxu0
        %799 = vmatprep.mubr.bf16.mxu0 0
        %800 = vmatmul.mubr.bf16.gmra.mxu0 %v345
        %v801 = vpop.f32.mrf.mxu0
        %v802 = vadd.f32 %v713, %v801
        %v803 = vpop.f32.mrf.mxu0
        %v804 = vpop.f32.mrf.mxu0
        %v805 = vadd.f32 %v716, %v804
        %v806 = vpop.f32.mrf.mxu0
        %807 = vdwg.mxu0
        %v808 = vmax.f32 %v606, %v778
        %v809 = vmax.f32 %v607, %v781
        %v810 = vmax.f32 %v608, %v786
        %v811 = vmax.f32 %v609, %v789
        %v812 = vmax.f32 %v610, %v794
        %v813 = vmax.f32 %v611, %v797
        %v814 = vmax.f32 %v612, %v802
        %v815 = vmax.f32 %v613, %v805
        %v816 = vld [vmem:[%s1] sm:$0xf]
        %v817 = vld [vmem:[%s1 + $0x4] sm:$0xf]
        %v818 = vld [vmem:[%s1 + $0x8] sm:$0xf]
        %v819 = vld [vmem:[%s1 + $0xc] sm:$0xf]
        %v820 = vld [vmem:[%s1 + $0x10] sm:$0xf]
        %v821 = vld [vmem:[%s1 + $0x14] sm:$0xf]
        %v822 = vld [vmem:[%s1 + $0x18] sm:$0xf]
        %v823 = vld [vmem:[%s1 + $0x1c] sm:$0xf]
        %v824 = vld [vmem:[%s1 + $0x20] sm:$0xf]
        %v825 = vld [vmem:[%s1 + $0x24] sm:$0xf]
        %v826 = vld [vmem:[%s1 + $0x28] sm:$0xf]
        %v827 = vld [vmem:[%s1 + $0x2c] sm:$0xf]
        %v828 = vld [vmem:[%s1 + $0x30] sm:$0xf]
        %v829 = vld [vmem:[%s1 + $0x34] sm:$0xf]
        %v830 = vld [vmem:[%s1 + $0x38] sm:$0xf]
        %v831 = vld [vmem:[%s1 + $0x3c] sm:$0xf]
        %v840 = vunpack.c.l.b16 %v824
        %v841 = vunpack.c.l.b16 %v825
        %v842 = vunpack.c.l.b16 %v826
        %v843 = vunpack.c.l.b16 %v827
        %v844 = vunpack.c.l.b16 %v828
        %v845 = vunpack.c.l.b16 %v829
        %v846 = vunpack.c.l.b16 %v830
        %v847 = vunpack.c.l.b16 %v831
        %v848 = vpack.c.b16 %v841, %v840
        %v849 = vpack.c.b16 %v843, %v842
        %v850 = vpack.c.b16 %v845, %v844
        %v851 = vpack.c.b16 %v847, %v846
        %856 = vmatprep.subr.bf16.mxu0 0
        %857 = vmatpush1.bf16.msra.mxu0 0
        %858 = vmatprep.subr.bf16.mxu0 0
        %859 = vmatpush1.bf16.msra.mxu0 0
        %860 = vmatprep.subr.bf16.mxu0 0
        %861 = vmatpush1.bf16.msra.mxu0 0
        %862 = vmatprep.subr.bf16.mxu0 0
        %863 = vmatpush1.bf16.msra.mxu0 0
        %864 = vmatprep.subr.bf16.mxu0 0
        %865 = vmatpush1.bf16.msra.mxu0 %v851
        %866 = vmatprep.subr.bf16.mxu0 0
        %867 = vmatpush1.bf16.msra.mxu0 %v850
        %868 = vmatprep.subr.bf16.mxu0 0
        %869 = vmatpush1.bf16.msra.mxu0 %v849
        %870 = vmatprep.subr.bf16.mxu0 0
        %871 = vmatpush1.bf16.msra.mxu0 %v848
        %872 = vmatprep.subr.bf16.mxu0 0
        %873 = vmatpush2.bf16.msra.mxu0 0
        %874 = vmatprep.subr.bf16.mxu0 0
        %875 = vmatpush2.bf16.msra.mxu0 0
        %876 = vmatprep.subr.bf16.mxu0 0
        %877 = vmatpush2.bf16.msra.mxu0 0
        %878 = vmatprep.subr.bf16.mxu0 0
        %879 = vmatpush2.bf16.msra.mxu0 0
        %880 = vmatprep.subr.bf16.mxu0 0
        %881 = vmatpush2.bf16.msra.mxu0 0
        %882 = vmatprep.subr.bf16.mxu0 0
        %883 = vmatpush2.bf16.msra.mxu0 0
        %884 = vmatprep.subr.bf16.mxu0 0
        %885 = vmatpush2.bf16.msra.mxu0 0
        %886 = vmatprep.subr.bf16.mxu0 0
        %887 = vmatpush2.bf16.msra.mxu0 0
        %888 = vmatprep.mubr.bf16.mxu0 0
        %889 = vmatmul.mubr.bf16.gmra.mxu0 %v235
        %v890 = vpop.f32.mrf.mxu0
        %v891 = vadd.f32 0.0, %v890
        %v892 = vpop.f32.mrf.mxu0
        %v893 = vpop.f32.mrf.mxu0
        %v894 = vadd.f32 0.0, %v893
        %v895 = vpop.f32.mrf.mxu0
        %896 = vmatprep.mubr.bf16.mxu0 0
        %897 = vmatmul.mubr.bf16.gmra.mxu0 %v238
        %v898 = vpop.f32.mrf.mxu0
        %v899 = vadd.f32 0.0, %v898
        %v900 = vpop.f32.mrf.mxu0
        %v901 = vpop.f32.mrf.mxu0
        %v902 = vadd.f32 0.0, %v901
        %v903 = vpop.f32.mrf.mxu0
        %904 = vmatprep.mubr.bf16.mxu0 0
        %905 = vmatmul.mubr.bf16.gmra.mxu0 %v241
        %v906 = vpop.f32.mrf.mxu0
        %v907 = vadd.f32 0.0, %v906
        %v908 = vpop.f32.mrf.mxu0
        %v909 = vpop.f32.mrf.mxu0
        %v910 = vadd.f32 0.0, %v909
        %v911 = vpop.f32.mrf.mxu0
        %912 = vmatprep.mubr.bf16.mxu0 0
        %913 = vmatmul.mubr.bf16.gmra.mxu0 %v244
        %v914 = vpop.f32.mrf.mxu0
        %v915 = vadd.f32 0.0, %v914
        %v916 = vpop.f32.mrf.mxu0
        %v917 = vpop.f32.mrf.mxu0
        %v918 = vadd.f32 0.0, %v917
        %v919 = vpop.f32.mrf.mxu0
        %920 = vdwg.mxu0
        %v929 = vunpack.c.l.b16 %v816
        %v930 = vunpack.c.l.b16 %v817
        %v931 = vunpack.c.l.b16 %v818
        %v932 = vunpack.c.l.b16 %v819
        %v933 = vunpack.c.l.b16 %v820
        %v934 = vunpack.c.l.b16 %v821
        %v935 = vunpack.c.l.b16 %v822
        %v936 = vunpack.c.l.b16 %v823
        %v937 = vpack.c.b16 %v930, %v929
        %v938 = vpack.c.b16 %v932, %v931
        %v939 = vpack.c.b16 %v934, %v933
        %v940 = vpack.c.b16 %v936, %v935
        %945 = vmatprep.subr.bf16.mxu0 0
        %946 = vmatpush1.bf16.msra.mxu0 0
        %947 = vmatprep.subr.bf16.mxu0 0
        %948 = vmatpush1.bf16.msra.mxu0 0
        %949 = vmatprep.subr.bf16.mxu0 0
        %950 = vmatpush1.bf16.msra.mxu0 0
        %951 = vmatprep.subr.bf16.mxu0 0
        %952 = vmatpush1.bf16.msra.mxu0 0
        %953 = vmatprep.subr.bf16.mxu0 0
        %954 = vmatpush1.bf16.msra.mxu0 %v940
        %955 = vmatprep.subr.bf16.mxu0 0
        %956 = vmatpush1.bf16.msra.mxu0 %v939
        %957 = vmatprep.subr.bf16.mxu0 0
        %958 = vmatpush1.bf16.msra.mxu0 %v938
        %959 = vmatprep.subr.bf16.mxu0 0
        %960 = vmatpush1.bf16.msra.mxu0 %v937
        %961 = vmatprep.subr.bf16.mxu0 0
        %962 = vmatpush2.bf16.msra.mxu0 0
        %963 = vmatprep.subr.bf16.mxu0 0
        %964 = vmatpush2.bf16.msra.mxu0 0
        %965 = vmatprep.subr.bf16.mxu0 0
        %966 = vmatpush2.bf16.msra.mxu0 0
        %967 = vmatprep.subr.bf16.mxu0 0
        %968 = vmatpush2.bf16.msra.mxu0 0
        %969 = vmatprep.subr.bf16.mxu0 0
        %970 = vmatpush2.bf16.msra.mxu0 0
        %971 = vmatprep.subr.bf16.mxu0 0
        %972 = vmatpush2.bf16.msra.mxu0 0
        %973 = vmatprep.subr.bf16.mxu0 0
        %974 = vmatpush2.bf16.msra.mxu0 0
        %975 = vmatprep.subr.bf16.mxu0 0
        %976 = vmatpush2.bf16.msra.mxu0 0
        %977 = vmatprep.mubr.bf16.mxu0 0
        %978 = vmatmul.mubr.bf16.gmra.mxu0 %v336
        %v979 = vpop.f32.mrf.mxu0
        %v980 = vadd.f32 %v891, %v979
        %v981 = vpop.f32.mrf.mxu0
        %v982 = vpop.f32.mrf.mxu0
        %v983 = vadd.f32 %v894, %v982
        %v984 = vpop.f32.mrf.mxu0
        %985 = vmatprep.mubr.bf16.mxu0 0
        %986 = vmatmul.mubr.bf16.gmra.mxu0 %v339
        %v987 = vpop.f32.mrf.mxu0
        %v988 = vadd.f32 %v899, %v987
        %v989 = vpop.f32.mrf.mxu0
        %v990 = vpop.f32.mrf.mxu0
        %v991 = vadd.f32 %v902, %v990
        %v992 = vpop.f32.mrf.mxu0
        %993 = vmatprep.mubr.bf16.mxu0 0
        %994 = vmatmul.mubr.bf16.gmra.mxu0 %v342
        %v995 = vpop.f32.mrf.mxu0
        %v996 = vadd.f32 %v907, %v995
        %v997 = vpop.f32.mrf.mxu0
        %v998 = vpop.f32.mrf.mxu0
        %v999 = vadd.f32 %v910, %v998
        %v1000 = vpop.f32.mrf.mxu0
        %1001 = vmatprep.mubr.bf16.mxu0 0
        %1002 = vmatmul.mubr.bf16.gmra.mxu0 %v345
        %v1003 = vpop.f32.mrf.mxu0
        %v1004 = vadd.f32 %v915, %v1003
        %v1005 = vpop.f32.mrf.mxu0
        %v1006 = vpop.f32.mrf.mxu0
        %v1007 = vadd.f32 %v918, %v1006
        %v1008 = vpop.f32.mrf.mxu0
        %1009 = vdwg.mxu0
        %v1010 = vmax.f32 %v808, %v980
        %v1011 = vmax.f32 %v809, %v983
        %v1012 = vmax.f32 %v810, %v988
        %v1013 = vmax.f32 %v811, %v991
        %v1014 = vmax.f32 %v812, %v996
        %v1015 = vmax.f32 %v813, %v999
        %v1016 = vmax.f32 %v814, %v1004
        %v1017 = vmax.f32 %v815, %v1007
        %v1018 = vld [vmem:[%s2] sm:$0x1]
        %v1019 = vlaneseq
        %v1020 = vshrl.u32 %v1019, 7
        %v1021 = vsub.s32 0, %v1020
        %v1022 = vrot.slane %v1018, %v1021
        %v1023 = vadd.f32 %v1010, %v1022
        %v1024 = vadd.f32 %v1011, %v1022
        %v1025 = vadd.f32 %v1012, %v1022
        %v1026 = vadd.f32 %v1013, %v1022
        %v1027 = vadd.f32 %v1014, %v1022
        %v1028 = vadd.f32 %v1015, %v1022
        %v1029 = vadd.f32 %v1016, %v1022
        %v1030 = vadd.f32 %v1017, %v1022
        %v1031 = vmax.f32 %v1023, 0.0
        %v1032 = vmax.f32 %v1024, 0.0
        %v1033 = vmax.f32 %v1025, 0.0
        %v1034 = vmax.f32 %v1026, 0.0
        %v1035 = vmax.f32 %v1027, 0.0
        %v1036 = vmax.f32 %v1028, 0.0
        %v1037 = vmax.f32 %v1029, 0.0
        %v1038 = vmax.f32 %v1030, 0.0
        %vm1039 = vcmask 261120
        %1040 = vst.msk [vmem:[#allocation2] sm:$0xff] %vm1039, %v1031
        %1041 = vst.msk [vmem:[#allocation2 + $0x8] sm:$0xff] %vm1039, %v1032
        %1042 = vst.msk [vmem:[#allocation2 + $0x10] sm:$0xff] %vm1039, %v1033
        %1043 = vst.msk [vmem:[#allocation2 + $0x18] sm:$0xff] %vm1039, %v1034
        %1044 = vst.msk [vmem:[#allocation2 + $0x20] sm:$0xff] %vm1039, %v1035
        %1045 = vst.msk [vmem:[#allocation2 + $0x28] sm:$0xff] %vm1039, %v1036
        %1046 = vst.msk [vmem:[#allocation2 + $0x30] sm:$0xff] %vm1039, %v1037
        %1047 = vst.msk [vmem:[#allocation2 + $0x38] sm:$0xff] %vm1039, %v1038
        %v1048 = vld [vmem:[%s167 + $0x40] sm:$0xff]
        %v1049 = vld [vmem:[%s167 + $0x48] sm:$0xff]
        %v1050 = vld [vmem:[%s167 + $0x50] sm:$0xff]
        %v1051 = vld [vmem:[%s167 + $0x58] sm:$0xff]
        %v1052 = vld [vmem:[%s167 + $0x60] sm:$0xff]
        %v1053 = vld [vmem:[%s167 + $0x68] sm:$0xff]
        %v1054 = vld [vmem:[%s167 + $0x70] sm:$0xff]
        %v1055 = vld [vmem:[%s167 + $0x78] sm:$0xf]
        %v1056 = vpack.c.bf16 %v1049, %v1048
        %v1057 = vpack.c.bf16 %v1051, %v1050
        %v1058 = vpack.c.bf16 %v1053, %v1052
        %v1059 = vpack.c.bf16 %v1055, %v1054
        %v1060 = vld [vmem:[%s167 + $0x41] sm:$0xff]
        %v1061 = vld [vmem:[%s167 + $0x49] sm:$0xff]
        %v1062 = vld [vmem:[%s167 + $0x51] sm:$0xff]
        %v1063 = vld [vmem:[%s167 + $0x59] sm:$0xff]
        %v1064 = vld [vmem:[%s167 + $0x61] sm:$0xff]
        %v1065 = vld [vmem:[%s167 + $0x69] sm:$0xff]
        %v1066 = vld [vmem:[%s167 + $0x71] sm:$0xff]
        %v1067 = vld [vmem:[%s167 + $0x79] sm:$0xf]
        %v1068 = vpack.c.bf16 %v1061, %v1060
        %v1069 = vpack.c.bf16 %v1063, %v1062
        %v1070 = vpack.c.bf16 %v1065, %v1064
        %v1071 = vpack.c.bf16 %v1067, %v1066
        %v1072 = vld [vmem:[%s1 + $0x18] sm:$0xf]
        %v1073 = vld [vmem:[%s1 + $0x1c] sm:$0xf]
        %v1074 = vld [vmem:[%s1 + $0x20] sm:$0xf]
        %v1075 = vld [vmem:[%s1 + $0x24] sm:$0xf]
        %v1076 = vld [vmem:[%s1 + $0x28] sm:$0xf]
        %v1077 = vld [vmem:[%s1 + $0x2c] sm:$0xf]
        %v1078 = vld [vmem:[%s1 + $0x30] sm:$0xf]
        %v1079 = vld [vmem:[%s1 + $0x34] sm:$0xf]
        %v1080 = vld [vmem:[%s1 + $0x38] sm:$0xf]
        %v1081 = vld [vmem:[%s1 + $0x3c] sm:$0xf]
        %v1082 = vld [vmem:[%s1 + $0x40] sm:$0xf]
        %v1083 = vld [vmem:[%s1 + $0x44] sm:$0xf]
        %v1084 = vld [vmem:[%s1 + $0x48] sm:$0xf]
        %v1085 = vld [vmem:[%s1 + $0x4c] sm:$0xf]
        %v1086 = vld [vmem:[%s1 + $0x50] sm:$0xf]
        %v1087 = vld [vmem:[%s1 + $0x54] sm:$0xf]
        %v1096 = vunpack.c.l.b16 %v1080
        %v1097 = vunpack.c.l.b16 %v1081
        %v1098 = vunpack.c.l.b16 %v1082
        %v1099 = vunpack.c.l.b16 %v1083
        %v1100 = vunpack.c.l.b16 %v1084
        %v1101 = vunpack.c.l.b16 %v1085
        %v1102 = vunpack.c.l.b16 %v1086
        %v1103 = vunpack.c.l.b16 %v1087
        %v1104 = vpack.c.b16 %v1097, %v1096
        %v1105 = vpack.c.b16 %v1099, %v1098
        %v1106 = vpack.c.b16 %v1101, %v1100
        %v1107 = vpack.c.b16 %v1103, %v1102
        %v1113 = vsel %vm233, %v1068, 0
        %v1116 = vsel %vm233, %v1069, 0
        %v1119 = vsel %vm233, %v1070, 0
        %v1122 = vsel %vm233, %v1071, 0
        %1124 = vmatprep.subr.bf16.mxu0 0
        %1125 = vmatpush1.bf16.msra.mxu0 0
        %1126 = vmatprep.subr.bf16.mxu0 0
        %1127 = vmatpush1.bf16.msra.mxu0 0
        %1128 = vmatprep.subr.bf16.mxu0 0
        %1129 = vmatpush1.bf16.msra.mxu0 0
        %1130 = vmatprep.subr.bf16.mxu0 0
        %1131 = vmatpush1.bf16.msra.mxu0 0
        %1132 = vmatprep.subr.bf16.mxu0 0
        %1133 = vmatpush1.bf16.msra.mxu0 %v1107
        %1134 = vmatprep.subr.bf16.mxu0 0
        %1135 = vmatpush1.bf16.msra.mxu0 %v1106
        %1136 = vmatprep.subr.bf16.mxu0 0
        %1137 = vmatpush1.bf16.msra.mxu0 %v1105
        %1138 = vmatprep.subr.bf16.mxu0 0
        %1139 = vmatpush1.bf16.msra.mxu0 %v1104
        %1140 = vmatprep.subr.bf16.mxu0 0
        %1141 = vmatpush2.bf16.msra.mxu0 0
        %1142 = vmatprep.subr.bf16.mxu0 0
        %1143 = vmatpush2.bf16.msra.mxu0 0
        %1144 = vmatprep.subr.bf16.mxu0 0
        %1145 = vmatpush2.bf16.msra.mxu0 0
        %1146 = vmatprep.subr.bf16.mxu0 0
        %1147 = vmatpush2.bf16.msra.mxu0 0
        %1148 = vmatprep.subr.bf16.mxu0 0
        %1149 = vmatpush2.bf16.msra.mxu0 0
        %1150 = vmatprep.subr.bf16.mxu0 0
        %1151 = vmatpush2.bf16.msra.mxu0 0
        %1152 = vmatprep.subr.bf16.mxu0 0
        %1153 = vmatpush2.bf16.msra.mxu0 0
        %1154 = vmatprep.subr.bf16.mxu0 0
        %1155 = vmatpush2.bf16.msra.mxu0 0
        %1156 = vmatprep.mubr.bf16.mxu0 0
        %1157 = vmatmul.mubr.bf16.gmra.mxu0 %v1113
        %v1158 = vpop.f32.mrf.mxu0
        %v1159 = vadd.f32 0.0, %v1158
        %v1160 = vpop.f32.mrf.mxu0
        %v1161 = vpop.f32.mrf.mxu0
        %v1162 = vadd.f32 0.0, %v1161
        %v1163 = vpop.f32.mrf.mxu0
        %1164 = vmatprep.mubr.bf16.mxu0 0
        %1165 = vmatmul.mubr.bf16.gmra.mxu0 %v1116
        %v1166 = vpop.f32.mrf.mxu0
        %v1167 = vadd.f32 0.0, %v1166
        %v1168 = vpop.f32.mrf.mxu0
        %v1169 = vpop.f32.mrf.mxu0
        %v1170 = vadd.f32 0.0, %v1169
        %v1171 = vpop.f32.mrf.mxu0
        %1172 = vmatprep.mubr.bf16.mxu0 0
        %1173 = vmatmul.mubr.bf16.gmra.mxu0 %v1119
        %v1174 = vpop.f32.mrf.mxu0
        %v1175 = vadd.f32 0.0, %v1174
        %v1176 = vpop.f32.mrf.mxu0
        %v1177 = vpop.f32.mrf.mxu0
        %v1178 = vadd.f32 0.0, %v1177
        %v1179 = vpop.f32.mrf.mxu0
        %1180 = vmatprep.mubr.bf16.mxu0 0
        %1181 = vmatmul.mubr.bf16.gmra.mxu0 %v1122
        %v1182 = vpop.f32.mrf.mxu0
        %v1183 = vadd.f32 0.0, %v1182
        %v1184 = vpop.f32.mrf.mxu0
        %v1185 = vpop.f32.mrf.mxu0
        %v1186 = vadd.f32 0.0, %v1185
        %v1187 = vpop.f32.mrf.mxu0
        %1188 = vdwg.mxu0
        %v1197 = vunpack.c.l.b16 %v1072
        %v1198 = vunpack.c.l.b16 %v1073
        %v1199 = vunpack.c.l.b16 %v1074
        %v1200 = vunpack.c.l.b16 %v1075
        %v1201 = vunpack.c.l.b16 %v1076
        %v1202 = vunpack.c.l.b16 %v1077
        %v1203 = vunpack.c.l.b16 %v1078
        %v1204 = vunpack.c.l.b16 %v1079
        %v1205 = vpack.c.b16 %v1198, %v1197
        %v1206 = vpack.c.b16 %v1200, %v1199
        %v1207 = vpack.c.b16 %v1202, %v1201
        %v1208 = vpack.c.b16 %v1204, %v1203
        %v1214 = vsel %vm233, %v1056, 0
        %v1217 = vsel %vm233, %v1057, 0
        %v1220 = vsel %vm233, %v1058, 0
        %v1223 = vsel %vm233, %v1059, 0
        %1225 = vmatprep.subr.bf16.mxu0 0
        %1226 = vmatpush1.bf16.msra.mxu0 0
        %1227 = vmatprep.subr.bf16.mxu0 0
        %1228 = vmatpush1.bf16.msra.mxu0 0
        %1229 = vmatprep.subr.bf16.mxu0 0
        %1230 = vmatpush1.bf16.msra.mxu0 0
        %1231 = vmatprep.subr.bf16.mxu0 0
        %1232 = vmatpush1.bf16.msra.mxu0 0
        %1233 = vmatprep.subr.bf16.mxu0 0
        %1234 = vmatpush1.bf16.msra.mxu0 %v1208
        %1235 = vmatprep.subr.bf16.mxu0 0
        %1236 = vmatpush1.bf16.msra.mxu0 %v1207
        %1237 = vmatprep.subr.bf16.mxu0 0
        %1238 = vmatpush1.bf16.msra.mxu0 %v1206
        %1239 = vmatprep.subr.bf16.mxu0 0
        %1240 = vmatpush1.bf16.msra.mxu0 %v1205
        %1241 = vmatprep.subr.bf16.mxu0 0
        %1242 = vmatpush2.bf16.msra.mxu0 0
        %1243 = vmatprep.subr.bf16.mxu0 0
        %1244 = vmatpush2.bf16.msra.mxu0 0
        %1245 = vmatprep.subr.bf16.mxu0 0
        %1246 = vmatpush2.bf16.msra.mxu0 0
        %1247 = vmatprep.subr.bf16.mxu0 0
        %1248 = vmatpush2.bf16.msra.mxu0 0
        %1249 = vmatprep.subr.bf16.mxu0 0
        %1250 = vmatpush2.bf16.msra.mxu0 0
        %1251 = vmatprep.subr.bf16.mxu0 0
        %1252 = vmatpush2.bf16.msra.mxu0 0
        %1253 = vmatprep.subr.bf16.mxu0 0
        %1254 = vmatpush2.bf16.msra.mxu0 0
        %1255 = vmatprep.subr.bf16.mxu0 0
        %1256 = vmatpush2.bf16.msra.mxu0 0
        %1257 = vmatprep.mubr.bf16.mxu0 0
        %1258 = vmatmul.mubr.bf16.gmra.mxu0 %v1214
        %v1259 = vpop.f32.mrf.mxu0
        %v1260 = vadd.f32 %v1159, %v1259
        %v1261 = vpop.f32.mrf.mxu0
        %v1262 = vpop.f32.mrf.mxu0
        %v1263 = vadd.f32 %v1162, %v1262
        %v1264 = vpop.f32.mrf.mxu0
        %1265 = vmatprep.mubr.bf16.mxu0 0
        %1266 = vmatmul.mubr.bf16.gmra.mxu0 %v1217
        %v1267 = vpop.f32.mrf.mxu0
        %v1268 = vadd.f32 %v1167, %v1267
        %v1269 = vpop.f32.mrf.mxu0
        %v1270 = vpop.f32.mrf.mxu0
        %v1271 = vadd.f32 %v1170, %v1270
        %v1272 = vpop.f32.mrf.mxu0
        %1273 = vmatprep.mubr.bf16.mxu0 0
        %1274 = vmatmul.mubr.bf16.gmra.mxu0 %v1220
        %v1275 = vpop.f32.mrf.mxu0
        %v1276 = vadd.f32 %v1175, %v1275
        %v1277 = vpop.f32.mrf.mxu0
        %v1278 = vpop.f32.mrf.mxu0
        %v1279 = vadd.f32 %v1178, %v1278
        %v1280 = vpop.f32.mrf.mxu0
        %1281 = vmatprep.mubr.bf16.mxu0 0
        %1282 = vmatmul.mubr.bf16.gmra.mxu0 %v1223
        %v1283 = vpop.f32.mrf.mxu0
        %v1284 = vadd.f32 %v1183, %v1283
        %v1285 = vpop.f32.mrf.mxu0
        %v1286 = vpop.f32.mrf.mxu0
        %v1287 = vadd.f32 %v1186, %v1286
        %v1288 = vpop.f32.mrf.mxu0
        %1289 = vdwg.mxu0
        %v1290 = vld [vmem:[%s1 + $0x10] sm:$0xf]
        %v1291 = vld [vmem:[%s1 + $0x14] sm:$0xf]
        %v1292 = vld [vmem:[%s1 + $0x18] sm:$0xf]
        %v1293 = vld [vmem:[%s1 + $0x1c] sm:$0xf]
        %v1294 = vld [vmem:[%s1 + $0x20] sm:$0xf]
        %v1295 = vld [vmem:[%s1 + $0x24] sm:$0xf]
        %v1296 = vld [vmem:[%s1 + $0x28] sm:$0xf]
        %v1297 = vld [vmem:[%s1 + $0x2c] sm:$0xf]
        %v1298 = vld [vmem:[%s1 + $0x30] sm:$0xf]
        %v1299 = vld [vmem:[%s1 + $0x34] sm:$0xf]
        %v1300 = vld [vmem:[%s1 + $0x38] sm:$0xf]
        %v1301 = vld [vmem:[%s1 + $0x3c] sm:$0xf]
        %v1302 = vld [vmem:[%s1 + $0x40] sm:$0xf]
        %v1303 = vld [vmem:[%s1 + $0x44] sm:$0xf]
        %v1304 = vld [vmem:[%s1 + $0x48] sm:$0xf]
        %v1305 = vld [vmem:[%s1 + $0x4c] sm:$0xf]
        %v1314 = vunpack.c.l.b16 %v1298
        %v1315 = vunpack.c.l.b16 %v1299
        %v1316 = vunpack.c.l.b16 %v1300
        %v1317 = vunpack.c.l.b16 %v1301
        %v1318 = vunpack.c.l.b16 %v1302
        %v1319 = vunpack.c.l.b16 %v1303
        %v1320 = vunpack.c.l.b16 %v1304
        %v1321 = vunpack.c.l.b16 %v1305
        %v1322 = vpack.c.b16 %v1315, %v1314
        %v1323 = vpack.c.b16 %v1317, %v1316
        %v1324 = vpack.c.b16 %v1319, %v1318
        %v1325 = vpack.c.b16 %v1321, %v1320
        %1330 = vmatprep.subr.bf16.mxu0 0
        %1331 = vmatpush1.bf16.msra.mxu0 0
        %1332 = vmatprep.subr.bf16.mxu0 0
        %1333 = vmatpush1.bf16.msra.mxu0 0
        %1334 = vmatprep.subr.bf16.mxu0 0
        %1335 = vmatpush1.bf16.msra.mxu0 0
        %1336 = vmatprep.subr.bf16.mxu0 0
        %1337 = vmatpush1.bf16.msra.mxu0 0
        %1338 = vmatprep.subr.bf16.mxu0 0
        %1339 = vmatpush1.bf16.msra.mxu0 %v1325
        %1340 = vmatprep.subr.bf16.mxu0 0
        %1341 = vmatpush1.bf16.msra.mxu0 %v1324
        %1342 = vmatprep.subr.bf16.mxu0 0
        %1343 = vmatpush1.bf16.msra.mxu0 %v1323
        %1344 = vmatprep.subr.bf16.mxu0 0
        %1345 = vmatpush1.bf16.msra.mxu0 %v1322
        %1346 = vmatprep.subr.bf16.mxu0 0
        %1347 = vmatpush2.bf16.msra.mxu0 0
        %1348 = vmatprep.subr.bf16.mxu0 0
        %1349 = vmatpush2.bf16.msra.mxu0 0
        %1350 = vmatprep.subr.bf16.mxu0 0
        %1351 = vmatpush2.bf16.msra.mxu0 0
        %1352 = vmatprep.subr.bf16.mxu0 0
        %1353 = vmatpush2.bf16.msra.mxu0 0
        %1354 = vmatprep.subr.bf16.mxu0 0
        %1355 = vmatpush2.bf16.msra.mxu0 0
        %1356 = vmatprep.subr.bf16.mxu0 0
        %1357 = vmatpush2.bf16.msra.mxu0 0
        %1358 = vmatprep.subr.bf16.mxu0 0
        %1359 = vmatpush2.bf16.msra.mxu0 0
        %1360 = vmatprep.subr.bf16.mxu0 0
        %1361 = vmatpush2.bf16.msra.mxu0 0
        %1362 = vmatprep.mubr.bf16.mxu0 0
        %1363 = vmatmul.mubr.bf16.gmra.mxu0 %v1113
        %v1364 = vpop.f32.mrf.mxu0
        %v1365 = vadd.f32 0.0, %v1364
        %v1366 = vpop.f32.mrf.mxu0
        %v1367 = vpop.f32.mrf.mxu0
        %v1368 = vadd.f32 0.0, %v1367
        %v1369 = vpop.f32.mrf.mxu0
        %1370 = vmatprep.mubr.bf16.mxu0 0
        %1371 = vmatmul.mubr.bf16.gmra.mxu0 %v1116
        %v1372 = vpop.f32.mrf.mxu0
        %v1373 = vadd.f32 0.0, %v1372
        %v1374 = vpop.f32.mrf.mxu0
        %v1375 = vpop.f32.mrf.mxu0
        %v1376 = vadd.f32 0.0, %v1375
        %v1377 = vpop.f32.mrf.mxu0
        %1378 = vmatprep.mubr.bf16.mxu0 0
        %1379 = vmatmul.mubr.bf16.gmra.mxu0 %v1119
        %v1380 = vpop.f32.mrf.mxu0
        %v1381 = vadd.f32 0.0, %v1380
        %v1382 = vpop.f32.mrf.mxu0
        %v1383 = vpop.f32.mrf.mxu0
        %v1384 = vadd.f32 0.0, %v1383
        %v1385 = vpop.f32.mrf.mxu0
        %1386 = vmatprep.mubr.bf16.mxu0 0
        %1387 = vmatmul.mubr.bf16.gmra.mxu0 %v1122
        %v1388 = vpop.f32.mrf.mxu0
        %v1389 = vadd.f32 0.0, %v1388
        %v1390 = vpop.f32.mrf.mxu0
        %v1391 = vpop.f32.mrf.mxu0
        %v1392 = vadd.f32 0.0, %v1391
        %v1393 = vpop.f32.mrf.mxu0
        %1394 = vdwg.mxu0
        %v1403 = vunpack.c.l.b16 %v1290
        %v1404 = vunpack.c.l.b16 %v1291
        %v1405 = vunpack.c.l.b16 %v1292
        %v1406 = vunpack.c.l.b16 %v1293
        %v1407 = vunpack.c.l.b16 %v1294
        %v1408 = vunpack.c.l.b16 %v1295
        %v1409 = vunpack.c.l.b16 %v1296
        %v1410 = vunpack.c.l.b16 %v1297
        %v1411 = vpack.c.b16 %v1404, %v1403
        %v1412 = vpack.c.b16 %v1406, %v1405
        %v1413 = vpack.c.b16 %v1408, %v1407
        %v1414 = vpack.c.b16 %v1410, %v1409
        %1419 = vmatprep.subr.bf16.mxu0 0
        %1420 = vmatpush1.bf16.msra.mxu0 0
        %1421 = vmatprep.subr.bf16.mxu0 0
        %1422 = vmatpush1.bf16.msra.mxu0 0
        %1423 = vmatprep.subr.bf16.mxu0 0
        %1424 = vmatpush1.bf16.msra.mxu0 0
        %1425 = vmatprep.subr.bf16.mxu0 0
        %1426 = vmatpush1.bf16.msra.mxu0 0
        %1427 = vmatprep.subr.bf16.mxu0 0
        %1428 = vmatpush1.bf16.msra.mxu0 %v1414
        %1429 = vmatprep.subr.bf16.mxu0 0
        %1430 = vmatpush1.bf16.msra.mxu0 %v1413
        %1431 = vmatprep.subr.bf16.mxu0 0
        %1432 = vmatpush1.bf16.msra.mxu0 %v1412
        %1433 = vmatprep.subr.bf16.mxu0 0
        %1434 = vmatpush1.bf16.msra.mxu0 %v1411
        %1435 = vmatprep.subr.bf16.mxu0 0
        %1436 = vmatpush2.bf16.msra.mxu0 0
        %1437 = vmatprep.subr.bf16.mxu0 0
        %1438 = vmatpush2.bf16.msra.mxu0 0
        %1439 = vmatprep.subr.bf16.mxu0 0
        %1440 = vmatpush2.bf16.msra.mxu0 0
        %1441 = vmatprep.subr.bf16.mxu0 0
        %1442 = vmatpush2.bf16.msra.mxu0 0
        %1443 = vmatprep.subr.bf16.mxu0 0
        %1444 = vmatpush2.bf16.msra.mxu0 0
        %1445 = vmatprep.subr.bf16.mxu0 0
        %1446 = vmatpush2.bf16.msra.mxu0 0
        %1447 = vmatprep.subr.bf16.mxu0 0
        %1448 = vmatpush2.bf16.msra.mxu0 0
        %1449 = vmatprep.subr.bf16.mxu0 0
        %1450 = vmatpush2.bf16.msra.mxu0 0
        %1451 = vmatprep.mubr.bf16.mxu0 0
        %1452 = vmatmul.mubr.bf16.gmra.mxu0 %v1214
        %v1453 = vpop.f32.mrf.mxu0
        %v1454 = vadd.f32 %v1365, %v1453
        %v1455 = vpop.f32.mrf.mxu0
        %v1456 = vpop.f32.mrf.mxu0
        %v1457 = vadd.f32 %v1368, %v1456
        %v1458 = vpop.f32.mrf.mxu0
        %1459 = vmatprep.mubr.bf16.mxu0 0
        %1460 = vmatmul.mubr.bf16.gmra.mxu0 %v1217
        %v1461 = vpop.f32.mrf.mxu0
        %v1462 = vadd.f32 %v1373, %v1461
        %v1463 = vpop.f32.mrf.mxu0
        %v1464 = vpop.f32.mrf.mxu0
        %v1465 = vadd.f32 %v1376, %v1464
        %v1466 = vpop.f32.mrf.mxu0
        %1467 = vmatprep.mubr.bf16.mxu0 0
        %1468 = vmatmul.mubr.bf16.gmra.mxu0 %v1220
        %v1469 = vpop.f32.mrf.mxu0
        %v1470 = vadd.f32 %v1381, %v1469
        %v1471 = vpop.f32.mrf.mxu0
        %v1472 = vpop.f32.mrf.mxu0
        %v1473 = vadd.f32 %v1384, %v1472
        %v1474 = vpop.f32.mrf.mxu0
        %1475 = vmatprep.mubr.bf16.mxu0 0
        %1476 = vmatmul.mubr.bf16.gmra.mxu0 %v1223
        %v1477 = vpop.f32.mrf.mxu0
        %v1478 = vadd.f32 %v1389, %v1477
        %v1479 = vpop.f32.mrf.mxu0
        %v1480 = vpop.f32.mrf.mxu0
        %v1481 = vadd.f32 %v1392, %v1480
        %v1482 = vpop.f32.mrf.mxu0
        %1483 = vdwg.mxu0
        %v1484 = vmax.f32 %v1260, %v1454
        %v1485 = vmax.f32 %v1263, %v1457
        %v1486 = vmax.f32 %v1268, %v1462
        %v1487 = vmax.f32 %v1271, %v1465
        %v1488 = vmax.f32 %v1276, %v1470
        %v1489 = vmax.f32 %v1279, %v1473
        %v1490 = vmax.f32 %v1284, %v1478
        %v1491 = vmax.f32 %v1287, %v1481
        %v1492 = vld [vmem:[%s1 + $0x8] sm:$0xf]
        %v1493 = vld [vmem:[%s1 + $0xc] sm:$0xf]
        %v1494 = vld [vmem:[%s1 + $0x10] sm:$0xf]
        %v1495 = vld [vmem:[%s1 + $0x14] sm:$0xf]
        %v1496 = vld [vmem:[%s1 + $0x18] sm:$0xf]
        %v1497 = vld [vmem:[%s1 + $0x1c] sm:$0xf]
        %v1498 = vld [vmem:[%s1 + $0x20] sm:$0xf]
        %v1499 = vld [vmem:[%s1 + $0x24] sm:$0xf]
        %v1500 = vld [vmem:[%s1 + $0x28] sm:$0xf]
        %v1501 = vld [vmem:[%s1 + $0x2c] sm:$0xf]
        %v1502 = vld [vmem:[%s1 + $0x30] sm:$0xf]
        %v1503 = vld [vmem:[%s1 + $0x34] sm:$0xf]
        %v1504 = vld [vmem:[%s1 + $0x38] sm:$0xf]
        %v1505 = vld [vmem:[%s1 + $0x3c] sm:$0xf]
        %v1506 = vld [vmem:[%s1 + $0x40] sm:$0xf]
        %v1507 = vld [vmem:[%s1 + $0x44] sm:$0xf]
        %v1516 = vunpack.c.l.b16 %v1500
        %v1517 = vunpack.c.l.b16 %v1501
        %v1518 = vunpack.c.l.b16 %v1502
        %v1519 = vunpack.c.l.b16 %v1503
        %v1520 = vunpack.c.l.b16 %v1504
        %v1521 = vunpack.c.l.b16 %v1505
        %v1522 = vunpack.c.l.b16 %v1506
        %v1523 = vunpack.c.l.b16 %v1507
        %v1524 = vpack.c.b16 %v1517, %v1516
        %v1525 = vpack.c.b16 %v1519, %v1518
        %v1526 = vpack.c.b16 %v1521, %v1520
        %v1527 = vpack.c.b16 %v1523, %v1522
        %1532 = vmatprep.subr.bf16.mxu0 0
        %1533 = vmatpush1.bf16.msra.mxu0 0
        %1534 = vmatprep.subr.bf16.mxu0 0
        %1535 = vmatpush1.bf16.msra.mxu0 0
        %1536 = vmatprep.subr.bf16.mxu0 0
        %1537 = vmatpush1.bf16.msra.mxu0 0
        %1538 = vmatprep.subr.bf16.mxu0 0
        %1539 = vmatpush1.bf16.msra.mxu0 0
        %1540 = vmatprep.subr.bf16.mxu0 0
        %1541 = vmatpush1.bf16.msra.mxu0 %v1527
        %1542 = vmatprep.subr.bf16.mxu0 0
        %1543 = vmatpush1.bf16.msra.mxu0 %v1526
        %1544 = vmatprep.subr.bf16.mxu0 0
        %1545 = vmatpush1.bf16.msra.mxu0 %v1525
        %1546 = vmatprep.subr.bf16.mxu0 0
        %1547 = vmatpush1.bf16.msra.mxu0 %v1524
        %1548 = vmatprep.subr.bf16.mxu0 0
        %1549 = vmatpush2.bf16.msra.mxu0 0
        %1550 = vmatprep.subr.bf16.mxu0 0
        %1551 = vmatpush2.bf16.msra.mxu0 0
        %1552 = vmatprep.subr.bf16.mxu0 0
        %1553 = vmatpush2.bf16.msra.mxu0 0
        %1554 = vmatprep.subr.bf16.mxu0 0
        %1555 = vmatpush2.bf16.msra.mxu0 0
        %1556 = vmatprep.subr.bf16.mxu0 0
        %1557 = vmatpush2.bf16.msra.mxu0 0
        %1558 = vmatprep.subr.bf16.mxu0 0
        %1559 = vmatpush2.bf16.msra.mxu0 0
        %1560 = vmatprep.subr.bf16.mxu0 0
        %1561 = vmatpush2.bf16.msra.mxu0 0
        %1562 = vmatprep.subr.bf16.mxu0 0
        %1563 = vmatpush2.bf16.msra.mxu0 0
        %1564 = vmatprep.mubr.bf16.mxu0 0
        %1565 = vmatmul.mubr.bf16.gmra.mxu0 %v1113
        %v1566 = vpop.f32.mrf.mxu0
        %v1567 = vadd.f32 0.0, %v1566
        %v1568 = vpop.f32.mrf.mxu0
        %v1569 = vpop.f32.mrf.mxu0
        %v1570 = vadd.f32 0.0, %v1569
        %v1571 = vpop.f32.mrf.mxu0
        %1572 = vmatprep.mubr.bf16.mxu0 0
        %1573 = vmatmul.mubr.bf16.gmra.mxu0 %v1116
        %v1574 = vpop.f32.mrf.mxu0
        %v1575 = vadd.f32 0.0, %v1574
        %v1576 = vpop.f32.mrf.mxu0
        %v1577 = vpop.f32.mrf.mxu0
        %v1578 = vadd.f32 0.0, %v1577
        %v1579 = vpop.f32.mrf.mxu0
        %1580 = vmatprep.mubr.bf16.mxu0 0
        %1581 = vmatmul.mubr.bf16.gmra.mxu0 %v1119
        %v1582 = vpop.f32.mrf.mxu0
        %v1583 = vadd.f32 0.0, %v1582
        %v1584 = vpop.f32.mrf.mxu0
        %v1585 = vpop.f32.mrf.mxu0
        %v1586 = vadd.f32 0.0, %v1585
        %v1587 = vpop.f32.mrf.mxu0
        %1588 = vmatprep.mubr.bf16.mxu0 0
        %1589 = vmatmul.mubr.bf16.gmra.mxu0 %v1122
        %v1590 = vpop.f32.mrf.mxu0
        %v1591 = vadd.f32 0.0, %v1590
        %v1592 = vpop.f32.mrf.mxu0
        %v1593 = vpop.f32.mrf.mxu0
        %v1594 = vadd.f32 0.0, %v1593
        %v1595 = vpop.f32.mrf.mxu0
        %1596 = vdwg.mxu0
        %v1605 = vunpack.c.l.b16 %v1492
        %v1606 = vunpack.c.l.b16 %v1493
        %v1607 = vunpack.c.l.b16 %v1494
        %v1608 = vunpack.c.l.b16 %v1495
        %v1609 = vunpack.c.l.b16 %v1496
        %v1610 = vunpack.c.l.b16 %v1497
        %v1611 = vunpack.c.l.b16 %v1498
        %v1612 = vunpack.c.l.b16 %v1499
        %v1613 = vpack.c.b16 %v1606, %v1605
        %v1614 = vpack.c.b16 %v1608, %v1607
        %v1615 = vpack.c.b16 %v1610, %v1609
        %v1616 = vpack.c.b16 %v1612, %v1611
        %1621 = vmatprep.subr.bf16.mxu0 0
        %1622 = vmatpush1.bf16.msra.mxu0 0
        %1623 = vmatprep.subr.bf16.mxu0 0
        %1624 = vmatpush1.bf16.msra.mxu0 0
        %1625 = vmatprep.subr.bf16.mxu0 0
        %1626 = vmatpush1.bf16.msra.mxu0 0
        %1627 = vmatprep.subr.bf16.mxu0 0
        %1628 = vmatpush1.bf16.msra.mxu0 0
        %1629 = vmatprep.subr.bf16.mxu0 0
        %1630 = vmatpush1.bf16.msra.mxu0 %v1616
        %1631 = vmatprep.subr.bf16.mxu0 0
        %1632 = vmatpush1.bf16.msra.mxu0 %v1615
        %1633 = vmatprep.subr.bf16.mxu0 0
        %1634 = vmatpush1.bf16.msra.mxu0 %v1614
        %1635 = vmatprep.subr.bf16.mxu0 0
        %1636 = vmatpush1.bf16.msra.mxu0 %v1613
        %1637 = vmatprep.subr.bf16.mxu0 0
        %1638 = vmatpush2.bf16.msra.mxu0 0
        %1639 = vmatprep.subr.bf16.mxu0 0
        %1640 = vmatpush2.bf16.msra.mxu0 0
        %1641 = vmatprep.subr.bf16.mxu0 0
        %1642 = vmatpush2.bf16.msra.mxu0 0
        %1643 = vmatprep.subr.bf16.mxu0 0
        %1644 = vmatpush2.bf16.msra.mxu0 0
        %1645 = vmatprep.subr.bf16.mxu0 0
        %1646 = vmatpush2.bf16.msra.mxu0 0
        %1647 = vmatprep.subr.bf16.mxu0 0
        %1648 = vmatpush2.bf16.msra.mxu0 0
        %1649 = vmatprep.subr.bf16.mxu0 0
        %1650 = vmatpush2.bf16.msra.mxu0 0
        %1651 = vmatprep.subr.bf16.mxu0 0
        %1652 = vmatpush2.bf16.msra.mxu0 0
        %1653 = vmatprep.mubr.bf16.mxu0 0
        %1654 = vmatmul.mubr.bf16.gmra.mxu0 %v1214
        %v1655 = vpop.f32.mrf.mxu0
        %v1656 = vadd.f32 %v1567, %v1655
        %v1657 = vpop.f32.mrf.mxu0
        %v1658 = vpop.f32.mrf.mxu0
        %v1659 = vadd.f32 %v1570, %v1658
        %v1660 = vpop.f32.mrf.mxu0
        %1661 = vmatprep.mubr.bf16.mxu0 0
        %1662 = vmatmul.mubr.bf16.gmra.mxu0 %v1217
        %v1663 = vpop.f32.mrf.mxu0
        %v1664 = vadd.f32 %v1575, %v1663
        %v1665 = vpop.f32.mrf.mxu0
        %v1666 = vpop.f32.mrf.mxu0
        %v1667 = vadd.f32 %v1578, %v1666
        %v1668 = vpop.f32.mrf.mxu0
        %1669 = vmatprep.mubr.bf16.mxu0 0
        %1670 = vmatmul.mubr.bf16.gmra.mxu0 %v1220
        %v1671 = vpop.f32.mrf.mxu0
        %v1672 = vadd.f32 %v1583, %v1671
        %v1673 = vpop.f32.mrf.mxu0
        %v1674 = vpop.f32.mrf.mxu0
        %v1675 = vadd.f32 %v1586, %v1674
        %v1676 = vpop.f32.mrf.mxu0
        %1677 = vmatprep.mubr.bf16.mxu0 0
        %1678 = vmatmul.mubr.bf16.gmra.mxu0 %v1223
        %v1679 = vpop.f32.mrf.mxu0
        %v1680 = vadd.f32 %v1591, %v1679
        %v1681 = vpop.f32.mrf.mxu0
        %v1682 = vpop.f32.mrf.mxu0
        %v1683 = vadd.f32 %v1594, %v1682
        %v1684 = vpop.f32.mrf.mxu0
        %1685 = vdwg.mxu0
        %v1686 = vmax.f32 %v1484, %v1656
        %v1687 = vmax.f32 %v1485, %v1659
        %v1688 = vmax.f32 %v1486, %v1664
        %v1689 = vmax.f32 %v1487, %v1667
        %v1690 = vmax.f32 %v1488, %v1672
        %v1691 = vmax.f32 %v1489, %v1675
        %v1692 = vmax.f32 %v1490, %v1680
        %v1693 = vmax.f32 %v1491, %v1683
        %v1694 = vld [vmem:[%s1] sm:$0xf]
        %v1695 = vld [vmem:[%s1 + $0x4] sm:$0xf]
        %v1696 = vld [vmem:[%s1 + $0x8] sm:$0xf]
        %v1697 = vld [vmem:[%s1 + $0xc] sm:$0xf]
        %v1698 = vld [vmem:[%s1 + $0x10] sm:$0xf]
        %v1699 = vld [vmem:[%s1 + $0x14] sm:$0xf]
        %v1700 = vld [vmem:[%s1 + $0x18] sm:$0xf]
        %v1701 = vld [vmem:[%s1 + $0x1c] sm:$0xf]
        %v1702 = vld [vmem:[%s1 + $0x20] sm:$0xf]
        %v1703 = vld [vmem:[%s1 + $0x24] sm:$0xf]
        %v1704 = vld [vmem:[%s1 + $0x28] sm:$0xf]
        %v1705 = vld [vmem:[%s1 + $0x2c] sm:$0xf]
        %v1706 = vld [vmem:[%s1 + $0x30] sm:$0xf]
        %v1707 = vld [vmem:[%s1 + $0x34] sm:$0xf]
        %v1708 = vld [vmem:[%s1 + $0x38] sm:$0xf]
        %v1709 = vld [vmem:[%s1 + $0x3c] sm:$0xf]
        %v1718 = vunpack.c.l.b16 %v1702
        %v1719 = vunpack.c.l.b16 %v1703
        %v1720 = vunpack.c.l.b16 %v1704
        %v1721 = vunpack.c.l.b16 %v1705
        %v1722 = vunpack.c.l.b16 %v1706
        %v1723 = vunpack.c.l.b16 %v1707
        %v1724 = vunpack.c.l.b16 %v1708
        %v1725 = vunpack.c.l.b16 %v1709
        %v1726 = vpack.c.b16 %v1719, %v1718
        %v1727 = vpack.c.b16 %v1721, %v1720
        %v1728 = vpack.c.b16 %v1723, %v1722
        %v1729 = vpack.c.b16 %v1725, %v1724
        %1734 = vmatprep.subr.bf16.mxu0 0
        %1735 = vmatpush1.bf16.msra.mxu0 0
        %1736 = vmatprep.subr.bf16.mxu0 0
        %1737 = vmatpush1.bf16.msra.mxu0 0
        %1738 = vmatprep.subr.bf16.mxu0 0
        %1739 = vmatpush1.bf16.msra.mxu0 0
        %1740 = vmatprep.subr.bf16.mxu0 0
        %1741 = vmatpush1.bf16.msra.mxu0 0
        %1742 = vmatprep.subr.bf16.mxu0 0
        %1743 = vmatpush1.bf16.msra.mxu0 %v1729
        %1744 = vmatprep.subr.bf16.mxu0 0
        %1745 = vmatpush1.bf16.msra.mxu0 %v1728
        %1746 = vmatprep.subr.bf16.mxu0 0
        %1747 = vmatpush1.bf16.msra.mxu0 %v1727
        %1748 = vmatprep.subr.bf16.mxu0 0
        %1749 = vmatpush1.bf16.msra.mxu0 %v1726
        %1750 = vmatprep.subr.bf16.mxu0 0
        %1751 = vmatpush2.bf16.msra.mxu0 0
        %1752 = vmatprep.subr.bf16.mxu0 0
        %1753 = vmatpush2.bf16.msra.mxu0 0
        %1754 = vmatprep.subr.bf16.mxu0 0
        %1755 = vmatpush2.bf16.msra.mxu0 0
        %1756 = vmatprep.subr.bf16.mxu0 0
        %1757 = vmatpush2.bf16.msra.mxu0 0
        %1758 = vmatprep.subr.bf16.mxu0 0
        %1759 = vmatpush2.bf16.msra.mxu0 0
        %1760 = vmatprep.subr.bf16.mxu0 0
        %1761 = vmatpush2.bf16.msra.mxu0 0
        %1762 = vmatprep.subr.bf16.mxu0 0
        %1763 = vmatpush2.bf16.msra.mxu0 0
        %1764 = vmatprep.subr.bf16.mxu0 0
        %1765 = vmatpush2.bf16.msra.mxu0 0
        %1766 = vmatprep.mubr.bf16.mxu0 0
        %1767 = vmatmul.mubr.bf16.gmra.mxu0 %v1113
        %v1768 = vpop.f32.mrf.mxu0
        %v1769 = vadd.f32 0.0, %v1768
        %v1770 = vpop.f32.mrf.mxu0
        %v1771 = vpop.f32.mrf.mxu0
        %v1772 = vadd.f32 0.0, %v1771
        %v1773 = vpop.f32.mrf.mxu0
        %1774 = vmatprep.mubr.bf16.mxu0 0
        %1775 = vmatmul.mubr.bf16.gmra.mxu0 %v1116
        %v1776 = vpop.f32.mrf.mxu0
        %v1777 = vadd.f32 0.0, %v1776
        %v1778 = vpop.f32.mrf.mxu0
        %v1779 = vpop.f32.mrf.mxu0
        %v1780 = vadd.f32 0.0, %v1779
        %v1781 = vpop.f32.mrf.mxu0
        %1782 = vmatprep.mubr.bf16.mxu0 0
        %1783 = vmatmul.mubr.bf16.gmra.mxu0 %v1119
        %v1784 = vpop.f32.mrf.mxu0
        %v1785 = vadd.f32 0.0, %v1784
        %v1786 = vpop.f32.mrf.mxu0
        %v1787 = vpop.f32.mrf.mxu0
        %v1788 = vadd.f32 0.0, %v1787
        %v1789 = vpop.f32.mrf.mxu0
        %1790 = vmatprep.mubr.bf16.mxu0 0
        %1791 = vmatmul.mubr.bf16.gmra.mxu0 %v1122
        %v1792 = vpop.f32.mrf.mxu0
        %v1793 = vadd.f32 0.0, %v1792
        %v1794 = vpop.f32.mrf.mxu0
        %v1795 = vpop.f32.mrf.mxu0
        %v1796 = vadd.f32 0.0, %v1795
        %v1797 = vpop.f32.mrf.mxu0
        %1798 = vdwg.mxu0
        %v1807 = vunpack.c.l.b16 %v1694
        %v1808 = vunpack.c.l.b16 %v1695
        %v1809 = vunpack.c.l.b16 %v1696
        %v1810 = vunpack.c.l.b16 %v1697
        %v1811 = vunpack.c.l.b16 %v1698
        %v1812 = vunpack.c.l.b16 %v1699
        %v1813 = vunpack.c.l.b16 %v1700
        %v1814 = vunpack.c.l.b16 %v1701
        %v1815 = vpack.c.b16 %v1808, %v1807
        %v1816 = vpack.c.b16 %v1810, %v1809
        %v1817 = vpack.c.b16 %v1812, %v1811
        %v1818 = vpack.c.b16 %v1814, %v1813
        %1823 = vmatprep.subr.bf16.mxu0 0
        %1824 = vmatpush1.bf16.msra.mxu0 0
        %1825 = vmatprep.subr.bf16.mxu0 0
        %1826 = vmatpush1.bf16.msra.mxu0 0
        %1827 = vmatprep.subr.bf16.mxu0 0
        %1828 = vmatpush1.bf16.msra.mxu0 0
        %1829 = vmatprep.subr.bf16.mxu0 0
        %1830 = vmatpush1.bf16.msra.mxu0 0
        %1831 = vmatprep.subr.bf16.mxu0 0
        %1832 = vmatpush1.bf16.msra.mxu0 %v1818
        %1833 = vmatprep.subr.bf16.mxu0 0
        %1834 = vmatpush1.bf16.msra.mxu0 %v1817
        %1835 = vmatprep.subr.bf16.mxu0 0
        %1836 = vmatpush1.bf16.msra.mxu0 %v1816
        %1837 = vmatprep.subr.bf16.mxu0 0
        %1838 = vmatpush1.bf16.msra.mxu0 %v1815
        %1839 = vmatprep.subr.bf16.mxu0 0
        %1840 = vmatpush2.bf16.msra.mxu0 0
        %1841 = vmatprep.subr.bf16.mxu0 0
        %1842 = vmatpush2.bf16.msra.mxu0 0
        %1843 = vmatprep.subr.bf16.mxu0 0
        %1844 = vmatpush2.bf16.msra.mxu0 0
        %1845 = vmatprep.subr.bf16.mxu0 0
        %1846 = vmatpush2.bf16.msra.mxu0 0
        %1847 = vmatprep.subr.bf16.mxu0 0
        %1848 = vmatpush2.bf16.msra.mxu0 0
        %1849 = vmatprep.subr.bf16.mxu0 0
        %1850 = vmatpush2.bf16.msra.mxu0 0
        %1851 = vmatprep.subr.bf16.mxu0 0
        %1852 = vmatpush2.bf16.msra.mxu0 0
        %1853 = vmatprep.subr.bf16.mxu0 0
        %1854 = vmatpush2.bf16.msra.mxu0 0
        %1855 = vmatprep.mubr.bf16.mxu0 0
        %1856 = vmatmul.mubr.bf16.gmra.mxu0 %v1214
        %v1857 = vpop.f32.mrf.mxu0
        %v1858 = vadd.f32 %v1769, %v1857
        %v1859 = vpop.f32.mrf.mxu0
        %v1860 = vpop.f32.mrf.mxu0
        %v1861 = vadd.f32 %v1772, %v1860
        %v1862 = vpop.f32.mrf.mxu0
        %1863 = vmatprep.mubr.bf16.mxu0 0
        %1864 = vmatmul.mubr.bf16.gmra.mxu0 %v1217
        %v1865 = vpop.f32.mrf.mxu0
        %v1866 = vadd.f32 %v1777, %v1865
        %v1867 = vpop.f32.mrf.mxu0
        %v1868 = vpop.f32.mrf.mxu0
        %v1869 = vadd.f32 %v1780, %v1868
        %v1870 = vpop.f32.mrf.mxu0
        %1871 = vmatprep.mubr.bf16.mxu0 0
        %1872 = vmatmul.mubr.bf16.gmra.mxu0 %v1220
        %v1873 = vpop.f32.mrf.mxu0
        %v1874 = vadd.f32 %v1785, %v1873
        %v1875 = vpop.f32.mrf.mxu0
        %v1876 = vpop.f32.mrf.mxu0
        %v1877 = vadd.f32 %v1788, %v1876
        %v1878 = vpop.f32.mrf.mxu0
        %1879 = vmatprep.mubr.bf16.mxu0 0
        %1880 = vmatmul.mubr.bf16.gmra.mxu0 %v1223
        %v1881 = vpop.f32.mrf.mxu0
        %v1882 = vadd.f32 %v1793, %v1881
        %v1883 = vpop.f32.mrf.mxu0
        %v1884 = vpop.f32.mrf.mxu0
        %v1885 = vadd.f32 %v1796, %v1884
        %v1886 = vpop.f32.mrf.mxu0
        %1887 = vdwg.mxu0
        %v1888 = vmax.f32 %v1686, %v1858
        %v1889 = vmax.f32 %v1687, %v1861
        %v1890 = vmax.f32 %v1688, %v1866
        %v1891 = vmax.f32 %v1689, %v1869
        %v1892 = vmax.f32 %v1690, %v1874
        %v1893 = vmax.f32 %v1691, %v1877
        %v1894 = vmax.f32 %v1692, %v1882
        %v1895 = vmax.f32 %v1693, %v1885
        %v1896 = vld [vmem:[%s2] sm:$0x1]
        %v1897 = vlaneseq
        %v1898 = vshrl.u32 %v1897, 7
        %v1899 = vsub.s32 0, %v1898
        %v1900 = vrot.slane %v1896, %v1899
        %v1901 = vadd.f32 %v1888, %v1900
        %v1902 = vadd.f32 %v1889, %v1900
        %v1903 = vadd.f32 %v1890, %v1900
        %v1904 = vadd.f32 %v1891, %v1900
        %v1905 = vadd.f32 %v1892, %v1900
        %v1906 = vadd.f32 %v1893, %v1900
        %v1907 = vadd.f32 %v1894, %v1900
        %v1908 = vadd.f32 %v1895, %v1900
        %v1909 = vmax.f32 %v1901, 0.0
        %v1910 = vmax.f32 %v1902, 0.0
        %v1911 = vmax.f32 %v1903, 0.0
        %v1912 = vmax.f32 %v1904, 0.0
        %v1913 = vmax.f32 %v1905, 0.0
        %v1914 = vmax.f32 %v1906, 0.0
        %v1915 = vmax.f32 %v1907, 0.0
        %v1916 = vmax.f32 %v1908, 0.0
        %1917 = vst.msk [vmem:[#allocation2 + $0x40] sm:$0xff] %vm1039, %v1909
        %1918 = vst.msk [vmem:[#allocation2 + $0x48] sm:$0xff] %vm1039, %v1910
        %1919 = vst.msk [vmem:[#allocation2 + $0x50] sm:$0xff] %vm1039, %v1911
        %1920 = vst.msk [vmem:[#allocation2 + $0x58] sm:$0xff] %vm1039, %v1912
        %1921 = vst.msk [vmem:[#allocation2 + $0x60] sm:$0xff] %vm1039, %v1913
        %1922 = vst.msk [vmem:[#allocation2 + $0x68] sm:$0xff] %vm1039, %v1914
        %1923 = vst.msk [vmem:[#allocation2 + $0x70] sm:$0xff] %vm1039, %v1915
        %vm1924 = vcmask 257024
        %1925 = vst.msk [vmem:[#allocation2 + $0x78] sm:$0xf] %vm1924, %v1916
        %v1926 = vld [vmem:[%s1 + $0x58] sm:$0xf]
        %v1927 = vld [vmem:[%s1 + $0x5c] sm:$0xf]
        %v1928 = vld [vmem:[%s1 + $0x60] sm:$0xf]
        %v1929 = vld [vmem:[%s1 + $0x64] sm:$0xf]
        %v1930 = vld [vmem:[%s1 + $0x68] sm:$0xf]
        %v1931 = vld [vmem:[%s1 + $0x6c] sm:$0xf]
        %v1932 = vld [vmem:[%s1 + $0x70] sm:$0xf]
        %v1933 = vld [vmem:[%s1 + $0x74] sm:$0xf]
        %v1934 = vld [vmem:[%s1 + $0x78] sm:$0xf]
        %v1935 = vld [vmem:[%s1 + $0x7c] sm:$0xf]
        %v1936 = vld [vmem:[%s1 + $0x80] sm:$0xf]
        %v1937 = vld [vmem:[%s1 + $0x84] sm:$0xf]
        %v1938 = vld [vmem:[#allocation2] ss:$4 sm:$0xff]
        %s1939 = scalar_lea.vmem [#allocation2], 32
        %v1940 = vld [vmem:[%s1939] ss:$4 sm:$0xff]
        %s1941 = scalar_lea.vmem [#allocation2], 64
        %v1942 = vld [vmem:[%s1941] ss:$4 sm:$0xff]
        %s1943 = scalar_lea.vmem [#allocation2], 96
        %v1944 = vld [vmem:[%s1943] ss:$4 sm:$0x3f]
        %v1945 = vpack.c.bf16 %v1940, %v1938
        %v1946 = vpack.c.bf16 %v1944, %v1942
        %s1947 = scalar_lea.vmem [#allocation2], 1
        %v1948 = vld [vmem:[%s1947] ss:$4 sm:$0xff]
        %s1949 = scalar_lea.vmem [#allocation2], 33
        %v1950 = vld [vmem:[%s1949] ss:$4 sm:$0xff]
        %s1951 = scalar_lea.vmem [#allocation2], 65
        %v1952 = vld [vmem:[%s1951] ss:$4 sm:$0xff]
        %s1953 = scalar_lea.vmem [#allocation2], 97
        %v1954 = vld [vmem:[%s1953] ss:$4 sm:$0x3f]
        %v1955 = vpack.c.bf16 %v1950, %v1948
        %v1956 = vpack.c.bf16 %v1954, %v1952
        %v1961 = vunpack.c.l.b16 %v1930
        %v1962 = vunpack.c.l.b16 %v1931
        %v1963 = vunpack.c.l.b16 %v1932
        %v1964 = vunpack.c.l.b16 %v1933
        %v1965 = vpack.c.b16 %v1962, %v1961
        %v1966 = vpack.c.b16 %v1964, %v1963
        %v1970 = vsel %vm1039, %v1955, 0
        %v1973 = vsel %vm1039, %v1956, 0
        %1975 = vmatprep.subr.bf16.mxu0 0
        %1976 = vmatpush1.bf16.msra.mxu0 0
        %1977 = vmatprep.subr.bf16.mxu0 0
        %1978 = vmatpush1.bf16.msra.mxu0 0
        %1979 = vmatprep.subr.bf16.mxu0 0
        %1980 = vmatpush1.bf16.msra.mxu0 0
        %1981 = vmatprep.subr.bf16.mxu0 0
        %1982 = vmatpush1.bf16.msra.mxu0 0
        %1983 = vmatprep.subr.bf16.mxu0 0
        %1984 = vmatpush1.bf16.msra.mxu0 0
        %1985 = vmatprep.subr.bf16.mxu0 0
        %1986 = vmatpush1.bf16.msra.mxu0 0
        %1987 = vmatprep.subr.bf16.mxu0 0
        %1988 = vmatpush1.bf16.msra.mxu0 %v1966
        %1989 = vmatprep.subr.bf16.mxu0 0
        %1990 = vmatpush1.bf16.msra.mxu0 %v1965
        %1991 = vmatprep.subr.bf16.mxu0 0
        %1992 = vmatpush2.bf16.msra.mxu0 0
        %1993 = vmatprep.subr.bf16.mxu0 0
        %1994 = vmatpush2.bf16.msra.mxu0 0
        %1995 = vmatprep.subr.bf16.mxu0 0
        %1996 = vmatpush2.bf16.msra.mxu0 0
        %1997 = vmatprep.subr.bf16.mxu0 0
        %1998 = vmatpush2.bf16.msra.mxu0 0
        %1999 = vmatprep.subr.bf16.mxu0 0
        %2000 = vmatpush2.bf16.msra.mxu0 0
        %2001 = vmatprep.subr.bf16.mxu0 0
        %2002 = vmatpush2.bf16.msra.mxu0 0
        %2003 = vmatprep.subr.bf16.mxu0 0
        %2004 = vmatpush2.bf16.msra.mxu0 0
        %2005 = vmatprep.subr.bf16.mxu0 0
        %2006 = vmatpush2.bf16.msra.mxu0 0
        %2007 = vmatprep.mubr.bf16.mxu0 0
        %2008 = vmatmul.mubr.bf16.gmra.mxu0 %v1970
        %v2009 = vpop.f32.mrf.mxu0
        %v2010 = vadd.f32 0.0, %v2009
        %v2011 = vpop.f32.mrf.mxu0
        %v2012 = vpop.f32.mrf.mxu0
        %v2013 = vadd.f32 0.0, %v2012
        %v2014 = vpop.f32.mrf.mxu0
        %2015 = vmatprep.mubr.bf16.mxu0 0
        %2016 = vmatmul.mubr.bf16.gmra.mxu0 %v1973
        %v2017 = vpop.f32.mrf.mxu0
        %v2018 = vadd.f32 0.0, %v2017
        %v2019 = vpop.f32.mrf.mxu0
        %v2020 = vpop.f32.mrf.mxu0
        %v2021 = vadd.f32 0.0, %v2020
        %v2022 = vpop.f32.mrf.mxu0
        %2023 = vdwg.mxu0
        %v2028 = vunpack.c.l.b16 %v1926
        %v2029 = vunpack.c.l.b16 %v1927
        %v2030 = vunpack.c.l.b16 %v1928
        %v2031 = vunpack.c.l.b16 %v1929
        %v2032 = vpack.c.b16 %v2029, %v2028
        %v2033 = vpack.c.b16 %v2031, %v2030
        %v2037 = vsel %vm1039, %v1945, 0
        %v2040 = vsel %vm1039, %v1946, 0
        %2042 = vmatprep.subr.bf16.mxu0 0
        %2043 = vmatpush1.bf16.msra.mxu0 0
        %2044 = vmatprep.subr.bf16.mxu0 0
        %2045 = vmatpush1.bf16.msra.mxu0 0
        %2046 = vmatprep.subr.bf16.mxu0 0
        %2047 = vmatpush1.bf16.msra.mxu0 0
        %2048 = vmatprep.subr.bf16.mxu0 0
        %2049 = vmatpush1.bf16.msra.mxu0 0
        %2050 = vmatprep.subr.bf16.mxu0 0
        %2051 = vmatpush1.bf16.msra.mxu0 0
        %2052 = vmatprep.subr.bf16.mxu0 0
        %2053 = vmatpush1.bf16.msra.mxu0 0
        %2054 = vmatprep.subr.bf16.mxu0 0
        %2055 = vmatpush1.bf16.msra.mxu0 %v2033
        %2056 = vmatprep.subr.bf16.mxu0 0
        %2057 = vmatpush1.bf16.msra.mxu0 %v2032
        %2058 = vmatprep.subr.bf16.mxu0 0
        %2059 = vmatpush2.bf16.msra.mxu0 0
        %2060 = vmatprep.subr.bf16.mxu0 0
        %2061 = vmatpush2.bf16.msra.mxu0 0
        %2062 = vmatprep.subr.bf16.mxu0 0
        %2063 = vmatpush2.bf16.msra.mxu0 0
        %2064 = vmatprep.subr.bf16.mxu0 0
        %2065 = vmatpush2.bf16.msra.mxu0 0
        %2066 = vmatprep.subr.bf16.mxu0 0
        %2067 = vmatpush2.bf16.msra.mxu0 0
        %2068 = vmatprep.subr.bf16.mxu0 0
        %2069 = vmatpush2.bf16.msra.mxu0 0
        %2070 = vmatprep.subr.bf16.mxu0 0
        %2071 = vmatpush2.bf16.msra.mxu0 0
        %2072 = vmatprep.subr.bf16.mxu0 0
        %2073 = vmatpush2.bf16.msra.mxu0 0
        %2074 = vmatprep.mubr.bf16.mxu0 0
        %2075 = vmatmul.mubr.bf16.gmra.mxu0 %v2037
        %v2076 = vpop.f32.mrf.mxu0
        %v2077 = vadd.f32 %v2010, %v2076
        %v2078 = vpop.f32.mrf.mxu0
        %v2079 = vpop.f32.mrf.mxu0
        %v2080 = vadd.f32 %v2013, %v2079
        %v2081 = vpop.f32.mrf.mxu0
        %2082 = vmatprep.mubr.bf16.mxu0 0
        %2083 = vmatmul.mubr.bf16.gmra.mxu0 %v2040
        %v2084 = vpop.f32.mrf.mxu0
        %v2085 = vadd.f32 %v2018, %v2084
        %v2086 = vpop.f32.mrf.mxu0
        %v2087 = vpop.f32.mrf.mxu0
        %v2088 = vadd.f32 %v2021, %v2087
        %v2089 = vpop.f32.mrf.mxu0
        %2090 = vdwg.mxu0
        %s2091 = scalar_lea.vmem [#allocation2], 2
        %v2092 = vld [vmem:[%s2091] ss:$4 sm:$0xff]
        %s2093 = scalar_lea.vmem [#allocation2], 34
        %v2094 = vld [vmem:[%s2093] ss:$4 sm:$0xff]
        %s2095 = scalar_lea.vmem [#allocation2], 66
        %v2096 = vld [vmem:[%s2095] ss:$4 sm:$0xff]
        %s2097 = scalar_lea.vmem [#allocation2], 98
        %v2098 = vld [vmem:[%s2097] ss:$4 sm:$0x3f]
        %v2099 = vpack.c.bf16 %v2094, %v2092
        %v2100 = vpack.c.bf16 %v2098, %v2096
        %v2105 = vunpack.c.l.b16 %v1934
        %v2106 = vunpack.c.l.b16 %v1935
        %v2107 = vunpack.c.l.b16 %v1936
        %v2108 = vunpack.c.l.b16 %v1937
        %v2109 = vpack.c.b16 %v2106, %v2105
        %v2110 = vpack.c.b16 %v2108, %v2107
        %v2114 = vsel %vm1039, %v2099, 0
        %v2117 = vsel %vm1039, %v2100, 0
        %2119 = vmatprep.subr.bf16.mxu0 0
        %2120 = vmatpush1.bf16.msra.mxu0 0
        %2121 = vmatprep.subr.bf16.mxu0 0
        %2122 = vmatpush1.bf16.msra.mxu0 0
        %2123 = vmatprep.subr.bf16.mxu0 0
        %2124 = vmatpush1.bf16.msra.mxu0 0
        %2125 = vmatprep.subr.bf16.mxu0 0
        %2126 = vmatpush1.bf16.msra.mxu0 0
        %2127 = vmatprep.subr.bf16.mxu0 0
        %2128 = vmatpush1.bf16.msra.mxu0 0
        %2129 = vmatprep.subr.bf16.mxu0 0
        %2130 = vmatpush1.bf16.msra.mxu0 0
        %2131 = vmatprep.subr.bf16.mxu0 0
        %2132 = vmatpush1.bf16.msra.mxu0 %v2110
        %2133 = vmatprep.subr.bf16.mxu0 0
        %2134 = vmatpush1.bf16.msra.mxu0 %v2109
        %2135 = vmatprep.subr.bf16.mxu0 0
        %2136 = vmatpush2.bf16.msra.mxu0 0
        %2137 = vmatprep.subr.bf16.mxu0 0
        %2138 = vmatpush2.bf16.msra.mxu0 0
        %2139 = vmatprep.subr.bf16.mxu0 0
        %2140 = vmatpush2.bf16.msra.mxu0 0
        %2141 = vmatprep.subr.bf16.mxu0 0
        %2142 = vmatpush2.bf16.msra.mxu0 0
        %2143 = vmatprep.subr.bf16.mxu0 0
        %2144 = vmatpush2.bf16.msra.mxu0 0
        %2145 = vmatprep.subr.bf16.mxu0 0
        %2146 = vmatpush2.bf16.msra.mxu0 0
        %2147 = vmatprep.subr.bf16.mxu0 0
        %2148 = vmatpush2.bf16.msra.mxu0 0
        %2149 = vmatprep.subr.bf16.mxu0 0
        %2150 = vmatpush2.bf16.msra.mxu0 0
        %2151 = vmatprep.mubr.bf16.mxu0 0
        %2152 = vmatmul.mubr.bf16.gmra.mxu0 %v2114
        %v2153 = vpop.f32.mrf.mxu0
        %v2154 = vadd.f32 0.0, %v2153
        %v2155 = vpop.f32.mrf.mxu0
        %v2156 = vpop.f32.mrf.mxu0
        %v2157 = vadd.f32 0.0, %v2156
        %v2158 = vpop.f32.mrf.mxu0
        %2159 = vmatprep.mubr.bf16.mxu0 0
        %2160 = vmatmul.mubr.bf16.gmra.mxu0 %v2117
        %v2161 = vpop.f32.mrf.mxu0
        %v2162 = vadd.f32 0.0, %v2161
        %v2163 = vpop.f32.mrf.mxu0
        %v2164 = vpop.f32.mrf.mxu0
        %v2165 = vadd.f32 0.0, %v2164
        %v2166 = vpop.f32.mrf.mxu0
        %2167 = vdwg.mxu0
        %v2168 = vadd.f32 %v2077, %v2154
        %v2169 = vadd.f32 %v2080, %v2157
        %v2170 = vadd.f32 %v2085, %v2162
        %v2171 = vadd.f32 %v2088, %v2165
        %2172 = vmatprep.subr.bf16.mxu0 0
        %2173 = vmatpush1.bf16.msra.mxu0 0
        %2174 = vmatprep.subr.bf16.mxu0 0
        %2175 = vmatpush1.bf16.msra.mxu0 0
        %2176 = vmatprep.subr.bf16.mxu0 0
        %2177 = vmatpush1.bf16.msra.mxu0 0
        %2178 = vmatprep.subr.bf16.mxu0 0
        %2179 = vmatpush1.bf16.msra.mxu0 0
        %2180 = vmatprep.subr.bf16.mxu0 0
        %2181 = vmatpush1.bf16.msra.mxu0 0
        %2182 = vmatprep.subr.bf16.mxu0 0
        %2183 = vmatpush1.bf16.msra.mxu0 0
        %2184 = vmatprep.subr.bf16.mxu0 0
        %2185 = vmatpush1.bf16.msra.mxu0 %v1966
        %2186 = vmatprep.subr.bf16.mxu0 0
        %2187 = vmatpush1.bf16.msra.mxu0 %v1965
        %2188 = vmatprep.subr.bf16.mxu0 0
        %2189 = vmatpush2.bf16.msra.mxu0 0
        %2190 = vmatprep.subr.bf16.mxu0 0
        %2191 = vmatpush2.bf16.msra.mxu0 0
        %2192 = vmatprep.subr.bf16.mxu0 0
        %2193 = vmatpush2.bf16.msra.mxu0 0
        %2194 = vmatprep.subr.bf16.mxu0 0
        %2195 = vmatpush2.bf16.msra.mxu0 0
        %2196 = vmatprep.subr.bf16.mxu0 0
        %2197 = vmatpush2.bf16.msra.mxu0 0
        %2198 = vmatprep.subr.bf16.mxu0 0
        %2199 = vmatpush2.bf16.msra.mxu0 0
        %2200 = vmatprep.subr.bf16.mxu0 0
        %2201 = vmatpush2.bf16.msra.mxu0 0
        %2202 = vmatprep.subr.bf16.mxu0 0
        %2203 = vmatpush2.bf16.msra.mxu0 0
        %2204 = vmatprep.mubr.bf16.mxu0 0
        %2205 = vmatmul.mubr.bf16.gmra.mxu0 %v2114
        %v2206 = vpop.f32.mrf.mxu0
        %v2207 = vadd.f32 0.0, %v2206
        %v2208 = vpop.f32.mrf.mxu0
        %v2209 = vpop.f32.mrf.mxu0
        %v2210 = vadd.f32 0.0, %v2209
        %v2211 = vpop.f32.mrf.mxu0
        %2212 = vmatprep.mubr.bf16.mxu0 0
        %2213 = vmatmul.mubr.bf16.gmra.mxu0 %v2117
        %v2214 = vpop.f32.mrf.mxu0
        %v2215 = vadd.f32 0.0, %v2214
        %v2216 = vpop.f32.mrf.mxu0
        %v2217 = vpop.f32.mrf.mxu0
        %v2218 = vadd.f32 0.0, %v2217
        %v2219 = vpop.f32.mrf.mxu0
        %2220 = vdwg.mxu0
        %2221 = vmatprep.subr.bf16.mxu0 0
        %2222 = vmatpush1.bf16.msra.mxu0 0
        %2223 = vmatprep.subr.bf16.mxu0 0
        %2224 = vmatpush1.bf16.msra.mxu0 0
        %2225 = vmatprep.subr.bf16.mxu0 0
        %2226 = vmatpush1.bf16.msra.mxu0 0
        %2227 = vmatprep.subr.bf16.mxu0 0
        %2228 = vmatpush1.bf16.msra.mxu0 0
        %2229 = vmatprep.subr.bf16.mxu0 0
        %2230 = vmatpush1.bf16.msra.mxu0 0
        %2231 = vmatprep.subr.bf16.mxu0 0
        %2232 = vmatpush1.bf16.msra.mxu0 0
        %2233 = vmatprep.subr.bf16.mxu0 0
        %2234 = vmatpush1.bf16.msra.mxu0 %v2033
        %2235 = vmatprep.subr.bf16.mxu0 0
        %2236 = vmatpush1.bf16.msra.mxu0 %v2032
        %2237 = vmatprep.subr.bf16.mxu0 0
        %2238 = vmatpush2.bf16.msra.mxu0 0
        %2239 = vmatprep.subr.bf16.mxu0 0
        %2240 = vmatpush2.bf16.msra.mxu0 0
        %2241 = vmatprep.subr.bf16.mxu0 0
        %2242 = vmatpush2.bf16.msra.mxu0 0
        %2243 = vmatprep.subr.bf16.mxu0 0
        %2244 = vmatpush2.bf16.msra.mxu0 0
        %2245 = vmatprep.subr.bf16.mxu0 0
        %2246 = vmatpush2.bf16.msra.mxu0 0
        %2247 = vmatprep.subr.bf16.mxu0 0
        %2248 = vmatpush2.bf16.msra.mxu0 0
        %2249 = vmatprep.subr.bf16.mxu0 0
        %2250 = vmatpush2.bf16.msra.mxu0 0
        %2251 = vmatprep.subr.bf16.mxu0 0
        %2252 = vmatpush2.bf16.msra.mxu0 0
        %2253 = vmatprep.mubr.bf16.mxu0 0
        %2254 = vmatmul.mubr.bf16.gmra.mxu0 %v1970
        %v2255 = vpop.f32.mrf.mxu0
        %v2256 = vadd.f32 %v2207, %v2255
        %v2257 = vpop.f32.mrf.mxu0
        %v2258 = vpop.f32.mrf.mxu0
        %v2259 = vadd.f32 %v2210, %v2258
        %v2260 = vpop.f32.mrf.mxu0
        %2261 = vmatprep.mubr.bf16.mxu0 0
        %2262 = vmatmul.mubr.bf16.gmra.mxu0 %v1973
        %v2263 = vpop.f32.mrf.mxu0
        %v2264 = vadd.f32 %v2215, %v2263
        %v2265 = vpop.f32.mrf.mxu0
        %v2266 = vpop.f32.mrf.mxu0
        %v2267 = vadd.f32 %v2218, %v2266
        %v2268 = vpop.f32.mrf.mxu0
        %2269 = vdwg.mxu0
        %s2270 = scalar_lea.vmem [#allocation2], 3
        %v2271 = vld [vmem:[%s2270] ss:$4 sm:$0xff]
        %s2272 = scalar_lea.vmem [#allocation2], 35
        %v2273 = vld [vmem:[%s2272] ss:$4 sm:$0xff]
        %s2274 = scalar_lea.vmem [#allocation2], 67
        %v2275 = vld [vmem:[%s2274] ss:$4 sm:$0xff]
        %s2276 = scalar_lea.vmem [#allocation2], 99
        %v2277 = vld [vmem:[%s2276] ss:$4 sm:$0x3f]
        %v2278 = vpack.c.bf16 %v2273, %v2271
        %v2279 = vpack.c.bf16 %v2277, %v2275
        %v2281 = vsel %vm1039, %v2278, 0
        %v2284 = vsel %vm1039, %v2279, 0
        %2286 = vmatprep.subr.bf16.mxu0 0
        %2287 = vmatpush1.bf16.msra.mxu0 0
        %2288 = vmatprep.subr.bf16.mxu0 0
        %2289 = vmatpush1.bf16.msra.mxu0 0
        %2290 = vmatprep.subr.bf16.mxu0 0
        %2291 = vmatpush1.bf16.msra.mxu0 0
        %2292 = vmatprep.subr.bf16.mxu0 0
        %2293 = vmatpush1.bf16.msra.mxu0 0
        %2294 = vmatprep.subr.bf16.mxu0 0
        %2295 = vmatpush1.bf16.msra.mxu0 0
        %2296 = vmatprep.subr.bf16.mxu0 0
        %2297 = vmatpush1.bf16.msra.mxu0 0
        %2298 = vmatprep.subr.bf16.mxu0 0
        %2299 = vmatpush1.bf16.msra.mxu0 %v2110
        %2300 = vmatprep.subr.bf16.mxu0 0
        %2301 = vmatpush1.bf16.msra.mxu0 %v2109
        %2302 = vmatprep.subr.bf16.mxu0 0
        %2303 = vmatpush2.bf16.msra.mxu0 0
        %2304 = vmatprep.subr.bf16.mxu0 0
        %2305 = vmatpush2.bf16.msra.mxu0 0
        %2306 = vmatprep.subr.bf16.mxu0 0
        %2307 = vmatpush2.bf16.msra.mxu0 0
        %2308 = vmatprep.subr.bf16.mxu0 0
        %2309 = vmatpush2.bf16.msra.mxu0 0
        %2310 = vmatprep.subr.bf16.mxu0 0
        %2311 = vmatpush2.bf16.msra.mxu0 0
        %2312 = vmatprep.subr.bf16.mxu0 0
        %2313 = vmatpush2.bf16.msra.mxu0 0
        %2314 = vmatprep.subr.bf16.mxu0 0
        %2315 = vmatpush2.bf16.msra.mxu0 0
        %2316 = vmatprep.subr.bf16.mxu0 0
        %2317 = vmatpush2.bf16.msra.mxu0 0
        %2318 = vmatprep.mubr.bf16.mxu0 0
        %2319 = vmatmul.mubr.bf16.gmra.mxu0 %v2281
        %v2320 = vpop.f32.mrf.mxu0
        %v2321 = vadd.f32 0.0, %v2320
        %v2322 = vpop.f32.mrf.mxu0
        %v2323 = vpop.f32.mrf.mxu0
        %v2324 = vadd.f32 0.0, %v2323
        %v2325 = vpop.f32.mrf.mxu0
        %2326 = vmatprep.mubr.bf16.mxu0 0
        %2327 = vmatmul.mubr.bf16.gmra.mxu0 %v2284
        %v2328 = vpop.f32.mrf.mxu0
        %v2329 = vadd.f32 0.0, %v2328
        %v2330 = vpop.f32.mrf.mxu0
        %v2331 = vpop.f32.mrf.mxu0
        %v2332 = vadd.f32 0.0, %v2331
        %v2333 = vpop.f32.mrf.mxu0
        %2334 = vdwg.mxu0
        %v2335 = vadd.f32 %v2256, %v2321
        %v2336 = vadd.f32 %v2259, %v2324
        %v2337 = vadd.f32 %v2264, %v2329
        %v2338 = vadd.f32 %v2267, %v2332
        %v2339 = vmax.f32 %v2168, %v2335
        %v2340 = vmax.f32 %v2169, %v2336
        %v2341 = vmax.f32 %v2170, %v2337
        %v2342 = vmax.f32 %v2171, %v2338
        %2343 = vmatprep.subr.bf16.mxu0 0
        %2344 = vmatpush1.bf16.msra.mxu0 0
        %2345 = vmatprep.subr.bf16.mxu0 0
        %2346 = vmatpush1.bf16.msra.mxu0 0
        %2347 = vmatprep.subr.bf16.mxu0 0
        %2348 = vmatpush1.bf16.msra.mxu0 0
        %2349 = vmatprep.subr.bf16.mxu0 0
        %2350 = vmatpush1.bf16.msra.mxu0 0
        %2351 = vmatprep.subr.bf16.mxu0 0
        %2352 = vmatpush1.bf16.msra.mxu0 0
        %2353 = vmatprep.subr.bf16.mxu0 0
        %2354 = vmatpush1.bf16.msra.mxu0 0
        %2355 = vmatprep.subr.bf16.mxu0 0
        %2356 = vmatpush1.bf16.msra.mxu0 %v1966
        %2357 = vmatprep.subr.bf16.mxu0 0
        %2358 = vmatpush1.bf16.msra.mxu0 %v1965
        %2359 = vmatprep.subr.bf16.mxu0 0
        %2360 = vmatpush2.bf16.msra.mxu0 0
        %2361 = vmatprep.subr.bf16.mxu0 0
        %2362 = vmatpush2.bf16.msra.mxu0 0
        %2363 = vmatprep.subr.bf16.mxu0 0
        %2364 = vmatpush2.bf16.msra.mxu0 0
        %2365 = vmatprep.subr.bf16.mxu0 0
        %2366 = vmatpush2.bf16.msra.mxu0 0
        %2367 = vmatprep.subr.bf16.mxu0 0
        %2368 = vmatpush2.bf16.msra.mxu0 0
        %2369 = vmatprep.subr.bf16.mxu0 0
        %2370 = vmatpush2.bf16.msra.mxu0 0
        %2371 = vmatprep.subr.bf16.mxu0 0
        %2372 = vmatpush2.bf16.msra.mxu0 0
        %2373 = vmatprep.subr.bf16.mxu0 0
        %2374 = vmatpush2.bf16.msra.mxu0 0
        %2375 = vmatprep.mubr.bf16.mxu0 0
        %2376 = vmatmul.mubr.bf16.gmra.mxu0 %v2281
        %v2377 = vpop.f32.mrf.mxu0
        %v2378 = vadd.f32 0.0, %v2377
        %v2379 = vpop.f32.mrf.mxu0
        %v2380 = vpop.f32.mrf.mxu0
        %v2381 = vadd.f32 0.0, %v2380
        %v2382 = vpop.f32.mrf.mxu0
        %2383 = vmatprep.mubr.bf16.mxu0 0
        %2384 = vmatmul.mubr.bf16.gmra.mxu0 %v2284
        %v2385 = vpop.f32.mrf.mxu0
        %v2386 = vadd.f32 0.0, %v2385
        %v2387 = vpop.f32.mrf.mxu0
        %v2388 = vpop.f32.mrf.mxu0
        %v2389 = vadd.f32 0.0, %v2388
        %v2390 = vpop.f32.mrf.mxu0
        %2391 = vdwg.mxu0
        %2392 = vmatprep.subr.bf16.mxu0 0
        %2393 = vmatpush1.bf16.msra.mxu0 0
        %2394 = vmatprep.subr.bf16.mxu0 0
        %2395 = vmatpush1.bf16.msra.mxu0 0
        %2396 = vmatprep.subr.bf16.mxu0 0
        %2397 = vmatpush1.bf16.msra.mxu0 0
        %2398 = vmatprep.subr.bf16.mxu0 0
        %2399 = vmatpush1.bf16.msra.mxu0 0
        %2400 = vmatprep.subr.bf16.mxu0 0
        %2401 = vmatpush1.bf16.msra.mxu0 0
        %2402 = vmatprep.subr.bf16.mxu0 0
        %2403 = vmatpush1.bf16.msra.mxu0 0
        %2404 = vmatprep.subr.bf16.mxu0 0
        %2405 = vmatpush1.bf16.msra.mxu0 %v2033
        %2406 = vmatprep.subr.bf16.mxu0 0
        %2407 = vmatpush1.bf16.msra.mxu0 %v2032
        %2408 = vmatprep.subr.bf16.mxu0 0
        %2409 = vmatpush2.bf16.msra.mxu0 0
        %2410 = vmatprep.subr.bf16.mxu0 0
        %2411 = vmatpush2.bf16.msra.mxu0 0
        %2412 = vmatprep.subr.bf16.mxu0 0
        %2413 = vmatpush2.bf16.msra.mxu0 0
        %2414 = vmatprep.subr.bf16.mxu0 0
        %2415 = vmatpush2.bf16.msra.mxu0 0
        %2416 = vmatprep.subr.bf16.mxu0 0
        %2417 = vmatpush2.bf16.msra.mxu0 0
        %2418 = vmatprep.subr.bf16.mxu0 0
        %2419 = vmatpush2.bf16.msra.mxu0 0
        %2420 = vmatprep.subr.bf16.mxu0 0
        %2421 = vmatpush2.bf16.msra.mxu0 0
        %2422 = vmatprep.subr.bf16.mxu0 0
        %2423 = vmatpush2.bf16.msra.mxu0 0
        %2424 = vmatprep.mubr.bf16.mxu0 0
        %2425 = vmatmul.mubr.bf16.gmra.mxu0 %v2114
        %v2426 = vpop.f32.mrf.mxu0
        %v2427 = vadd.f32 %v2378, %v2426
        %v2428 = vpop.f32.mrf.mxu0
        %v2429 = vpop.f32.mrf.mxu0
        %v2430 = vadd.f32 %v2381, %v2429
        %v2431 = vpop.f32.mrf.mxu0
        %2432 = vmatprep.mubr.bf16.mxu0 0
        %2433 = vmatmul.mubr.bf16.gmra.mxu0 %v2117
        %v2434 = vpop.f32.mrf.mxu0
        %v2435 = vadd.f32 %v2386, %v2434
        %v2436 = vpop.f32.mrf.mxu0
        %v2437 = vpop.f32.mrf.mxu0
        %v2438 = vadd.f32 %v2389, %v2437
        %v2439 = vpop.f32.mrf.mxu0
        %2440 = vdwg.mxu0
        %s2441 = scalar_lea.vmem [#allocation2], 4
        %v2442 = vld [vmem:[%s2441] ss:$4 sm:$0xff]
        %s2443 = scalar_lea.vmem [#allocation2], 36
        %v2444 = vld [vmem:[%s2443] ss:$4 sm:$0xff]
        %s2445 = scalar_lea.vmem [#allocation2], 68
        %v2446 = vld [vmem:[%s2445] ss:$4 sm:$0xff]
        %s2447 = scalar_lea.vmem [#allocation2], 100
        %v2448 = vld [vmem:[%s2447] ss:$4 sm:$0x3f]
        %v2449 = vpack.c.bf16 %v2444, %v2442
        %v2450 = vpack.c.bf16 %v2448, %v2446
        %v2452 = vsel %vm1039, %v2449, 0
        %v2455 = vsel %vm1039, %v2450, 0
        %2457 = vmatprep.subr.bf16.mxu0 0
        %2458 = vmatpush1.bf16.msra.mxu0 0
        %2459 = vmatprep.subr.bf16.mxu0 0
        %2460 = vmatpush1.bf16.msra.mxu0 0
        %2461 = vmatprep.subr.bf16.mxu0 0
        %2462 = vmatpush1.bf16.msra.mxu0 0
        %2463 = vmatprep.subr.bf16.mxu0 0
        %2464 = vmatpush1.bf16.msra.mxu0 0
        %2465 = vmatprep.subr.bf16.mxu0 0
        %2466 = vmatpush1.bf16.msra.mxu0 0
        %2467 = vmatprep.subr.bf16.mxu0 0
        %2468 = vmatpush1.bf16.msra.mxu0 0
        %2469 = vmatprep.subr.bf16.mxu0 0
        %2470 = vmatpush1.bf16.msra.mxu0 %v2110
        %2471 = vmatprep.subr.bf16.mxu0 0
        %2472 = vmatpush1.bf16.msra.mxu0 %v2109
        %2473 = vmatprep.subr.bf16.mxu0 0
        %2474 = vmatpush2.bf16.msra.mxu0 0
        %2475 = vmatprep.subr.bf16.mxu0 0
        %2476 = vmatpush2.bf16.msra.mxu0 0
        %2477 = vmatprep.subr.bf16.mxu0 0
        %2478 = vmatpush2.bf16.msra.mxu0 0
        %2479 = vmatprep.subr.bf16.mxu0 0
        %2480 = vmatpush2.bf16.msra.mxu0 0
        %2481 = vmatprep.subr.bf16.mxu0 0
        %2482 = vmatpush2.bf16.msra.mxu0 0
        %2483 = vmatprep.subr.bf16.mxu0 0
        %2484 = vmatpush2.bf16.msra.mxu0 0
        %2485 = vmatprep.subr.bf16.mxu0 0
        %2486 = vmatpush2.bf16.msra.mxu0 0
        %2487 = vmatprep.subr.bf16.mxu0 0
        %2488 = vmatpush2.bf16.msra.mxu0 0
        %2489 = vmatprep.mubr.bf16.mxu0 0
        %2490 = vmatmul.mubr.bf16.gmra.mxu0 %v2452
        %v2491 = vpop.f32.mrf.mxu0
        %v2492 = vadd.f32 0.0, %v2491
        %v2493 = vpop.f32.mrf.mxu0
        %v2494 = vpop.f32.mrf.mxu0
        %v2495 = vadd.f32 0.0, %v2494
        %v2496 = vpop.f32.mrf.mxu0
        %2497 = vmatprep.mubr.bf16.mxu0 0
        %2498 = vmatmul.mubr.bf16.gmra.mxu0 %v2455
        %v2499 = vpop.f32.mrf.mxu0
        %v2500 = vadd.f32 0.0, %v2499
        %v2501 = vpop.f32.mrf.mxu0
        %v2502 = vpop.f32.mrf.mxu0
        %v2503 = vadd.f32 0.0, %v2502
        %v2504 = vpop.f32.mrf.mxu0
        %2505 = vdwg.mxu0
        %v2506 = vadd.f32 %v2427, %v2492
        %v2507 = vadd.f32 %v2430, %v2495
        %v2508 = vadd.f32 %v2435, %v2500
        %v2509 = vadd.f32 %v2438, %v2503
        %v2510 = vmax.f32 %v2339, %v2506
        %v2511 = vmax.f32 %v2340, %v2507
        %v2512 = vmax.f32 %v2341, %v2508
        %v2513 = vmax.f32 %v2342, %v2509
        %2514 = vmatprep.subr.bf16.mxu0 0
        %2515 = vmatpush1.bf16.msra.mxu0 0
        %2516 = vmatprep.subr.bf16.mxu0 0
        %2517 = vmatpush1.bf16.msra.mxu0 0
        %2518 = vmatprep.subr.bf16.mxu0 0
        %2519 = vmatpush1.bf16.msra.mxu0 0
        %2520 = vmatprep.subr.bf16.mxu0 0
        %2521 = vmatpush1.bf16.msra.mxu0 0
        %2522 = vmatprep.subr.bf16.mxu0 0
        %2523 = vmatpush1.bf16.msra.mxu0 0
        %2524 = vmatprep.subr.bf16.mxu0 0
        %2525 = vmatpush1.bf16.msra.mxu0 0
        %2526 = vmatprep.subr.bf16.mxu0 0
        %2527 = vmatpush1.bf16.msra.mxu0 %v1966
        %2528 = vmatprep.subr.bf16.mxu0 0
        %2529 = vmatpush1.bf16.msra.mxu0 %v1965
        %2530 = vmatprep.subr.bf16.mxu0 0
        %2531 = vmatpush2.bf16.msra.mxu0 0
        %2532 = vmatprep.subr.bf16.mxu0 0
        %2533 = vmatpush2.bf16.msra.mxu0 0
        %2534 = vmatprep.subr.bf16.mxu0 0
        %2535 = vmatpush2.bf16.msra.mxu0 0
        %2536 = vmatprep.subr.bf16.mxu0 0
        %2537 = vmatpush2.bf16.msra.mxu0 0
        %2538 = vmatprep.subr.bf16.mxu0 0
        %2539 = vmatpush2.bf16.msra.mxu0 0
        %2540 = vmatprep.subr.bf16.mxu0 0
        %2541 = vmatpush2.bf16.msra.mxu0 0
        %2542 = vmatprep.subr.bf16.mxu0 0
        %2543 = vmatpush2.bf16.msra.mxu0 0
        %2544 = vmatprep.subr.bf16.mxu0 0
        %2545 = vmatpush2.bf16.msra.mxu0 0
        %2546 = vmatprep.mubr.bf16.mxu0 0
        %2547 = vmatmul.mubr.bf16.gmra.mxu0 %v2452
        %v2548 = vpop.f32.mrf.mxu0
        %v2549 = vadd.f32 0.0, %v2548
        %v2550 = vpop.f32.mrf.mxu0
        %v2551 = vpop.f32.mrf.mxu0
        %v2552 = vadd.f32 0.0, %v2551
        %v2553 = vpop.f32.mrf.mxu0
        %2554 = vmatprep.mubr.bf16.mxu0 0
        %2555 = vmatmul.mubr.bf16.gmra.mxu0 %v2455
        %v2556 = vpop.f32.mrf.mxu0
        %v2557 = vadd.f32 0.0, %v2556
        %v2558 = vpop.f32.mrf.mxu0
        %v2559 = vpop.f32.mrf.mxu0
        %v2560 = vadd.f32 0.0, %v2559
        %v2561 = vpop.f32.mrf.mxu0
        %2562 = vdwg.mxu0
        %2563 = vmatprep.subr.bf16.mxu0 0
        %2564 = vmatpush1.bf16.msra.mxu0 0
        %2565 = vmatprep.subr.bf16.mxu0 0
        %2566 = vmatpush1.bf16.msra.mxu0 0
        %2567 = vmatprep.subr.bf16.mxu0 0
        %2568 = vmatpush1.bf16.msra.mxu0 0
        %2569 = vmatprep.subr.bf16.mxu0 0
        %2570 = vmatpush1.bf16.msra.mxu0 0
        %2571 = vmatprep.subr.bf16.mxu0 0
        %2572 = vmatpush1.bf16.msra.mxu0 0
        %2573 = vmatprep.subr.bf16.mxu0 0
        %2574 = vmatpush1.bf16.msra.mxu0 0
        %2575 = vmatprep.subr.bf16.mxu0 0
        %2576 = vmatpush1.bf16.msra.mxu0 %v2033
        %2577 = vmatprep.subr.bf16.mxu0 0
        %2578 = vmatpush1.bf16.msra.mxu0 %v2032
        %2579 = vmatprep.subr.bf16.mxu0 0
        %2580 = vmatpush2.bf16.msra.mxu0 0
        %2581 = vmatprep.subr.bf16.mxu0 0
        %2582 = vmatpush2.bf16.msra.mxu0 0
        %2583 = vmatprep.subr.bf16.mxu0 0
        %2584 = vmatpush2.bf16.msra.mxu0 0
        %2585 = vmatprep.subr.bf16.mxu0 0
        %2586 = vmatpush2.bf16.msra.mxu0 0
        %2587 = vmatprep.subr.bf16.mxu0 0
        %2588 = vmatpush2.bf16.msra.mxu0 0
        %2589 = vmatprep.subr.bf16.mxu0 0
        %2590 = vmatpush2.bf16.msra.mxu0 0
        %2591 = vmatprep.subr.bf16.mxu0 0
        %2592 = vmatpush2.bf16.msra.mxu0 0
        %2593 = vmatprep.subr.bf16.mxu0 0
        %2594 = vmatpush2.bf16.msra.mxu0 0
        %2595 = vmatprep.mubr.bf16.mxu0 0
        %2596 = vmatmul.mubr.bf16.gmra.mxu0 %v2281
        %v2597 = vpop.f32.mrf.mxu0
        %v2598 = vadd.f32 %v2549, %v2597
        %v2599 = vpop.f32.mrf.mxu0
        %v2600 = vpop.f32.mrf.mxu0
        %v2601 = vadd.f32 %v2552, %v2600
        %v2602 = vpop.f32.mrf.mxu0
        %2603 = vmatprep.mubr.bf16.mxu0 0
        %2604 = vmatmul.mubr.bf16.gmra.mxu0 %v2284
        %v2605 = vpop.f32.mrf.mxu0
        %v2606 = vadd.f32 %v2557, %v2605
        %v2607 = vpop.f32.mrf.mxu0
        %v2608 = vpop.f32.mrf.mxu0
        %v2609 = vadd.f32 %v2560, %v2608
        %v2610 = vpop.f32.mrf.mxu0
        %2611 = vdwg.mxu0
        %s2612 = scalar_lea.vmem [#allocation2], 5
        %v2613 = vld [vmem:[%s2612] ss:$4 sm:$0xff]
        %s2614 = scalar_lea.vmem [#allocation2], 37
        %v2615 = vld [vmem:[%s2614] ss:$4 sm:$0xff]
        %s2616 = scalar_lea.vmem [#allocation2], 69
        %v2617 = vld [vmem:[%s2616] ss:$4 sm:$0xff]
        %s2618 = scalar_lea.vmem [#allocation2], 101
        %v2619 = vld [vmem:[%s2618] ss:$4 sm:$0x3f]
        %v2620 = vpack.c.bf16 %v2615, %v2613
        %v2621 = vpack.c.bf16 %v2619, %v2617
        %v2623 = vsel %vm1039, %v2620, 0
        %v2626 = vsel %vm1039, %v2621, 0
        %2628 = vmatprep.subr.bf16.mxu0 0
        %2629 = vmatpush1.bf16.msra.mxu0 0
        %2630 = vmatprep.subr.bf16.mxu0 0
        %2631 = vmatpush1.bf16.msra.mxu0 0
        %2632 = vmatprep.subr.bf16.mxu0 0
        %2633 = vmatpush1.bf16.msra.mxu0 0
        %2634 = vmatprep.subr.bf16.mxu0 0
        %2635 = vmatpush1.bf16.msra.mxu0 0
        %2636 = vmatprep.subr.bf16.mxu0 0
        %2637 = vmatpush1.bf16.msra.mxu0 0
        %2638 = vmatprep.subr.bf16.mxu0 0
        %2639 = vmatpush1.bf16.msra.mxu0 0
        %2640 = vmatprep.subr.bf16.mxu0 0
        %2641 = vmatpush1.bf16.msra.mxu0 %v2110
        %2642 = vmatprep.subr.bf16.mxu0 0
        %2643 = vmatpush1.bf16.msra.mxu0 %v2109
        %2644 = vmatprep.subr.bf16.mxu0 0
        %2645 = vmatpush2.bf16.msra.mxu0 0
        %2646 = vmatprep.subr.bf16.mxu0 0
        %2647 = vmatpush2.bf16.msra.mxu0 0
        %2648 = vmatprep.subr.bf16.mxu0 0
        %2649 = vmatpush2.bf16.msra.mxu0 0
        %2650 = vmatprep.subr.bf16.mxu0 0
        %2651 = vmatpush2.bf16.msra.mxu0 0
        %2652 = vmatprep.subr.bf16.mxu0 0
        %2653 = vmatpush2.bf16.msra.mxu0 0
        %2654 = vmatprep.subr.bf16.mxu0 0
        %2655 = vmatpush2.bf16.msra.mxu0 0
        %2656 = vmatprep.subr.bf16.mxu0 0
        %2657 = vmatpush2.bf16.msra.mxu0 0
        %2658 = vmatprep.subr.bf16.mxu0 0
        %2659 = vmatpush2.bf16.msra.mxu0 0
        %2660 = vmatprep.mubr.bf16.mxu0 0
        %2661 = vmatmul.mubr.bf16.gmra.mxu0 %v2623
        %v2662 = vpop.f32.mrf.mxu0
        %v2663 = vadd.f32 0.0, %v2662
        %v2664 = vpop.f32.mrf.mxu0
        %v2665 = vpop.f32.mrf.mxu0
        %v2666 = vadd.f32 0.0, %v2665
        %v2667 = vpop.f32.mrf.mxu0
        %2668 = vmatprep.mubr.bf16.mxu0 0
        %2669 = vmatmul.mubr.bf16.gmra.mxu0 %v2626
        %v2670 = vpop.f32.mrf.mxu0
        %v2671 = vadd.f32 0.0, %v2670
        %v2672 = vpop.f32.mrf.mxu0
        %v2673 = vpop.f32.mrf.mxu0
        %v2674 = vadd.f32 0.0, %v2673
        %v2675 = vpop.f32.mrf.mxu0
        %2676 = vdwg.mxu0
        %v2677 = vadd.f32 %v2598, %v2663
        %v2678 = vadd.f32 %v2601, %v2666
        %v2679 = vadd.f32 %v2606, %v2671
        %v2680 = vadd.f32 %v2609, %v2674
        %v2681 = vmax.f32 %v2510, %v2677
        %v2682 = vmax.f32 %v2511, %v2678
        %v2683 = vmax.f32 %v2512, %v2679
        %v2684 = vmax.f32 %v2513, %v2680
        %v2685 = vld [vmem:[%s2 + $0x1] sm:$0x1]
        %v2686 = vlaneseq
        %v2687 = vshrl.u32 %v2686, 7
        %v2688 = vsub.s32 0, %v2687
        %v2689 = vrot.slane %v2685, %v2688
        %v2690 = vadd.f32 %v2681, %v2689
        %v2691 = vadd.f32 %v2682, %v2689
        %v2692 = vadd.f32 %v2683, %v2689
        %v2693 = vadd.f32 %v2684, %v2689
        %v2694 = vmax.f32 %v2690, 0.0
        %v2695 = vmax.f32 %v2691, 0.0
        %v2696 = vmax.f32 %v2692, 0.0
        %v2697 = vmax.f32 %v2693, 0.0
        %2698 = vst.msk [vmem:[#allocation3] sm:$0xff] %vm1039, %v2694
        %2699 = vst.msk [vmem:[#allocation3 + $0x8] sm:$0xff] %vm1039, %v2695
        %2700 = vst.msk [vmem:[#allocation3 + $0x10] sm:$0xff] %vm1039, %v2696
        %vm2701 = vcmask 259072
        %2702 = vst.msk [vmem:[#allocation3 + $0x18] sm:$0x3f] %vm2701, %v2697
        %v2703 = vld [vmem:[%s1 + $0x88] sm:$0xf]
        %v2704 = vld [vmem:[%s1 + $0x8c] sm:$0xf]
        %v2705 = vld [vmem:[%s1 + $0x90] sm:$0xf]
        %v2706 = vld [vmem:[%s1 + $0x94] sm:$0xf]
        %v2707 = vld [vmem:[%s1 + $0x98] sm:$0xf]
        %v2708 = vld [vmem:[%s1 + $0x9c] sm:$0xf]
        %v2709 = vld [vmem:[%s1 + $0xa0] sm:$0xf]
        %v2710 = vld [vmem:[%s1 + $0xa4] sm:$0xf]
        %v2711 = vld [vmem:[%s1 + $0xa8] sm:$0xf]
        %v2712 = vld [vmem:[%s1 + $0xac] sm:$0xf]
        %v2713 = vld [vmem:[%s1 + $0xb0] sm:$0xf]
        %v2714 = vld [vmem:[%s1 + $0xb4] sm:$0xf]
        %v2715 = vld [vmem:[#allocation3] ss:$4 sm:$0x7f]
        %v2716 = vpack.c.bf16 %v2715, %v2715
        %s2717 = scalar_lea.vmem [#allocation3], 1
        %v2718 = vld [vmem:[%s2717] ss:$4 sm:$0x7f]
        %v2719 = vpack.c.bf16 %v2718, %v2718
        %v2724 = vunpack.c.l.b16 %v2707
        %v2725 = vunpack.c.l.b16 %v2708
        %v2726 = vunpack.c.l.b16 %v2709
        %v2727 = vunpack.c.l.b16 %v2710
        %v2728 = vpack.c.b16 %v2725, %v2724
        %v2729 = vpack.c.b16 %v2727, %v2726
        %v2733 = vsel %vm1039, %v2719, 0
        %2735 = vmatprep.subr.bf16.mxu0 0
        %2736 = vmatpush1.bf16.msra.mxu0 0
        %2737 = vmatprep.subr.bf16.mxu0 0
        %2738 = vmatpush1.bf16.msra.mxu0 0
        %2739 = vmatprep.subr.bf16.mxu0 0
        %2740 = vmatpush1.bf16.msra.mxu0 0
        %2741 = vmatprep.subr.bf16.mxu0 0
        %2742 = vmatpush1.bf16.msra.mxu0 0
        %2743 = vmatprep.subr.bf16.mxu0 0
        %2744 = vmatpush1.bf16.msra.mxu0 0
        %2745 = vmatprep.subr.bf16.mxu0 0
        %2746 = vmatpush1.bf16.msra.mxu0 0
        %2747 = vmatprep.subr.bf16.mxu0 0
        %2748 = vmatpush1.bf16.msra.mxu0 %v2729
        %2749 = vmatprep.subr.bf16.mxu0 0
        %2750 = vmatpush1.bf16.msra.mxu0 %v2728
        %2751 = vmatprep.subr.bf16.mxu0 0
        %2752 = vmatpush2.bf16.msra.mxu0 0
        %2753 = vmatprep.subr.bf16.mxu0 0
        %2754 = vmatpush2.bf16.msra.mxu0 0
        %2755 = vmatprep.subr.bf16.mxu0 0
        %2756 = vmatpush2.bf16.msra.mxu0 0
        %2757 = vmatprep.subr.bf16.mxu0 0
        %2758 = vmatpush2.bf16.msra.mxu0 0
        %2759 = vmatprep.subr.bf16.mxu0 0
        %2760 = vmatpush2.bf16.msra.mxu0 0
        %2761 = vmatprep.subr.bf16.mxu0 0
        %2762 = vmatpush2.bf16.msra.mxu0 0
        %2763 = vmatprep.subr.bf16.mxu0 0
        %2764 = vmatpush2.bf16.msra.mxu0 0
        %2765 = vmatprep.subr.bf16.mxu0 0
        %2766 = vmatpush2.bf16.msra.mxu0 0
        %2767 = vmatprep.mubr.bf16.mxu0 0
        %2768 = vmatmul.mubr.bf16.gmra.mxu0 %v2733
        %v2769 = vpop.f32.mrf.mxu0
        %v2770 = vadd.f32 0.0, %v2769
        %v2771 = vpop.f32.mrf.mxu0
        %v2772 = vpop.f32.mrf.mxu0
        %v2773 = vpop.f32.mrf.mxu0
        %2774 = vdwg.mxu0
        %v2779 = vunpack.c.l.b16 %v2703
        %v2780 = vunpack.c.l.b16 %v2704
        %v2781 = vunpack.c.l.b16 %v2705
        %v2782 = vunpack.c.l.b16 %v2706
        %v2783 = vpack.c.b16 %v2780, %v2779
        %v2784 = vpack.c.b16 %v2782, %v2781
        %v2788 = vsel %vm1039, %v2716, 0
        %2790 = vmatprep.subr.bf16.mxu0 0
        %2791 = vmatpush1.bf16.msra.mxu0 0
        %2792 = vmatprep.subr.bf16.mxu0 0
        %2793 = vmatpush1.bf16.msra.mxu0 0
        %2794 = vmatprep.subr.bf16.mxu0 0
        %2795 = vmatpush1.bf16.msra.mxu0 0
        %2796 = vmatprep.subr.bf16.mxu0 0
        %2797 = vmatpush1.bf16.msra.mxu0 0
        %2798 = vmatprep.subr.bf16.mxu0 0
        %2799 = vmatpush1.bf16.msra.mxu0 0
        %2800 = vmatprep.subr.bf16.mxu0 0
        %2801 = vmatpush1.bf16.msra.mxu0 0
        %2802 = vmatprep.subr.bf16.mxu0 0
        %2803 = vmatpush1.bf16.msra.mxu0 %v2784
        %2804 = vmatprep.subr.bf16.mxu0 0
        %2805 = vmatpush1.bf16.msra.mxu0 %v2783
        %2806 = vmatprep.subr.bf16.mxu0 0
        %2807 = vmatpush2.bf16.msra.mxu0 0
        %2808 = vmatprep.subr.bf16.mxu0 0
        %2809 = vmatpush2.bf16.msra.mxu0 0
        %2810 = vmatprep.subr.bf16.mxu0 0
        %2811 = vmatpush2.bf16.msra.mxu0 0
        %2812 = vmatprep.subr.bf16.mxu0 0
        %2813 = vmatpush2.bf16.msra.mxu0 0
        %2814 = vmatprep.subr.bf16.mxu0 0
        %2815 = vmatpush2.bf16.msra.mxu0 0
        %2816 = vmatprep.subr.bf16.mxu0 0
        %2817 = vmatpush2.bf16.msra.mxu0 0
        %2818 = vmatprep.subr.bf16.mxu0 0
        %2819 = vmatpush2.bf16.msra.mxu0 0
        %2820 = vmatprep.subr.bf16.mxu0 0
        %2821 = vmatpush2.bf16.msra.mxu0 0
        %2822 = vmatprep.mubr.bf16.mxu0 0
        %2823 = vmatmul.mubr.bf16.gmra.mxu0 %v2788
        %v2824 = vpop.f32.mrf.mxu0
        %v2825 = vadd.f32 %v2770, %v2824
        %v2826 = vpop.f32.mrf.mxu0
        %v2827 = vpop.f32.mrf.mxu0
        %v2828 = vpop.f32.mrf.mxu0
        %2829 = vdwg.mxu0
        %s2830 = scalar_lea.vmem [#allocation3], 2
        %v2831 = vld [vmem:[%s2830] ss:$4 sm:$0x7f]
        %v2832 = vpack.c.bf16 %v2831, %v2831
        %v2837 = vunpack.c.l.b16 %v2711
        %v2838 = vunpack.c.l.b16 %v2712
        %v2839 = vunpack.c.l.b16 %v2713
        %v2840 = vunpack.c.l.b16 %v2714
        %v2841 = vpack.c.b16 %v2838, %v2837
        %v2842 = vpack.c.b16 %v2840, %v2839
        %v2846 = vsel %vm1039, %v2832, 0
        %2848 = vmatprep.subr.bf16.mxu0 0
        %2849 = vmatpush1.bf16.msra.mxu0 0
        %2850 = vmatprep.subr.bf16.mxu0 0
        %2851 = vmatpush1.bf16.msra.mxu0 0
        %2852 = vmatprep.subr.bf16.mxu0 0
        %2853 = vmatpush1.bf16.msra.mxu0 0
        %2854 = vmatprep.subr.bf16.mxu0 0
        %2855 = vmatpush1.bf16.msra.mxu0 0
        %2856 = vmatprep.subr.bf16.mxu0 0
        %2857 = vmatpush1.bf16.msra.mxu0 0
        %2858 = vmatprep.subr.bf16.mxu0 0
        %2859 = vmatpush1.bf16.msra.mxu0 0
        %2860 = vmatprep.subr.bf16.mxu0 0
        %2861 = vmatpush1.bf16.msra.mxu0 %v2842
        %2862 = vmatprep.subr.bf16.mxu0 0
        %2863 = vmatpush1.bf16.msra.mxu0 %v2841
        %2864 = vmatprep.subr.bf16.mxu0 0
        %2865 = vmatpush2.bf16.msra.mxu0 0
        %2866 = vmatprep.subr.bf16.mxu0 0
        %2867 = vmatpush2.bf16.msra.mxu0 0
        %2868 = vmatprep.subr.bf16.mxu0 0
        %2869 = vmatpush2.bf16.msra.mxu0 0
        %2870 = vmatprep.subr.bf16.mxu0 0
        %2871 = vmatpush2.bf16.msra.mxu0 0
        %2872 = vmatprep.subr.bf16.mxu0 0
        %2873 = vmatpush2.bf16.msra.mxu0 0
        %2874 = vmatprep.subr.bf16.mxu0 0
        %2875 = vmatpush2.bf16.msra.mxu0 0
        %2876 = vmatprep.subr.bf16.mxu0 0
        %2877 = vmatpush2.bf16.msra.mxu0 0
        %2878 = vmatprep.subr.bf16.mxu0 0
        %2879 = vmatpush2.bf16.msra.mxu0 0
        %2880 = vmatprep.mubr.bf16.mxu0 0
        %2881 = vmatmul.mubr.bf16.gmra.mxu0 %v2846
        %v2882 = vpop.f32.mrf.mxu0
        %v2883 = vadd.f32 0.0, %v2882
        %v2884 = vpop.f32.mrf.mxu0
        %v2885 = vpop.f32.mrf.mxu0
        %v2886 = vpop.f32.mrf.mxu0
        %2887 = vdwg.mxu0
        %v2888 = vadd.f32 %v2825, %v2883
        %2889 = vmatprep.subr.bf16.mxu0 0
        %2890 = vmatpush1.bf16.msra.mxu0 0
        %2891 = vmatprep.subr.bf16.mxu0 0
        %2892 = vmatpush1.bf16.msra.mxu0 0
        %2893 = vmatprep.subr.bf16.mxu0 0
        %2894 = vmatpush1.bf16.msra.mxu0 0
        %2895 = vmatprep.subr.bf16.mxu0 0
        %2896 = vmatpush1.bf16.msra.mxu0 0
        %2897 = vmatprep.subr.bf16.mxu0 0
        %2898 = vmatpush1.bf16.msra.mxu0 0
        %2899 = vmatprep.subr.bf16.mxu0 0
        %2900 = vmatpush1.bf16.msra.mxu0 0
        %2901 = vmatprep.subr.bf16.mxu0 0
        %2902 = vmatpush1.bf16.msra.mxu0 %v2729
        %2903 = vmatprep.subr.bf16.mxu0 0
        %2904 = vmatpush1.bf16.msra.mxu0 %v2728
        %2905 = vmatprep.subr.bf16.mxu0 0
        %2906 = vmatpush2.bf16.msra.mxu0 0
        %2907 = vmatprep.subr.bf16.mxu0 0
        %2908 = vmatpush2.bf16.msra.mxu0 0
        %2909 = vmatprep.subr.bf16.mxu0 0
        %2910 = vmatpush2.bf16.msra.mxu0 0
        %2911 = vmatprep.subr.bf16.mxu0 0
        %2912 = vmatpush2.bf16.msra.mxu0 0
        %2913 = vmatprep.subr.bf16.mxu0 0
        %2914 = vmatpush2.bf16.msra.mxu0 0
        %2915 = vmatprep.subr.bf16.mxu0 0
        %2916 = vmatpush2.bf16.msra.mxu0 0
        %2917 = vmatprep.subr.bf16.mxu0 0
        %2918 = vmatpush2.bf16.msra.mxu0 0
        %2919 = vmatprep.subr.bf16.mxu0 0
        %2920 = vmatpush2.bf16.msra.mxu0 0
        %2921 = vmatprep.mubr.bf16.mxu0 0
        %2922 = vmatmul.mubr.bf16.gmra.mxu0 %v2846
        %v2923 = vpop.f32.mrf.mxu0
        %v2924 = vadd.f32 0.0, %v2923
        %v2925 = vpop.f32.mrf.mxu0
        %v2926 = vpop.f32.mrf.mxu0
        %v2927 = vpop.f32.mrf.mxu0
        %2928 = vdwg.mxu0
        %2929 = vmatprep.subr.bf16.mxu0 0
        %2930 = vmatpush1.bf16.msra.mxu0 0
        %2931 = vmatprep.subr.bf16.mxu0 0
        %2932 = vmatpush1.bf16.msra.mxu0 0
        %2933 = vmatprep.subr.bf16.mxu0 0
        %2934 = vmatpush1.bf16.msra.mxu0 0
        %2935 = vmatprep.subr.bf16.mxu0 0
        %2936 = vmatpush1.bf16.msra.mxu0 0
        %2937 = vmatprep.subr.bf16.mxu0 0
        %2938 = vmatpush1.bf16.msra.mxu0 0
        %2939 = vmatprep.subr.bf16.mxu0 0
        %2940 = vmatpush1.bf16.msra.mxu0 0
        %2941 = vmatprep.subr.bf16.mxu0 0
        %2942 = vmatpush1.bf16.msra.mxu0 %v2784
        %2943 = vmatprep.subr.bf16.mxu0 0
        %2944 = vmatpush1.bf16.msra.mxu0 %v2783
        %2945 = vmatprep.subr.bf16.mxu0 0
        %2946 = vmatpush2.bf16.msra.mxu0 0
        %2947 = vmatprep.subr.bf16.mxu0 0
        %2948 = vmatpush2.bf16.msra.mxu0 0
        %2949 = vmatprep.subr.bf16.mxu0 0
        %2950 = vmatpush2.bf16.msra.mxu0 0
        %2951 = vmatprep.subr.bf16.mxu0 0
        %2952 = vmatpush2.bf16.msra.mxu0 0
        %2953 = vmatprep.subr.bf16.mxu0 0
        %2954 = vmatpush2.bf16.msra.mxu0 0
        %2955 = vmatprep.subr.bf16.mxu0 0
        %2956 = vmatpush2.bf16.msra.mxu0 0
        %2957 = vmatprep.subr.bf16.mxu0 0
        %2958 = vmatpush2.bf16.msra.mxu0 0
        %2959 = vmatprep.subr.bf16.mxu0 0
        %2960 = vmatpush2.bf16.msra.mxu0 0
        %2961 = vmatprep.mubr.bf16.mxu0 0
        %2962 = vmatmul.mubr.bf16.gmra.mxu0 %v2733
        %v2963 = vpop.f32.mrf.mxu0
        %v2964 = vadd.f32 %v2924, %v2963
        %v2965 = vpop.f32.mrf.mxu0
        %v2966 = vpop.f32.mrf.mxu0
        %v2967 = vpop.f32.mrf.mxu0
        %2968 = vdwg.mxu0
        %s2969 = scalar_lea.vmem [#allocation3], 3
        %v2970 = vld [vmem:[%s2969] ss:$4 sm:$0x7f]
        %v2971 = vpack.c.bf16 %v2970, %v2970
        %v2973 = vsel %vm1039, %v2971, 0
        %2975 = vmatprep.subr.bf16.mxu0 0
        %2976 = vmatpush1.bf16.msra.mxu0 0
        %2977 = vmatprep.subr.bf16.mxu0 0
        %2978 = vmatpush1.bf16.msra.mxu0 0
        %2979 = vmatprep.subr.bf16.mxu0 0
        %2980 = vmatpush1.bf16.msra.mxu0 0
        %2981 = vmatprep.subr.bf16.mxu0 0
        %2982 = vmatpush1.bf16.msra.mxu0 0
        %2983 = vmatprep.subr.bf16.mxu0 0
        %2984 = vmatpush1.bf16.msra.mxu0 0
        %2985 = vmatprep.subr.bf16.mxu0 0
        %2986 = vmatpush1.bf16.msra.mxu0 0
        %2987 = vmatprep.subr.bf16.mxu0 0
        %2988 = vmatpush1.bf16.msra.mxu0 %v2842
        %2989 = vmatprep.subr.bf16.mxu0 0
        %2990 = vmatpush1.bf16.msra.mxu0 %v2841
        %2991 = vmatprep.subr.bf16.mxu0 0
        %2992 = vmatpush2.bf16.msra.mxu0 0
        %2993 = vmatprep.subr.bf16.mxu0 0
        %2994 = vmatpush2.bf16.msra.mxu0 0
        %2995 = vmatprep.subr.bf16.mxu0 0
        %2996 = vmatpush2.bf16.msra.mxu0 0
        %2997 = vmatprep.subr.bf16.mxu0 0
        %2998 = vmatpush2.bf16.msra.mxu0 0
        %2999 = vmatprep.subr.bf16.mxu0 0
        %3000 = vmatpush2.bf16.msra.mxu0 0
        %3001 = vmatprep.subr.bf16.mxu0 0
        %3002 = vmatpush2.bf16.msra.mxu0 0
        %3003 = vmatprep.subr.bf16.mxu0 0
        %3004 = vmatpush2.bf16.msra.mxu0 0
        %3005 = vmatprep.subr.bf16.mxu0 0
        %3006 = vmatpush2.bf16.msra.mxu0 0
        %3007 = vmatprep.mubr.bf16.mxu0 0
        %3008 = vmatmul.mubr.bf16.gmra.mxu0 %v2973
        %v3009 = vpop.f32.mrf.mxu0
        %v3010 = vadd.f32 0.0, %v3009
        %v3011 = vpop.f32.mrf.mxu0
        %v3012 = vpop.f32.mrf.mxu0
        %v3013 = vpop.f32.mrf.mxu0
        %3014 = vdwg.mxu0
        %v3015 = vadd.f32 %v2964, %v3010
        %v3016 = vmax.f32 %v2888, %v3015
        %3017 = vmatprep.subr.bf16.mxu0 0
        %3018 = vmatpush1.bf16.msra.mxu0 0
        %3019 = vmatprep.subr.bf16.mxu0 0
        %3020 = vmatpush1.bf16.msra.mxu0 0
        %3021 = vmatprep.subr.bf16.mxu0 0
        %3022 = vmatpush1.bf16.msra.mxu0 0
        %3023 = vmatprep.subr.bf16.mxu0 0
        %3024 = vmatpush1.bf16.msra.mxu0 0
        %3025 = vmatprep.subr.bf16.mxu0 0
        %3026 = vmatpush1.bf16.msra.mxu0 0
        %3027 = vmatprep.subr.bf16.mxu0 0
        %3028 = vmatpush1.bf16.msra.mxu0 0
        %3029 = vmatprep.subr.bf16.mxu0 0
        %3030 = vmatpush1.bf16.msra.mxu0 %v2729
        %3031 = vmatprep.subr.bf16.mxu0 0
        %3032 = vmatpush1.bf16.msra.mxu0 %v2728
        %3033 = vmatprep.subr.bf16.mxu0 0
        %3034 = vmatpush2.bf16.msra.mxu0 0
        %3035 = vmatprep.subr.bf16.mxu0 0
        %3036 = vmatpush2.bf16.msra.mxu0 0
        %3037 = vmatprep.subr.bf16.mxu0 0
        %3038 = vmatpush2.bf16.msra.mxu0 0
        %3039 = vmatprep.subr.bf16.mxu0 0
        %3040 = vmatpush2.bf16.msra.mxu0 0
        %3041 = vmatprep.subr.bf16.mxu0 0
        %3042 = vmatpush2.bf16.msra.mxu0 0
        %3043 = vmatprep.subr.bf16.mxu0 0
        %3044 = vmatpush2.bf16.msra.mxu0 0
        %3045 = vmatprep.subr.bf16.mxu0 0
        %3046 = vmatpush2.bf16.msra.mxu0 0
        %3047 = vmatprep.subr.bf16.mxu0 0
        %3048 = vmatpush2.bf16.msra.mxu0 0
        %3049 = vmatprep.mubr.bf16.mxu0 0
        %3050 = vmatmul.mubr.bf16.gmra.mxu0 %v2973
        %v3051 = vpop.f32.mrf.mxu0
        %v3052 = vadd.f32 0.0, %v3051
        %v3053 = vpop.f32.mrf.mxu0
        %v3054 = vpop.f32.mrf.mxu0
        %v3055 = vpop.f32.mrf.mxu0
        %3056 = vdwg.mxu0
        %3057 = vmatprep.subr.bf16.mxu0 0
        %3058 = vmatpush1.bf16.msra.mxu0 0
        %3059 = vmatprep.subr.bf16.mxu0 0
        %3060 = vmatpush1.bf16.msra.mxu0 0
        %3061 = vmatprep.subr.bf16.mxu0 0
        %3062 = vmatpush1.bf16.msra.mxu0 0
        %3063 = vmatprep.subr.bf16.mxu0 0
        %3064 = vmatpush1.bf16.msra.mxu0 0
        %3065 = vmatprep.subr.bf16.mxu0 0
        %3066 = vmatpush1.bf16.msra.mxu0 0
        %3067 = vmatprep.subr.bf16.mxu0 0
        %3068 = vmatpush1.bf16.msra.mxu0 0
        %3069 = vmatprep.subr.bf16.mxu0 0
        %3070 = vmatpush1.bf16.msra.mxu0 %v2784
        %3071 = vmatprep.subr.bf16.mxu0 0
        %3072 = vmatpush1.bf16.msra.mxu0 %v2783
        %3073 = vmatprep.subr.bf16.mxu0 0
        %3074 = vmatpush2.bf16.msra.mxu0 0
        %3075 = vmatprep.subr.bf16.mxu0 0
        %3076 = vmatpush2.bf16.msra.mxu0 0
        %3077 = vmatprep.subr.bf16.mxu0 0
        %3078 = vmatpush2.bf16.msra.mxu0 0
        %3079 = vmatprep.subr.bf16.mxu0 0
        %3080 = vmatpush2.bf16.msra.mxu0 0
        %3081 = vmatprep.subr.bf16.mxu0 0
        %3082 = vmatpush2.bf16.msra.mxu0 0
        %3083 = vmatprep.subr.bf16.mxu0 0
        %3084 = vmatpush2.bf16.msra.mxu0 0
        %3085 = vmatprep.subr.bf16.mxu0 0
        %3086 = vmatpush2.bf16.msra.mxu0 0
        %3087 = vmatprep.subr.bf16.mxu0 0
        %3088 = vmatpush2.bf16.msra.mxu0 0
        %3089 = vmatprep.mubr.bf16.mxu0 0
        %3090 = vmatmul.mubr.bf16.gmra.mxu0 %v2846
        %v3091 = vpop.f32.mrf.mxu0
        %v3092 = vadd.f32 %v3052, %v3091
        %v3093 = vpop.f32.mrf.mxu0
        %v3094 = vpop.f32.mrf.mxu0
        %v3095 = vpop.f32.mrf.mxu0
        %3096 = vdwg.mxu0
        %s3097 = scalar_lea.vmem [#allocation3], 4
        %v3098 = vld [vmem:[%s3097] ss:$4 sm:$0x7f]
        %v3099 = vpack.c.bf16 %v3098, %v3098
        %v3101 = vsel %vm1039, %v3099, 0
        %3103 = vmatprep.subr.bf16.mxu0 0
        %3104 = vmatpush1.bf16.msra.mxu0 0
        %3105 = vmatprep.subr.bf16.mxu0 0
        %3106 = vmatpush1.bf16.msra.mxu0 0
        %3107 = vmatprep.subr.bf16.mxu0 0
        %3108 = vmatpush1.bf16.msra.mxu0 0
        %3109 = vmatprep.subr.bf16.mxu0 0
        %3110 = vmatpush1.bf16.msra.mxu0 0
        %3111 = vmatprep.subr.bf16.mxu0 0
        %3112 = vmatpush1.bf16.msra.mxu0 0
        %3113 = vmatprep.subr.bf16.mxu0 0
        %3114 = vmatpush1.bf16.msra.mxu0 0
        %3115 = vmatprep.subr.bf16.mxu0 0
        %3116 = vmatpush1.bf16.msra.mxu0 %v2842
        %3117 = vmatprep.subr.bf16.mxu0 0
        %3118 = vmatpush1.bf16.msra.mxu0 %v2841
        %3119 = vmatprep.subr.bf16.mxu0 0
        %3120 = vmatpush2.bf16.msra.mxu0 0
        %3121 = vmatprep.subr.bf16.mxu0 0
        %3122 = vmatpush2.bf16.msra.mxu0 0
        %3123 = vmatprep.subr.bf16.mxu0 0
        %3124 = vmatpush2.bf16.msra.mxu0 0
        %3125 = vmatprep.subr.bf16.mxu0 0
        %3126 = vmatpush2.bf16.msra.mxu0 0
        %3127 = vmatprep.subr.bf16.mxu0 0
        %3128 = vmatpush2.bf16.msra.mxu0 0
        %3129 = vmatprep.subr.bf16.mxu0 0
        %3130 = vmatpush2.bf16.msra.mxu0 0
        %3131 = vmatprep.subr.bf16.mxu0 0
        %3132 = vmatpush2.bf16.msra.mxu0 0
        %3133 = vmatprep.subr.bf16.mxu0 0
        %3134 = vmatpush2.bf16.msra.mxu0 0
        %3135 = vmatprep.mubr.bf16.mxu0 0
        %3136 = vmatmul.mubr.bf16.gmra.mxu0 %v3101
        %v3137 = vpop.f32.mrf.mxu0
        %v3138 = vadd.f32 0.0, %v3137
        %v3139 = vpop.f32.mrf.mxu0
        %v3140 = vpop.f32.mrf.mxu0
        %v3141 = vpop.f32.mrf.mxu0
        %3142 = vdwg.mxu0
        %v3143 = vadd.f32 %v3092, %v3138
        %v3144 = vmax.f32 %v3016, %v3143
        %3145 = vmatprep.subr.bf16.mxu0 0
        %3146 = vmatpush1.bf16.msra.mxu0 0
        %3147 = vmatprep.subr.bf16.mxu0 0
        %3148 = vmatpush1.bf16.msra.mxu0 0
        %3149 = vmatprep.subr.bf16.mxu0 0
        %3150 = vmatpush1.bf16.msra.mxu0 0
        %3151 = vmatprep.subr.bf16.mxu0 0
        %3152 = vmatpush1.bf16.msra.mxu0 0
        %3153 = vmatprep.subr.bf16.mxu0 0
        %3154 = vmatpush1.bf16.msra.mxu0 0
        %3155 = vmatprep.subr.bf16.mxu0 0
        %3156 = vmatpush1.bf16.msra.mxu0 0
        %3157 = vmatprep.subr.bf16.mxu0 0
        %3158 = vmatpush1.bf16.msra.mxu0 %v2729
        %3159 = vmatprep.subr.bf16.mxu0 0
        %3160 = vmatpush1.bf16.msra.mxu0 %v2728
        %3161 = vmatprep.subr.bf16.mxu0 0
        %3162 = vmatpush2.bf16.msra.mxu0 0
        %3163 = vmatprep.subr.bf16.mxu0 0
        %3164 = vmatpush2.bf16.msra.mxu0 0
        %3165 = vmatprep.subr.bf16.mxu0 0
        %3166 = vmatpush2.bf16.msra.mxu0 0
        %3167 = vmatprep.subr.bf16.mxu0 0
        %3168 = vmatpush2.bf16.msra.mxu0 0
        %3169 = vmatprep.subr.bf16.mxu0 0
        %3170 = vmatpush2.bf16.msra.mxu0 0
        %3171 = vmatprep.subr.bf16.mxu0 0
        %3172 = vmatpush2.bf16.msra.mxu0 0
        %3173 = vmatprep.subr.bf16.mxu0 0
        %3174 = vmatpush2.bf16.msra.mxu0 0
        %3175 = vmatprep.subr.bf16.mxu0 0
        %3176 = vmatpush2.bf16.msra.mxu0 0
        %3177 = vmatprep.mubr.bf16.mxu0 0
        %3178 = vmatmul.mubr.bf16.gmra.mxu0 %v3101
        %v3179 = vpop.f32.mrf.mxu0
        %v3180 = vadd.f32 0.0, %v3179
        %v3181 = vpop.f32.mrf.mxu0
        %v3182 = vpop.f32.mrf.mxu0
        %v3183 = vpop.f32.mrf.mxu0
        %3184 = vdwg.mxu0
        %3185 = vmatprep.subr.bf16.mxu0 0
        %3186 = vmatpush1.bf16.msra.mxu0 0
        %3187 = vmatprep.subr.bf16.mxu0 0
        %3188 = vmatpush1.bf16.msra.mxu0 0
        %3189 = vmatprep.subr.bf16.mxu0 0
        %3190 = vmatpush1.bf16.msra.mxu0 0
        %3191 = vmatprep.subr.bf16.mxu0 0
        %3192 = vmatpush1.bf16.msra.mxu0 0
        %3193 = vmatprep.subr.bf16.mxu0 0
        %3194 = vmatpush1.bf16.msra.mxu0 0
        %3195 = vmatprep.subr.bf16.mxu0 0
        %3196 = vmatpush1.bf16.msra.mxu0 0
        %3197 = vmatprep.subr.bf16.mxu0 0
        %3198 = vmatpush1.bf16.msra.mxu0 %v2784
        %3199 = vmatprep.subr.bf16.mxu0 0
        %3200 = vmatpush1.bf16.msra.mxu0 %v2783
        %3201 = vmatprep.subr.bf16.mxu0 0
        %3202 = vmatpush2.bf16.msra.mxu0 0
        %3203 = vmatprep.subr.bf16.mxu0 0
        %3204 = vmatpush2.bf16.msra.mxu0 0
        %3205 = vmatprep.subr.bf16.mxu0 0
        %3206 = vmatpush2.bf16.msra.mxu0 0
        %3207 = vmatprep.subr.bf16.mxu0 0
        %3208 = vmatpush2.bf16.msra.mxu0 0
        %3209 = vmatprep.subr.bf16.mxu0 0
        %3210 = vmatpush2.bf16.msra.mxu0 0
        %3211 = vmatprep.subr.bf16.mxu0 0
        %3212 = vmatpush2.bf16.msra.mxu0 0
        %3213 = vmatprep.subr.bf16.mxu0 0
        %3214 = vmatpush2.bf16.msra.mxu0 0
        %3215 = vmatprep.subr.bf16.mxu0 0
        %3216 = vmatpush2.bf16.msra.mxu0 0
        %3217 = vmatprep.mubr.bf16.mxu0 0
        %3218 = vmatmul.mubr.bf16.gmra.mxu0 %v2973
        %v3219 = vpop.f32.mrf.mxu0
        %v3220 = vadd.f32 %v3180, %v3219
        %v3221 = vpop.f32.mrf.mxu0
        %v3222 = vpop.f32.mrf.mxu0
        %v3223 = vpop.f32.mrf.mxu0
        %3224 = vdwg.mxu0
        %s3225 = scalar_lea.vmem [#allocation3], 5
        %v3226 = vld [vmem:[%s3225] ss:$4 sm:$0x7f]
        %v3227 = vpack.c.bf16 %v3226, %v3226
        %v3229 = vsel %vm1039, %v3227, 0
        %3231 = vmatprep.subr.bf16.mxu0 0
        %3232 = vmatpush1.bf16.msra.mxu0 0
        %3233 = vmatprep.subr.bf16.mxu0 0
        %3234 = vmatpush1.bf16.msra.mxu0 0
        %3235 = vmatprep.subr.bf16.mxu0 0
        %3236 = vmatpush1.bf16.msra.mxu0 0
        %3237 = vmatprep.subr.bf16.mxu0 0
        %3238 = vmatpush1.bf16.msra.mxu0 0
        %3239 = vmatprep.subr.bf16.mxu0 0
        %3240 = vmatpush1.bf16.msra.mxu0 0
        %3241 = vmatprep.subr.bf16.mxu0 0
        %3242 = vmatpush1.bf16.msra.mxu0 0
        %3243 = vmatprep.subr.bf16.mxu0 0
        %3244 = vmatpush1.bf16.msra.mxu0 %v2842
        %3245 = vmatprep.subr.bf16.mxu0 0
        %3246 = vmatpush1.bf16.msra.mxu0 %v2841
        %3247 = vmatprep.subr.bf16.mxu0 0
        %3248 = vmatpush2.bf16.msra.mxu0 0
        %3249 = vmatprep.subr.bf16.mxu0 0
        %3250 = vmatpush2.bf16.msra.mxu0 0
        %3251 = vmatprep.subr.bf16.mxu0 0
        %3252 = vmatpush2.bf16.msra.mxu0 0
        %3253 = vmatprep.subr.bf16.mxu0 0
        %3254 = vmatpush2.bf16.msra.mxu0 0
        %3255 = vmatprep.subr.bf16.mxu0 0
        %3256 = vmatpush2.bf16.msra.mxu0 0
        %3257 = vmatprep.subr.bf16.mxu0 0
        %3258 = vmatpush2.bf16.msra.mxu0 0
        %3259 = vmatprep.subr.bf16.mxu0 0
        %3260 = vmatpush2.bf16.msra.mxu0 0
        %3261 = vmatprep.subr.bf16.mxu0 0
        %3262 = vmatpush2.bf16.msra.mxu0 0
        %3263 = vmatprep.mubr.bf16.mxu0 0
        %3264 = vmatmul.mubr.bf16.gmra.mxu0 %v3229
        %v3265 = vpop.f32.mrf.mxu0
        %v3266 = vadd.f32 0.0, %v3265
        %v3267 = vpop.f32.mrf.mxu0
        %v3268 = vpop.f32.mrf.mxu0
        %v3269 = vpop.f32.mrf.mxu0
        %3270 = vdwg.mxu0
        %v3271 = vadd.f32 %v3220, %v3266
        %v3272 = vmax.f32 %v3144, %v3271
        %v3273 = vld [vmem:[%s2 + $0x2] sm:$0x1]
        %v3274 = vlaneseq
        %v3275 = vshrl.u32 %v3274, 7
        %v3276 = vsub.s32 0, %v3275
        %v3277 = vrot.slane %v3273, %v3276
        %v3278 = vadd.f32 %v3272, %v3277
        %v3279 = vmax.f32 %v3278, 0.0
        %vm3280 = vcmask 522240
        %3281 = vst.msk [vmem:[#allocation4] sm:$0x7f] %vm3280, %v3279
        %v3282 = vld [vmem:[%s1 + $0xb8] sm:$0xf]
        %v3283 = vld [vmem:[%s1 + $0xbc] sm:$0xf]
        %v3284 = vld [vmem:[%s1 + $0xc0] sm:$0xf]
        %v3285 = vld [vmem:[%s1 + $0xc4] sm:$0xf]
        %v3286 = vld [vmem:[%s1 + $0xc8] sm:$0xf]
        %v3287 = vld [vmem:[%s1 + $0xcc] sm:$0xf]
        %v3288 = vld [vmem:[%s1 + $0xd0] sm:$0xf]
        %v3289 = vld [vmem:[%s1 + $0xd4] sm:$0xf]
        %v3290 = vld [vmem:[%s1 + $0xd8] sm:$0xf]
        %v3291 = vld [vmem:[%s1 + $0xdc] sm:$0xf]
        %v3292 = vld [vmem:[%s1 + $0xe0] sm:$0xf]
        %v3293 = vld [vmem:[%s1 + $0xe4] sm:$0xf]
        %v3294 = vld [vmem:[%s1 + $0xe8] sm:$0xf]
        %v3295 = vld [vmem:[%s1 + $0xec] sm:$0xf]
        %v3296 = vld [vmem:[%s1 + $0xf0] sm:$0xf]
        %v3297 = vld [vmem:[%s1 + $0xf4] sm:$0xf]
        %v3298 = vld [vmem:[%s1 + $0xf8] sm:$0xf]
        %v3299 = vld [vmem:[%s1 + $0xfc] sm:$0xf]
        %v3300 = vld [vmem:[%s1 + $0x100] sm:$0xf]
        %v3301 = vld [vmem:[%s1 + $0x104] sm:$0xf]
        %v3302 = vld [vmem:[%s1 + $0x108] sm:$0xf]
        %v3303 = vld [vmem:[%s1 + $0x10c] sm:$0xf]
        %v3304 = vld [vmem:[%s1 + $0x110] sm:$0xf]
        %v3305 = vld [vmem:[%s1 + $0x114] sm:$0xf]
        %v3306 = vld [vmem:[#allocation4] ss:$4 sm:$0x1]
        %v3307 = vpack.c.bf16 %v3306, %v3306
        %s3308 = scalar_lea.vmem [#allocation4], 1
        %v3309 = vld [vmem:[%s3308] ss:$4 sm:$0x1]
        %v3310 = vpack.c.bf16 %v3309, %v3309
        %v3319 = vunpack.c.l.b16 %v3290
        %v3320 = vunpack.c.l.b16 %v3291
        %v3321 = vunpack.c.l.b16 %v3292
        %v3322 = vunpack.c.l.b16 %v3293
        %v3323 = vunpack.c.l.b16 %v3294
        %v3324 = vunpack.c.l.b16 %v3295
        %v3325 = vunpack.c.l.b16 %v3296
        %v3326 = vunpack.c.l.b16 %v3297
        %v3327 = vpack.c.b16 %v3320, %v3319
        %v3328 = vpack.c.b16 %v3322, %v3321
        %v3329 = vpack.c.b16 %v3324, %v3323
        %v3330 = vpack.c.b16 %v3326, %v3325
        %v3336 = vsel %vm233, %v3310, 0
        %3338 = vmatprep.subr.bf16.mxu0 0
        %3339 = vmatpush1.bf16.msra.mxu0 0
        %3340 = vmatprep.subr.bf16.mxu0 0
        %3341 = vmatpush1.bf16.msra.mxu0 0
        %3342 = vmatprep.subr.bf16.mxu0 0
        %3343 = vmatpush1.bf16.msra.mxu0 0
        %3344 = vmatprep.subr.bf16.mxu0 0
        %3345 = vmatpush1.bf16.msra.mxu0 0
        %3346 = vmatprep.subr.bf16.mxu0 0
        %3347 = vmatpush1.bf16.msra.mxu0 %v3330
        %3348 = vmatprep.subr.bf16.mxu0 0
        %3349 = vmatpush1.bf16.msra.mxu0 %v3329
        %3350 = vmatprep.subr.bf16.mxu0 0
        %3351 = vmatpush1.bf16.msra.mxu0 %v3328
        %3352 = vmatprep.subr.bf16.mxu0 0
        %3353 = vmatpush1.bf16.msra.mxu0 %v3327
        %3354 = vmatprep.subr.bf16.mxu0 0
        %3355 = vmatpush2.bf16.msra.mxu0 0
        %3356 = vmatprep.subr.bf16.mxu0 0
        %3357 = vmatpush2.bf16.msra.mxu0 0
        %3358 = vmatprep.subr.bf16.mxu0 0
        %3359 = vmatpush2.bf16.msra.mxu0 0
        %3360 = vmatprep.subr.bf16.mxu0 0
        %3361 = vmatpush2.bf16.msra.mxu0 0
        %3362 = vmatprep.subr.bf16.mxu0 0
        %3363 = vmatpush2.bf16.msra.mxu0 0
        %3364 = vmatprep.subr.bf16.mxu0 0
        %3365 = vmatpush2.bf16.msra.mxu0 0
        %3366 = vmatprep.subr.bf16.mxu0 0
        %3367 = vmatpush2.bf16.msra.mxu0 0
        %3368 = vmatprep.subr.bf16.mxu0 0
        %3369 = vmatpush2.bf16.msra.mxu0 0
        %3370 = vmatprep.mubr.bf16.mxu0 0
        %3371 = vmatmul.mubr.bf16.gmra.mxu0 %v3336
        %v3372 = vpop.f32.mrf.mxu0
        %v3373 = vadd.f32 0.0, %v3372
        %v3374 = vpop.f32.mrf.mxu0
        %v3375 = vpop.f32.mrf.mxu0
        %v3376 = vpop.f32.mrf.mxu0
        %3377 = vdwg.mxu0
        %v3386 = vunpack.c.l.b16 %v3282
        %v3387 = vunpack.c.l.b16 %v3283
        %v3388 = vunpack.c.l.b16 %v3284
        %v3389 = vunpack.c.l.b16 %v3285
        %v3390 = vunpack.c.l.b16 %v3286
        %v3391 = vunpack.c.l.b16 %v3287
        %v3392 = vunpack.c.l.b16 %v3288
        %v3393 = vunpack.c.l.b16 %v3289
        %v3394 = vpack.c.b16 %v3387, %v3386
        %v3395 = vpack.c.b16 %v3389, %v3388
        %v3396 = vpack.c.b16 %v3391, %v3390
        %v3397 = vpack.c.b16 %v3393, %v3392
        %v3403 = vsel %vm233, %v3307, 0
        %3405 = vmatprep.subr.bf16.mxu0 0
        %3406 = vmatpush1.bf16.msra.mxu0 0
        %3407 = vmatprep.subr.bf16.mxu0 0
        %3408 = vmatpush1.bf16.msra.mxu0 0
        %3409 = vmatprep.subr.bf16.mxu0 0
        %3410 = vmatpush1.bf16.msra.mxu0 0
        %3411 = vmatprep.subr.bf16.mxu0 0
        %3412 = vmatpush1.bf16.msra.mxu0 0
        %3413 = vmatprep.subr.bf16.mxu0 0
        %3414 = vmatpush1.bf16.msra.mxu0 %v3397
        %3415 = vmatprep.subr.bf16.mxu0 0
        %3416 = vmatpush1.bf16.msra.mxu0 %v3396
        %3417 = vmatprep.subr.bf16.mxu0 0
        %3418 = vmatpush1.bf16.msra.mxu0 %v3395
        %3419 = vmatprep.subr.bf16.mxu0 0
        %3420 = vmatpush1.bf16.msra.mxu0 %v3394
        %3421 = vmatprep.subr.bf16.mxu0 0
        %3422 = vmatpush2.bf16.msra.mxu0 0
        %3423 = vmatprep.subr.bf16.mxu0 0
        %3424 = vmatpush2.bf16.msra.mxu0 0
        %3425 = vmatprep.subr.bf16.mxu0 0
        %3426 = vmatpush2.bf16.msra.mxu0 0
        %3427 = vmatprep.subr.bf16.mxu0 0
        %3428 = vmatpush2.bf16.msra.mxu0 0
        %3429 = vmatprep.subr.bf16.mxu0 0
        %3430 = vmatpush2.bf16.msra.mxu0 0
        %3431 = vmatprep.subr.bf16.mxu0 0
        %3432 = vmatpush2.bf16.msra.mxu0 0
        %3433 = vmatprep.subr.bf16.mxu0 0
        %3434 = vmatpush2.bf16.msra.mxu0 0
        %3435 = vmatprep.subr.bf16.mxu0 0
        %3436 = vmatpush2.bf16.msra.mxu0 0
        %3437 = vmatprep.mubr.bf16.mxu0 0
        %3438 = vmatmul.mubr.bf16.gmra.mxu0 %v3403
        %v3439 = vpop.f32.mrf.mxu0
        %v3440 = vadd.f32 %v3373, %v3439
        %v3441 = vpop.f32.mrf.mxu0
        %v3442 = vpop.f32.mrf.mxu0
        %v3443 = vpop.f32.mrf.mxu0
        %3444 = vdwg.mxu0
        %s3445 = scalar_lea.vmem [#allocation4], 2
        %v3446 = vld [vmem:[%s3445] ss:$4 sm:$0x1]
        %v3447 = vpack.c.bf16 %v3446, %v3446
        %v3456 = vunpack.c.l.b16 %v3298
        %v3457 = vunpack.c.l.b16 %v3299
        %v3458 = vunpack.c.l.b16 %v3300
        %v3459 = vunpack.c.l.b16 %v3301
        %v3460 = vunpack.c.l.b16 %v3302
        %v3461 = vunpack.c.l.b16 %v3303
        %v3462 = vunpack.c.l.b16 %v3304
        %v3463 = vunpack.c.l.b16 %v3305
        %v3464 = vpack.c.b16 %v3457, %v3456
        %v3465 = vpack.c.b16 %v3459, %v3458
        %v3466 = vpack.c.b16 %v3461, %v3460
        %v3467 = vpack.c.b16 %v3463, %v3462
        %v3473 = vsel %vm233, %v3447, 0
        %3475 = vmatprep.subr.bf16.mxu0 0
        %3476 = vmatpush1.bf16.msra.mxu0 0
        %3477 = vmatprep.subr.bf16.mxu0 0
        %3478 = vmatpush1.bf16.msra.mxu0 0
        %3479 = vmatprep.subr.bf16.mxu0 0
        %3480 = vmatpush1.bf16.msra.mxu0 0
        %3481 = vmatprep.subr.bf16.mxu0 0
        %3482 = vmatpush1.bf16.msra.mxu0 0
        %3483 = vmatprep.subr.bf16.mxu0 0
        %3484 = vmatpush1.bf16.msra.mxu0 %v3467
        %3485 = vmatprep.subr.bf16.mxu0 0
        %3486 = vmatpush1.bf16.msra.mxu0 %v3466
        %3487 = vmatprep.subr.bf16.mxu0 0
        %3488 = vmatpush1.bf16.msra.mxu0 %v3465
        %3489 = vmatprep.subr.bf16.mxu0 0
        %3490 = vmatpush1.bf16.msra.mxu0 %v3464
        %3491 = vmatprep.subr.bf16.mxu0 0
        %3492 = vmatpush2.bf16.msra.mxu0 0
        %3493 = vmatprep.subr.bf16.mxu0 0
        %3494 = vmatpush2.bf16.msra.mxu0 0
        %3495 = vmatprep.subr.bf16.mxu0 0
        %3496 = vmatpush2.bf16.msra.mxu0 0
        %3497 = vmatprep.subr.bf16.mxu0 0
        %3498 = vmatpush2.bf16.msra.mxu0 0
        %3499 = vmatprep.subr.bf16.mxu0 0
        %3500 = vmatpush2.bf16.msra.mxu0 0
        %3501 = vmatprep.subr.bf16.mxu0 0
        %3502 = vmatpush2.bf16.msra.mxu0 0
        %3503 = vmatprep.subr.bf16.mxu0 0
        %3504 = vmatpush2.bf16.msra.mxu0 0
        %3505 = vmatprep.subr.bf16.mxu0 0
        %3506 = vmatpush2.bf16.msra.mxu0 0
        %3507 = vmatprep.mubr.bf16.mxu0 0
        %3508 = vmatmul.mubr.bf16.gmra.mxu0 %v3473
        %v3509 = vpop.f32.mrf.mxu0
        %v3510 = vadd.f32 0.0, %v3509
        %v3511 = vpop.f32.mrf.mxu0
        %v3512 = vpop.f32.mrf.mxu0
        %v3513 = vpop.f32.mrf.mxu0
        %3514 = vdwg.mxu0
        %v3515 = vadd.f32 %v3440, %v3510
        %3516 = vmatprep.subr.bf16.mxu0 0
        %3517 = vmatpush1.bf16.msra.mxu0 0
        %3518 = vmatprep.subr.bf16.mxu0 0
        %3519 = vmatpush1.bf16.msra.mxu0 0
        %3520 = vmatprep.subr.bf16.mxu0 0
        %3521 = vmatpush1.bf16.msra.mxu0 0
        %3522 = vmatprep.subr.bf16.mxu0 0
        %3523 = vmatpush1.bf16.msra.mxu0 0
        %3524 = vmatprep.subr.bf16.mxu0 0
        %3525 = vmatpush1.bf16.msra.mxu0 %v3330
        %3526 = vmatprep.subr.bf16.mxu0 0
        %3527 = vmatpush1.bf16.msra.mxu0 %v3329
        %3528 = vmatprep.subr.bf16.mxu0 0
        %3529 = vmatpush1.bf16.msra.mxu0 %v3328
        %3530 = vmatprep.subr.bf16.mxu0 0
        %3531 = vmatpush1.bf16.msra.mxu0 %v3327
        %3532 = vmatprep.subr.bf16.mxu0 0
        %3533 = vmatpush2.bf16.msra.mxu0 0
        %3534 = vmatprep.subr.bf16.mxu0 0
        %3535 = vmatpush2.bf16.msra.mxu0 0
        %3536 = vmatprep.subr.bf16.mxu0 0
        %3537 = vmatpush2.bf16.msra.mxu0 0
        %3538 = vmatprep.subr.bf16.mxu0 0
        %3539 = vmatpush2.bf16.msra.mxu0 0
        %3540 = vmatprep.subr.bf16.mxu0 0
        %3541 = vmatpush2.bf16.msra.mxu0 0
        %3542 = vmatprep.subr.bf16.mxu0 0
        %3543 = vmatpush2.bf16.msra.mxu0 0
        %3544 = vmatprep.subr.bf16.mxu0 0
        %3545 = vmatpush2.bf16.msra.mxu0 0
        %3546 = vmatprep.subr.bf16.mxu0 0
        %3547 = vmatpush2.bf16.msra.mxu0 0
        %3548 = vmatprep.mubr.bf16.mxu0 0
        %3549 = vmatmul.mubr.bf16.gmra.mxu0 %v3473
        %v3550 = vpop.f32.mrf.mxu0
        %v3551 = vadd.f32 0.0, %v3550
        %v3552 = vpop.f32.mrf.mxu0
        %v3553 = vpop.f32.mrf.mxu0
        %v3554 = vpop.f32.mrf.mxu0
        %3555 = vdwg.mxu0
        %3556 = vmatprep.subr.bf16.mxu0 0
        %3557 = vmatpush1.bf16.msra.mxu0 0
        %3558 = vmatprep.subr.bf16.mxu0 0
        %3559 = vmatpush1.bf16.msra.mxu0 0
        %3560 = vmatprep.subr.bf16.mxu0 0
        %3561 = vmatpush1.bf16.msra.mxu0 0
        %3562 = vmatprep.subr.bf16.mxu0 0
        %3563 = vmatpush1.bf16.msra.mxu0 0
        %3564 = vmatprep.subr.bf16.mxu0 0
        %3565 = vmatpush1.bf16.msra.mxu0 %v3397
        %3566 = vmatprep.subr.bf16.mxu0 0
        %3567 = vmatpush1.bf16.msra.mxu0 %v3396
        %3568 = vmatprep.subr.bf16.mxu0 0
        %3569 = vmatpush1.bf16.msra.mxu0 %v3395
        %3570 = vmatprep.subr.bf16.mxu0 0
        %3571 = vmatpush1.bf16.msra.mxu0 %v3394
        %3572 = vmatprep.subr.bf16.mxu0 0
        %3573 = vmatpush2.bf16.msra.mxu0 0
        %3574 = vmatprep.subr.bf16.mxu0 0
        %3575 = vmatpush2.bf16.msra.mxu0 0
        %3576 = vmatprep.subr.bf16.mxu0 0
        %3577 = vmatpush2.bf16.msra.mxu0 0
        %3578 = vmatprep.subr.bf16.mxu0 0
        %3579 = vmatpush2.bf16.msra.mxu0 0
        %3580 = vmatprep.subr.bf16.mxu0 0
        %3581 = vmatpush2.bf16.msra.mxu0 0
        %3582 = vmatprep.subr.bf16.mxu0 0
        %3583 = vmatpush2.bf16.msra.mxu0 0
        %3584 = vmatprep.subr.bf16.mxu0 0
        %3585 = vmatpush2.bf16.msra.mxu0 0
        %3586 = vmatprep.subr.bf16.mxu0 0
        %3587 = vmatpush2.bf16.msra.mxu0 0
        %3588 = vmatprep.mubr.bf16.mxu0 0
        %3589 = vmatmul.mubr.bf16.gmra.mxu0 %v3336
        %v3590 = vpop.f32.mrf.mxu0
        %v3591 = vadd.f32 %v3551, %v3590
        %v3592 = vpop.f32.mrf.mxu0
        %v3593 = vpop.f32.mrf.mxu0
        %v3594 = vpop.f32.mrf.mxu0
        %3595 = vdwg.mxu0
        %s3596 = scalar_lea.vmem [#allocation4], 3
        %v3597 = vld [vmem:[%s3596] ss:$4 sm:$0x1]
        %v3598 = vpack.c.bf16 %v3597, %v3597
        %v3600 = vsel %vm233, %v3598, 0
        %3602 = vmatprep.subr.bf16.mxu0 0
        %3603 = vmatpush1.bf16.msra.mxu0 0
        %3604 = vmatprep.subr.bf16.mxu0 0
        %3605 = vmatpush1.bf16.msra.mxu0 0
        %3606 = vmatprep.subr.bf16.mxu0 0
        %3607 = vmatpush1.bf16.msra.mxu0 0
        %3608 = vmatprep.subr.bf16.mxu0 0
        %3609 = vmatpush1.bf16.msra.mxu0 0
        %3610 = vmatprep.subr.bf16.mxu0 0
        %3611 = vmatpush1.bf16.msra.mxu0 %v3467
        %3612 = vmatprep.subr.bf16.mxu0 0
        %3613 = vmatpush1.bf16.msra.mxu0 %v3466
        %3614 = vmatprep.subr.bf16.mxu0 0
        %3615 = vmatpush1.bf16.msra.mxu0 %v3465
        %3616 = vmatprep.subr.bf16.mxu0 0
        %3617 = vmatpush1.bf16.msra.mxu0 %v3464
        %3618 = vmatprep.subr.bf16.mxu0 0
        %3619 = vmatpush2.bf16.msra.mxu0 0
        %3620 = vmatprep.subr.bf16.mxu0 0
        %3621 = vmatpush2.bf16.msra.mxu0 0
        %3622 = vmatprep.subr.bf16.mxu0 0
        %3623 = vmatpush2.bf16.msra.mxu0 0
        %3624 = vmatprep.subr.bf16.mxu0 0
        %3625 = vmatpush2.bf16.msra.mxu0 0
        %3626 = vmatprep.subr.bf16.mxu0 0
        %3627 = vmatpush2.bf16.msra.mxu0 0
        %3628 = vmatprep.subr.bf16.mxu0 0
        %3629 = vmatpush2.bf16.msra.mxu0 0
        %3630 = vmatprep.subr.bf16.mxu0 0
        %3631 = vmatpush2.bf16.msra.mxu0 0
        %3632 = vmatprep.subr.bf16.mxu0 0
        %3633 = vmatpush2.bf16.msra.mxu0 0
        %3634 = vmatprep.mubr.bf16.mxu0 0
        %3635 = vmatmul.mubr.bf16.gmra.mxu0 %v3600
        %v3636 = vpop.f32.mrf.mxu0
        %v3637 = vadd.f32 0.0, %v3636
        %v3638 = vpop.f32.mrf.mxu0
        %v3639 = vpop.f32.mrf.mxu0
        %v3640 = vpop.f32.mrf.mxu0
        %3641 = vdwg.mxu0
        %v3642 = vadd.f32 %v3591, %v3637
        %v3643 = vmax.f32 %v3515, %v3642
        %3644 = vmatprep.subr.bf16.mxu0 0
        %3645 = vmatpush1.bf16.msra.mxu0 0
        %3646 = vmatprep.subr.bf16.mxu0 0
        %3647 = vmatpush1.bf16.msra.mxu0 0
        %3648 = vmatprep.subr.bf16.mxu0 0
        %3649 = vmatpush1.bf16.msra.mxu0 0
        %3650 = vmatprep.subr.bf16.mxu0 0
        %3651 = vmatpush1.bf16.msra.mxu0 0
        %3652 = vmatprep.subr.bf16.mxu0 0
        %3653 = vmatpush1.bf16.msra.mxu0 %v3330
        %3654 = vmatprep.subr.bf16.mxu0 0
        %3655 = vmatpush1.bf16.msra.mxu0 %v3329
        %3656 = vmatprep.subr.bf16.mxu0 0
        %3657 = vmatpush1.bf16.msra.mxu0 %v3328
        %3658 = vmatprep.subr.bf16.mxu0 0
        %3659 = vmatpush1.bf16.msra.mxu0 %v3327
        %3660 = vmatprep.subr.bf16.mxu0 0
        %3661 = vmatpush2.bf16.msra.mxu0 0
        %3662 = vmatprep.subr.bf16.mxu0 0
        %3663 = vmatpush2.bf16.msra.mxu0 0
        %3664 = vmatprep.subr.bf16.mxu0 0
        %3665 = vmatpush2.bf16.msra.mxu0 0
        %3666 = vmatprep.subr.bf16.mxu0 0
        %3667 = vmatpush2.bf16.msra.mxu0 0
        %3668 = vmatprep.subr.bf16.mxu0 0
        %3669 = vmatpush2.bf16.msra.mxu0 0
        %3670 = vmatprep.subr.bf16.mxu0 0
        %3671 = vmatpush2.bf16.msra.mxu0 0
        %3672 = vmatprep.subr.bf16.mxu0 0
        %3673 = vmatpush2.bf16.msra.mxu0 0
        %3674 = vmatprep.subr.bf16.mxu0 0
        %3675 = vmatpush2.bf16.msra.mxu0 0
        %3676 = vmatprep.mubr.bf16.mxu0 0
        %3677 = vmatmul.mubr.bf16.gmra.mxu0 %v3600
        %v3678 = vpop.f32.mrf.mxu0
        %v3679 = vadd.f32 0.0, %v3678
        %v3680 = vpop.f32.mrf.mxu0
        %v3681 = vpop.f32.mrf.mxu0
        %v3682 = vpop.f32.mrf.mxu0
        %3683 = vdwg.mxu0
        %3684 = vmatprep.subr.bf16.mxu0 0
        %3685 = vmatpush1.bf16.msra.mxu0 0
        %3686 = vmatprep.subr.bf16.mxu0 0
        %3687 = vmatpush1.bf16.msra.mxu0 0
        %3688 = vmatprep.subr.bf16.mxu0 0
        %3689 = vmatpush1.bf16.msra.mxu0 0
        %3690 = vmatprep.subr.bf16.mxu0 0
        %3691 = vmatpush1.bf16.msra.mxu0 0
        %3692 = vmatprep.subr.bf16.mxu0 0
        %3693 = vmatpush1.bf16.msra.mxu0 %v3397
        %3694 = vmatprep.subr.bf16.mxu0 0
        %3695 = vmatpush1.bf16.msra.mxu0 %v3396
        %3696 = vmatprep.subr.bf16.mxu0 0
        %3697 = vmatpush1.bf16.msra.mxu0 %v3395
        %3698 = vmatprep.subr.bf16.mxu0 0
        %3699 = vmatpush1.bf16.msra.mxu0 %v3394
        %3700 = vmatprep.subr.bf16.mxu0 0
        %3701 = vmatpush2.bf16.msra.mxu0 0
        %3702 = vmatprep.subr.bf16.mxu0 0
        %3703 = vmatpush2.bf16.msra.mxu0 0
        %3704 = vmatprep.subr.bf16.mxu0 0
        %3705 = vmatpush2.bf16.msra.mxu0 0
        %3706 = vmatprep.subr.bf16.mxu0 0
        %3707 = vmatpush2.bf16.msra.mxu0 0
        %3708 = vmatprep.subr.bf16.mxu0 0
        %3709 = vmatpush2.bf16.msra.mxu0 0
        %3710 = vmatprep.subr.bf16.mxu0 0
        %3711 = vmatpush2.bf16.msra.mxu0 0
        %3712 = vmatprep.subr.bf16.mxu0 0
        %3713 = vmatpush2.bf16.msra.mxu0 0
        %3714 = vmatprep.subr.bf16.mxu0 0
        %3715 = vmatpush2.bf16.msra.mxu0 0
        %3716 = vmatprep.mubr.bf16.mxu0 0
        %3717 = vmatmul.mubr.bf16.gmra.mxu0 %v3473
        %v3718 = vpop.f32.mrf.mxu0
        %v3719 = vadd.f32 %v3679, %v3718
        %v3720 = vpop.f32.mrf.mxu0
        %v3721 = vpop.f32.mrf.mxu0
        %v3722 = vpop.f32.mrf.mxu0
        %3723 = vdwg.mxu0
        %s3724 = scalar_lea.vmem [#allocation4], 4
        %v3725 = vld [vmem:[%s3724] ss:$4 sm:$0x1]
        %v3726 = vpack.c.bf16 %v3725, %v3725
        %v3728 = vsel %vm233, %v3726, 0
        %3730 = vmatprep.subr.bf16.mxu0 0
        %3731 = vmatpush1.bf16.msra.mxu0 0
        %3732 = vmatprep.subr.bf16.mxu0 0
        %3733 = vmatpush1.bf16.msra.mxu0 0
        %3734 = vmatprep.subr.bf16.mxu0 0
        %3735 = vmatpush1.bf16.msra.mxu0 0
        %3736 = vmatprep.subr.bf16.mxu0 0
        %3737 = vmatpush1.bf16.msra.mxu0 0
        %3738 = vmatprep.subr.bf16.mxu0 0
        %3739 = vmatpush1.bf16.msra.mxu0 %v3467
        %3740 = vmatprep.subr.bf16.mxu0 0
        %3741 = vmatpush1.bf16.msra.mxu0 %v3466
        %3742 = vmatprep.subr.bf16.mxu0 0
        %3743 = vmatpush1.bf16.msra.mxu0 %v3465
        %3744 = vmatprep.subr.bf16.mxu0 0
        %3745 = vmatpush1.bf16.msra.mxu0 %v3464
        %3746 = vmatprep.subr.bf16.mxu0 0
        %3747 = vmatpush2.bf16.msra.mxu0 0
        %3748 = vmatprep.subr.bf16.mxu0 0
        %3749 = vmatpush2.bf16.msra.mxu0 0
        %3750 = vmatprep.subr.bf16.mxu0 0
        %3751 = vmatpush2.bf16.msra.mxu0 0
        %3752 = vmatprep.subr.bf16.mxu0 0
        %3753 = vmatpush2.bf16.msra.mxu0 0
        %3754 = vmatprep.subr.bf16.mxu0 0
        %3755 = vmatpush2.bf16.msra.mxu0 0
        %3756 = vmatprep.subr.bf16.mxu0 0
        %3757 = vmatpush2.bf16.msra.mxu0 0
        %3758 = vmatprep.subr.bf16.mxu0 0
        %3759 = vmatpush2.bf16.msra.mxu0 0
        %3760 = vmatprep.subr.bf16.mxu0 0
        %3761 = vmatpush2.bf16.msra.mxu0 0
        %3762 = vmatprep.mubr.bf16.mxu0 0
        %3763 = vmatmul.mubr.bf16.gmra.mxu0 %v3728
        %v3764 = vpop.f32.mrf.mxu0
        %v3765 = vadd.f32 0.0, %v3764
        %v3766 = vpop.f32.mrf.mxu0
        %v3767 = vpop.f32.mrf.mxu0
        %v3768 = vpop.f32.mrf.mxu0
        %3769 = vdwg.mxu0
        %v3770 = vadd.f32 %v3719, %v3765
        %v3771 = vmax.f32 %v3643, %v3770
        %3772 = vmatprep.subr.bf16.mxu0 0
        %3773 = vmatpush1.bf16.msra.mxu0 0
        %3774 = vmatprep.subr.bf16.mxu0 0
        %3775 = vmatpush1.bf16.msra.mxu0 0
        %3776 = vmatprep.subr.bf16.mxu0 0
        %3777 = vmatpush1.bf16.msra.mxu0 0
        %3778 = vmatprep.subr.bf16.mxu0 0
        %3779 = vmatpush1.bf16.msra.mxu0 0
        %3780 = vmatprep.subr.bf16.mxu0 0
        %3781 = vmatpush1.bf16.msra.mxu0 %v3330
        %3782 = vmatprep.subr.bf16.mxu0 0
        %3783 = vmatpush1.bf16.msra.mxu0 %v3329
        %3784 = vmatprep.subr.bf16.mxu0 0
        %3785 = vmatpush1.bf16.msra.mxu0 %v3328
        %3786 = vmatprep.subr.bf16.mxu0 0
        %3787 = vmatpush1.bf16.msra.mxu0 %v3327
        %3788 = vmatprep.subr.bf16.mxu0 0
        %3789 = vmatpush2.bf16.msra.mxu0 0
        %3790 = vmatprep.subr.bf16.mxu0 0
        %3791 = vmatpush2.bf16.msra.mxu0 0
        %3792 = vmatprep.subr.bf16.mxu0 0
        %3793 = vmatpush2.bf16.msra.mxu0 0
        %3794 = vmatprep.subr.bf16.mxu0 0
        %3795 = vmatpush2.bf16.msra.mxu0 0
        %3796 = vmatprep.subr.bf16.mxu0 0
        %3797 = vmatpush2.bf16.msra.mxu0 0
        %3798 = vmatprep.subr.bf16.mxu0 0
        %3799 = vmatpush2.bf16.msra.mxu0 0
        %3800 = vmatprep.subr.bf16.mxu0 0
        %3801 = vmatpush2.bf16.msra.mxu0 0
        %3802 = vmatprep.subr.bf16.mxu0 0
        %3803 = vmatpush2.bf16.msra.mxu0 0
        %3804 = vmatprep.mubr.bf16.mxu0 0
        %3805 = vmatmul.mubr.bf16.gmra.mxu0 %v3728
        %v3806 = vpop.f32.mrf.mxu0
        %v3807 = vadd.f32 0.0, %v3806
        %v3808 = vpop.f32.mrf.mxu0
        %v3809 = vpop.f32.mrf.mxu0
        %v3810 = vpop.f32.mrf.mxu0
        %3811 = vdwg.mxu0
        %3812 = vmatprep.subr.bf16.mxu0 0
        %3813 = vmatpush1.bf16.msra.mxu0 0
        %3814 = vmatprep.subr.bf16.mxu0 0
        %3815 = vmatpush1.bf16.msra.mxu0 0
        %3816 = vmatprep.subr.bf16.mxu0 0
        %3817 = vmatpush1.bf16.msra.mxu0 0
        %3818 = vmatprep.subr.bf16.mxu0 0
        %3819 = vmatpush1.bf16.msra.mxu0 0
        %3820 = vmatprep.subr.bf16.mxu0 0
        %3821 = vmatpush1.bf16.msra.mxu0 %v3397
        %3822 = vmatprep.subr.bf16.mxu0 0
        %3823 = vmatpush1.bf16.msra.mxu0 %v3396
        %3824 = vmatprep.subr.bf16.mxu0 0
        %3825 = vmatpush1.bf16.msra.mxu0 %v3395
        %3826 = vmatprep.subr.bf16.mxu0 0
        %3827 = vmatpush1.bf16.msra.mxu0 %v3394
        %3828 = vmatprep.subr.bf16.mxu0 0
        %3829 = vmatpush2.bf16.msra.mxu0 0
        %3830 = vmatprep.subr.bf16.mxu0 0
        %3831 = vmatpush2.bf16.msra.mxu0 0
        %3832 = vmatprep.subr.bf16.mxu0 0
        %3833 = vmatpush2.bf16.msra.mxu0 0
        %3834 = vmatprep.subr.bf16.mxu0 0
        %3835 = vmatpush2.bf16.msra.mxu0 0
        %3836 = vmatprep.subr.bf16.mxu0 0
        %3837 = vmatpush2.bf16.msra.mxu0 0
        %3838 = vmatprep.subr.bf16.mxu0 0
        %3839 = vmatpush2.bf16.msra.mxu0 0
        %3840 = vmatprep.subr.bf16.mxu0 0
        %3841 = vmatpush2.bf16.msra.mxu0 0
        %3842 = vmatprep.subr.bf16.mxu0 0
        %3843 = vmatpush2.bf16.msra.mxu0 0
        %3844 = vmatprep.mubr.bf16.mxu0 0
        %3845 = vmatmul.mubr.bf16.gmra.mxu0 %v3600
        %v3846 = vpop.f32.mrf.mxu0
        %v3847 = vadd.f32 %v3807, %v3846
        %v3848 = vpop.f32.mrf.mxu0
        %v3849 = vpop.f32.mrf.mxu0
        %v3850 = vpop.f32.mrf.mxu0
        %3851 = vdwg.mxu0
        %s3852 = scalar_lea.vmem [#allocation4], 5
        %v3853 = vld [vmem:[%s3852] ss:$4 sm:$0x1]
        %v3854 = vpack.c.bf16 %v3853, %v3853
        %v3856 = vsel %vm233, %v3854, 0
        %3858 = vmatprep.subr.bf16.mxu0 0
        %3859 = vmatpush1.bf16.msra.mxu0 0
        %3860 = vmatprep.subr.bf16.mxu0 0
        %3861 = vmatpush1.bf16.msra.mxu0 0
        %3862 = vmatprep.subr.bf16.mxu0 0
        %3863 = vmatpush1.bf16.msra.mxu0 0
        %3864 = vmatprep.subr.bf16.mxu0 0
        %3865 = vmatpush1.bf16.msra.mxu0 0
        %3866 = vmatprep.subr.bf16.mxu0 0
        %3867 = vmatpush1.bf16.msra.mxu0 %v3467
        %3868 = vmatprep.subr.bf16.mxu0 0
        %3869 = vmatpush1.bf16.msra.mxu0 %v3466
        %3870 = vmatprep.subr.bf16.mxu0 0
        %3871 = vmatpush1.bf16.msra.mxu0 %v3465
        %3872 = vmatprep.subr.bf16.mxu0 0
        %3873 = vmatpush1.bf16.msra.mxu0 %v3464
        %3874 = vmatprep.subr.bf16.mxu0 0
        %3875 = vmatpush2.bf16.msra.mxu0 0
        %3876 = vmatprep.subr.bf16.mxu0 0
        %3877 = vmatpush2.bf16.msra.mxu0 0
        %3878 = vmatprep.subr.bf16.mxu0 0
        %3879 = vmatpush2.bf16.msra.mxu0 0
        %3880 = vmatprep.subr.bf16.mxu0 0
        %3881 = vmatpush2.bf16.msra.mxu0 0
        %3882 = vmatprep.subr.bf16.mxu0 0
        %3883 = vmatpush2.bf16.msra.mxu0 0
        %3884 = vmatprep.subr.bf16.mxu0 0
        %3885 = vmatpush2.bf16.msra.mxu0 0
        %3886 = vmatprep.subr.bf16.mxu0 0
        %3887 = vmatpush2.bf16.msra.mxu0 0
        %3888 = vmatprep.subr.bf16.mxu0 0
        %3889 = vmatpush2.bf16.msra.mxu0 0
        %3890 = vmatprep.mubr.bf16.mxu0 0
        %3891 = vmatmul.mubr.bf16.gmra.mxu0 %v3856
        %v3892 = vpop.f32.mrf.mxu0
        %v3893 = vadd.f32 0.0, %v3892
        %v3894 = vpop.f32.mrf.mxu0
        %v3895 = vpop.f32.mrf.mxu0
        %v3896 = vpop.f32.mrf.mxu0
        %3897 = vdwg.mxu0
        %v3898 = vadd.f32 %v3847, %v3893
        %v3899 = vmax.f32 %v3771, %v3898
        %v3900 = vld [vmem:[%s2 + $0x3] sm:$0x1]
        %v3901 = vadd.f32 %v3899, %v3900
        %v3902 = vmax.f32 %v3901, 0.0
        %v3903 = vadd.f32 %v3902, 0.0
        %v3904 = vld [vmem:[%s2 + $0x8] sm:$0xff]
        %v3905 = vld [vmem:[%s2 + $0x10] sm:$0xff]
        %v3906 = vld [vmem:[%s2 + $0x18] sm:$0xff]
        %v3907 = vld [vmem:[%s2 + $0x20] sm:$0xff]
        %v3908 = vld [vmem:[%s2 + $0x28] sm:$0xff]
        %v3909 = vld [vmem:[%s2 + $0x30] sm:$0xff]
        %v3910 = vld [vmem:[%s2 + $0x38] sm:$0xff]
        %v3911 = vld [vmem:[%s2 + $0x40] sm:$0xff]
        %v3912 = vld [vmem:[%s2 + $0x4] sm:$0x1]
        %v3914 = vsel %vm233, %v3903, 0
        %3916 = vmatprep.subr.mxu0 0.0
        %3917 = vmatpush1.msra.mxu0 0.0
        %3918 = vmatprep.subr.mxu0 0.0
        %3919 = vmatpush1.msra.mxu0 0.0
        %3920 = vmatprep.subr.mxu0 0.0
        %3921 = vmatpush1.msra.mxu0 0.0
        %3922 = vmatprep.subr.mxu0 0.0
        %3923 = vmatpush1.msra.mxu0 0.0
        %3924 = vmatprep.subr.mxu0 0.0
        %3925 = vmatpush1.msra.mxu0 0.0
        %3926 = vmatprep.subr.mxu0 0.0
        %3927 = vmatpush1.msra.mxu0 0.0
        %3928 = vmatprep.subr.mxu0 0.0
        %3929 = vmatpush1.msra.mxu0 0.0
        %3930 = vmatprep.subr.mxu0 0.0
        %3931 = vmatpush1.msra.mxu0 0.0
        %3932 = vmatprep.subr.mxu0 0.0
        %3933 = vmatpush1.msra.mxu0 %v3911
        %3934 = vmatprep.subr.mxu0 0.0
        %3935 = vmatpush1.msra.mxu0 %v3910
        %3936 = vmatprep.subr.mxu0 0.0
        %3937 = vmatpush1.msra.mxu0 %v3909
        %3938 = vmatprep.subr.mxu0 0.0
        %3939 = vmatpush1.msra.mxu0 %v3908
        %3940 = vmatprep.subr.mxu0 0.0
        %3941 = vmatpush1.msra.mxu0 %v3907
        %3942 = vmatprep.subr.mxu0 0.0
        %3943 = vmatpush1.msra.mxu0 %v3906
        %3944 = vmatprep.subr.mxu0 0.0
        %3945 = vmatpush1.msra.mxu0 %v3905
        %3946 = vmatprep.subr.mxu0 0.0
        %3947 = vmatpush1.msra.mxu0 %v3904
        %3948 = vmatprep.subr.mxu0 0.0
        %3949 = vmatpush2.msra.mxu0 0.0
        %3950 = vmatprep.subr.mxu0 0.0
        %3951 = vmatpush2.msra.mxu0 0.0
        %3952 = vmatprep.subr.mxu0 0.0
        %3953 = vmatpush2.msra.mxu0 0.0
        %3954 = vmatprep.subr.mxu0 0.0
        %3955 = vmatpush2.msra.mxu0 0.0
        %3956 = vmatprep.subr.mxu0 0.0
        %3957 = vmatpush2.msra.mxu0 0.0
        %3958 = vmatprep.subr.mxu0 0.0
        %3959 = vmatpush2.msra.mxu0 0.0
        %3960 = vmatprep.subr.mxu0 0.0
        %3961 = vmatpush2.msra.mxu0 0.0
        %3962 = vmatprep.subr.mxu0 0.0
        %3963 = vmatpush2.msra.mxu0 0.0
        %3964 = vmatprep.subr.mxu0 0.0
        %3965 = vmatpush2.msra.mxu0 0.0
        %3966 = vmatprep.subr.mxu0 0.0
        %3967 = vmatpush2.msra.mxu0 0.0
        %3968 = vmatprep.subr.mxu0 0.0
        %3969 = vmatpush2.msra.mxu0 0.0
        %3970 = vmatprep.subr.mxu0 0.0
        %3971 = vmatpush2.msra.mxu0 0.0
        %3972 = vmatprep.subr.mxu0 0.0
        %3973 = vmatpush2.msra.mxu0 0.0
        %3974 = vmatprep.subr.mxu0 0.0
        %3975 = vmatpush2.msra.mxu0 0.0
        %3976 = vmatprep.subr.mxu0 0.0
        %3977 = vmatpush2.msra.mxu0 0.0
        %3978 = vmatprep.subr.mxu0 0.0
        %3979 = vmatpush2.msra.mxu0 0.0
        %3980 = vmatprep.mubr.f32.mxu0 0.0
        %3981 = vmatmul.mubr.f32.gmra.mxu0 %v3914
        %v3982 = vpop.f32.mrf.mxu0
        %v3983 = vadd.f32 %v3912, %v3982
        %v3984 = vpop.f32.mrf.mxu0
        %3985 = vdwg.mxu0
        %vm3986 = vcmask 278528
        %v3987 = vsel %vm3986, %v3983, -inf
        %3988 = vmax.xlane.f32.xlu0 %v3987
        %v3989 = vpop.xlane.xlu0 %3988
        %v3990 = vsub.f32 %v3983, %v3989
        %v3991 = vmul.f32 %v3990, 1.442695
        %v3992 = vpow.pop %v3991
        %v3993 = vsel %vm3986, %v3992, 0.0
        %3994 = vadd.xlane.f32.xlu0 %v3993
        %v3995 = vpop.xlane.xlu0 %3994
        %v3996 = vlog2.pop %v3995
        %v3997 = vmul.f32 %v3996, 0.6931472
        %v3998 = vsub.f32 %v3990, %v3997
        %3999 = vst.msk [vmem:[%s162] sm:$0x1] %vm3986, %v3998
        %s4000 = sand.u32 %s93, 1
        %s4001 = scalar_lea.sflag [#allocation6], %s4000
        %s4002 = sand.u32 %s93, 1
        %s4003 = scalar_lea.vmem [#allocation5], %s4002
        // Predicated region
        $region33: #{m5_forward_pallas.1} parent=31 // pred_check
          %p4004 = pneg %p103
        $region34: #{m5_forward_pallas.1} parent=31 // pred_check_branch
          %4006 = sbr.rel (%p4004) target = $region36
        $region35: #{m5_forward_pallas.1} parent=31 // pred_region
          %s4008 = ssub.s32 16, 16
          %4009 = vsyncadd %s4001, %s4008
          %s4010 = smul.addr %s17, 16
          %s4011 = scalar_lea.hbm %s3, %s4010
          %s4013 = sshll.u32 %s4003, 4
          %s4014 = int_to_ptr.vmem [resolvable:$true] %s4013
          %4016 = dma.vmem_to_hbm [thread:$0]  %s4014, 16, %s4011, %s4001
        $region36: #{m5_forward_pallas.1} parent=31 // pred_fallthru
          _
      $region32: #{m5_forward_pallas.1} parent=5 // pred_fallthru
        _
      %p4017 = scmp.le.s32.totalorder 2, %s12
      // Predicated region
      $region37: #{m5_forward_pallas.1} parent=5 // pred_check
        %p4018 = pneg %p4017
      $region38: #{m5_forward_pallas.1} parent=5 // pred_check_branch
        %4020 = sbr.rel (%p4018) target = $region40
      $region39: #{m5_forward_pallas.1} parent=5 // pred_region
        %s4021 = ssub.s32 %s12, 2
        // Predicated region
        $region41: #{m5_forward_pallas.1} parent=39 // pred_check
          %p4022 = pneg %p109
        $region42: #{m5_forward_pallas.1} parent=39 // pred_check_branch
          %4024 = sbr.rel (%p4022) target = $region44
        $region43: #{m5_forward_pallas.1} parent=39 // pred_region
          %s4025 = sand.u32 %s94, 1
          %s4026 = scalar_lea.sflag [#allocation6], %s4025
          %s4027 = sand.u32 %s94, 1
          %s4028 = scalar_lea.vmem [#allocation5], %s4027
          %4029 = dma.done %s4026, 16
        $region44: #{m5_forward_pallas.1} parent=39 // pred_fallthru
          _
      $region40: #{m5_forward_pallas.1} parent=5 // pred_fallthru
        _
    $region6: #{m5_forward_pallas.1} parent=1 // loop_footer
      %s16 = sadd.s32 1, %s12
    $region7: #{m5_forward_pallas.1} parent=1 // loop_footer_branch
      %11 = sbr.rel target = $region3
    $region8: #{m5_forward_pallas.1} parent=1 // loop_exit
      _
    %4030 = vsyncpa [#allocation6], 1
    %s4031 = scalar_lea.sflag [#allocation6], 1
    %4032 = vsyncpa %s4031, 1

</llo_original>
